<compile_context>
chip_gen: v6e
topology: v6e:2x2x1
jax: 0.10.0
libtpu: 0.0.40
codegen_flags: <defaults>
</compile_context>

<pallas_src>
import numpy as np
import jax
import jax.numpy as jnp
from jax.experimental import pallas as pl
from jax.experimental.pallas import tpu as pltpu

LANE = 128  # the final output is lane-padded to a multiple of this


# ----------------------------------------------------------------------------
# Host-side constant operators (numpy, static shapes)
# ----------------------------------------------------------------------------
def adaptive_pool_matrix(S, L):
    """Matrix form of nn.AdaptiveAvgPool1d(S) over length L."""
    M = np.zeros((S, L), np.float32)
    for i in range(S):
        start = (i * L) // S
        end = -((-(i + 1) * L) // S)  # ceil
        M[i, start:end] = 1.0 / (end - start)
    return M


def interp_matrix(L_out, L_in):
    """Matrix form of F.interpolate(mode='linear', align_corners=False)."""
    M = np.zeros((L_out, L_in), np.float32)
    if L_out == L_in:
        np.fill_diagonal(M, 1.0)
        return M
    scale = L_in / L_out
    for i in range(L_out):
        src = max((i + 0.5) * scale - 0.5, 0.0)
        left = min(int(np.floor(src)), L_in - 1)
        right = min(left + 1, L_in - 1)
        lam = src - left
        M[i, left] += 1.0 - lam
        M[i, right] += lam
    return M


def shift_matrices(L):
    """[S_dn, I, S_up]: the three taps of a K=3 'same' conv as length mixers.
    S_dn: out[l] = x[l-1] (zero at l=0); S_up: out[l] = x[l+1] (zero at end)."""
    dn = np.zeros((L, L), np.float32)
    up = np.zeros((L, L), np.float32)
    for i in range(1, L):
        dn[i, i - 1] = 1.0
        up[i - 1, i] = 1.0
    return [dn, np.eye(L, dtype=np.float32), up]


# ----------------------------------------------------------------------------
# Shared affine helpers (used by the pure-JAX reference and by pack_params)
# ----------------------------------------------------------------------------
def _conv1d_nlc(x, w, b):
    """'same' Conv1d on channels-last x (B,L,Cin); w (K,Cin,Cout); b (1,Cout)."""
    K = w.shape[0]
    pad = (K - 1) // 2
    L = x.shape[1]
    xpad = jnp.pad(x, ((0, 0), (pad, pad), (0, 0)))
    acc = jnp.zeros((x.shape[0], L, w.shape[2]), jnp.float32)
    for k in range(K):
        acc = acc + jnp.einsum("blc,co->blo", xpad[:, k:k + L, :], w[k])
    return acc + b


def _mix(m, x):
    """Apply a (Lo, Li) length-mixing matrix to channels-last x (B, Li, C)."""
    return jnp.einsum("ol,blc->boc", jnp.asarray(m, jnp.float32), x)


# ----------------------------------------------------------------------------
# Parameters (deterministic synthetic init, PyTorch-equivalent structure)
# ----------------------------------------------------------------------------
def init_params(key, token_num_max, d_model, pred_len,
                pool_scales=(1, 2, 3, 6), period_num=3):
    d = d_model
    keys = iter(jax.random.split(key, 64))

    def w_init(shape):
        return jax.random.normal(next(keys), shape, jnp.float32) * 0.02

    params = {}
    # PPM: AdaptiveAvgPool1d(scale) -> Conv1d(d, d, 1)
    params["ppm"] = [(w_init((1, d, d)), w_init((1, d))) for _ in pool_scales]
    # bottleneck: Conv1d((len(pool_scales)+1)*d, d, 3, padding=1)
    params["bottleneck"] = (w_init((3, (len(pool_scales) + 1) * d, d)),
                            w_init((1, d)))
    # lateral (1x1) and fpn (3, pad 1) convs
    params["lateral"] = [(w_init((1, d, d)), w_init((1, d)))
                         for _ in range(period_num - 1)]
    params["fpn"] = [(w_init((3, d, d)), w_init((1, d)))
                     for _ in range(period_num - 1)]
    # fpn_bottleneck: Conv1d(period_num*d, d, 3, padding=1)
    params["fpn_bottleneck"] = (w_init((3, period_num * d, d)), w_init((1, d)))
    # conv_seg: Conv1d(d, d, 1)
    params["conv_seg"] = (w_init((1, d, d)), w_init((1, d)))
    # output: Linear(token_num_max*d -> pred_len); stored as (in, out),
    # in-feature index = l*d + c (flatten of an NLC tensor).
    params["output"] = (w_init((token_num_max * d, pred_len)),
                        w_init((1, pred_len)))
    return params


# ----------------------------------------------------------------------------
# One-time host-side packing: algebraic folding + constant consolidation
# ----------------------------------------------------------------------------
def pack_params(params, lengths, batch_size, d_model, pred_len,
                pool_scales=(1, 2, 3, 6), period_num=3):
    d, B = d_model, batch_size
    n_s = len(pool_scales)
    n_lat = period_num - 1
    lengths = tuple(int(x) for x in lengths)
    L_last = lengths[-1]
    R = L_last * B
    p_pad = ((pred_len + LANE - 1) // LANE) * LANE
    assert params["output"][0].shape[0] == L_last * d, \
        "last input length must equal token_num_max"

    eye_b = np.eye(B, dtype=np.float32)

    def kron_pad(m):
        """kron(M, I_B) for l-major batch folding, zero-padded to (R, R)."""
        k = np.kron(np.asarray(m, np.float32), eye_b)
        out = np.zeros((R, R), np.float32)
        out[:k.shape[0], :k.shape[1]] = k
        return out

    # ---- mixing slab: a vertical stack of (R, R) constant blocks -----------
    a_list = [np.eye(L_last, dtype=np.float32)] + [
        interp_matrix(L_last, s) @ adaptive_pool_matrix(s, L_last)
        for s in pool_scales]                       # PPM collapsed: interp @ pool
    s_last = shift_matrices(L_last)
    blocks = []
    for k in range(3):                              # bottleneck fold: S_k @ A_j
        for j in range(n_s + 1):
            blocks.append(kron_pad(s_last[k] @ a_list[j]))
    for i in range(n_lat):                          # top-down interpolation
        blocks.append(kron_pad(interp_matrix(lengths[i + 1], lengths[i])))
    for i in range(n_lat):                          # fpn fold: Mup_i @ S_k
        mup = interp_matrix(L_last, lengths[i])
        s_i = shift_matrices(lengths[i])
        for k in range(3):
            blocks.append(kron_pad(mup @ s_i[k]))
    blocks.append(kron_pad(s_last[0]))              # fpn_bottleneck shift-down
    blocks.append(kron_pad(s_last[2]))              # fpn_bottleneck shift-up
    mix_slab = jnp.asarray(np.concatenate(blocks, axis=0))

    # ---- channel-weight slab: (n, d, d) -------------------------------------
    wbot, bbot = params["bottleneck"]               # (3, (n_s+1)*d, d), (1, d)
    wbot_np = np.asarray(wbot)
    w_left = [np.eye(d, dtype=np.float32)] + [np.asarray(w[0])
                                              for w, _ in params["ppm"]]
    wch = []
    for k in range(3):                              # Wppm_j @ Wbot[k, block j]
        for j in range(n_s + 1):
            wch.append(w_left[j] @ wbot_np[k, j * d:(j + 1) * d, :])
    for w, _ in params["lateral"]:
        wch.append(np.asarray(w)[0])
    for w, _ in params["fpn"]:
        wnp = np.asarray(w)
        for k in range(3):
            wch.append(wnp[k])
    wfb, bfb = params["fpn_bottleneck"]             # (3, period_num*d, d), (1, d)
    wfb_np = np.asarray(wfb)
    for m in range(3):
        for j in range(period_num):
            wch.append(wfb_np[m, j * d:(j + 1) * d, :])
    wch_slab = jnp.asarray(np.stack(wch).astype(np.float32))

    # ---- bias / additive-constant slab: (n, d) -------------------------------
    # The PPM+bottleneck stage is affine in x_last; its additive constant is
    # the stage evaluated at x_last == 0 (PPM branch biases commute through the
    # interpolation because interp rows sum to 1).
    zero_cat = jnp.concatenate(
        [jnp.zeros((1, L_last, d), jnp.float32)]
        + [jnp.zeros((1, L_last, d), jnp.float32) + b for _, b in params["ppm"]],
        axis=-1)
    bot_const = _conv1d_nlc(zero_cat, jnp.asarray(wbot), jnp.asarray(bbot))[0]
    bot_const = jnp.repeat(bot_const, B, axis=0)    # (R, d), l-major row fold
    bias_rows = ([b for _, b in params["lateral"]]
                 + [b for _, b in params["fpn"]]
                 + [jnp.asarray(bfb)])
    bias_slab = jnp.concatenate(
        [jnp.concatenate(bias_rows, axis=0), bot_const], axis=0)

    # ---- fused conv_seg + output Linear (lane-padded); bias as last row -----
    wseg = jnp.asarray(params["conv_seg"][0][0])    # (d, d)
    bseg = jnp.asarray(params["conv_seg"][1])       # (1, d)
    wout, bout = params["output"]                   # (L_last*d, P), (1, P)
    wco = jnp.concatenate(
        [wseg @ wout[l * d:(l + 1) * d, :] for l in range(L_last)], axis=0)
    bco = bout + sum(bseg @ wout[l * d:(l + 1) * d, :] for l in range(L_last))
    wco = jnp.pad(wco, ((0, 0), (0, p_pad - pred_len)))
    bco = jnp.pad(bco, ((0, 0), (0, p_pad - pred_len)))
    wco_slab = jnp.concatenate([wco, bco], axis=0)  # (L_last*d + 1, p_pad)

    return dict(mix=mix_slab, wch=wch_slab, bias=bias_slab, wco=wco_slab,
                batch=B, d_model=d, lengths=lengths, n_scales=n_s,
                period_num=period_num, pred_len=pred_len, p_pad=p_pad)


# ----------------------------------------------------------------------------
# The fused kernel (single invocation, no grid)
# ----------------------------------------------------------------------------
def _make_kernel(batch, d_model, token_len, n_scales, period_num):
    B, d, L = batch, d_model, token_len
    n_lat = period_num - 1
    R = L * B                        # folded row count (row = l*B + b)
    nb = n_scales + 1                # channel blocks entering the bottleneck

    # mixing-slab block offsets (every block is R rows x R cols)
    MIX_GBOT = 0                     # 3*nb blocks: S_k @ A_j  (bottleneck fold)
    MIX_MTD = MIX_GBOT + 3 * nb      # n_lat blocks: top-down interp
    MIX_MS = MIX_MTD + n_lat         # 3*n_lat blocks: Mup_i @ S_k (fpn fold)
    MIX_SDN = MIX_MS + 3 * n_lat     # fpn_bottleneck shift-down
    MIX_SUP = MIX_SDN + 1            # fpn_bottleneck shift-up
    # channel-weight slab indices (each entry is (d, d))
    W_BOT = 0
    W_LAT = W_BOT + 3 * nb
    W_FPN = W_LAT + n_lat
    W_FB = W_FPN + 3 * n_lat
    # bias-slab row offsets
    B_LAT = 0
    B_FPN = B_LAT + n_lat
    B_FB = B_FPN + n_lat
    B_BOT = B_FB + 1                 # R rows: folded PPM+bottleneck constant

    def kernel(xs_ref, mix_ref, wch_ref, bias_ref, wco_ref, o_ref,
               feat_ref, flat_ref):
        dot = lambda a, b: jnp.dot(a, b, preferred_element_type=jnp.float32)

        def mix(blk, n, x):          # (n*R, R) constant  @  (R, d) activation
            return dot(mix_ref[blk * R:(blk + n) * R, :], x)

        # ---- lateral 1x1 convs (inputs zero-padded to R rows; padded rows
        #      only ever hit zero columns of the downstream mixing constants).
        lats = [dot(xs_ref[i], wch_ref[W_LAT + i])
                + bias_ref[B_LAT + i:B_LAT + i + 1, :]
                for i in range(n_lat)]

        # ---- PPM + bottleneck, fully folded host-side:
        #      lat_last = sum_t (S_k A_j @ x_last) @ (Wppm_j Wbot_{k,j}) + const
        # One stacked mixing matmul + 3*nb independent channel matmuls; no PPM
        # conv matmuls and no shift matmuls on the dependency chain.
        x_last = xs_ref[n_lat]
        y = mix(MIX_GBOT, 3 * nb, x_last)                      # (3*nb*R, d)
        lat_last = bias_ref[B_BOT:B_BOT + R, :]
        for t in range(3 * nb):
            lat_last = lat_last + dot(y[t * R:(t + 1) * R, :],
                                      wch_ref[W_BOT + t])
        lats.append(lat_last)

        # ---- top-down fusion: lats[i+1] += interp(lats[i])
        for i in range(n_lat):
            lats[i + 1] = lats[i + 1] + mix(MIX_MTD + i, 1, lats[i])

        # ---- FPN K=3 convs + upsample to the last length (shift & upsample
        #      folded into the MS constants).
        fpn = []
        for i in range(n_lat):
            yi = mix(MIX_MS + 3 * i, 3, lats[i])               # (3*R, d)
            f = bias_ref[B_FPN + i:B_FPN + i + 1, :]
            for k in range(3):
                f = f + dot(yi[k * R:(k + 1) * R, :],
                            wch_ref[W_FPN + 3 * i + k])
            fpn.append(f)
        fpn.append(lats[-1])

        # ---- fpn_bottleneck: K=3 conv over the channel-concat of fpn blocks.
        # The concat is never materialized (per-block weight slabs); the two
        # remaining sequence shifts are tiny (R, R) constant matmuls.
        ys = []
        for m in range(3):
            acc = dot(fpn[0], wch_ref[W_FB + m * period_num])
            for j in range(1, period_num):
                acc = acc + dot(fpn[j], wch_ref[W_FB + m * period_num + j])
            ys.append(acc)
        feat = (mix(MIX_SDN, 1, ys[0]) + ys[1] + mix(MIX_SUP, 1, ys[2])
                + bias_ref[B_FB:B_FB + 1, :])

        # dropout(p=0.1) is identity at inference.
        # ---- epilogue: flatten to (B, L*d) through a VMEM scratch, then ONE
        #      matmul fusing conv_seg + output Linear (folded host-side); the
        #      only HBM store is a dense 128-lane block.
        feat_ref[...] = feat
        for l in range(L):
            flat_ref[:, l * d:(l + 1) * d] = feat_ref[l * B:(l + 1) * B, :]
        o_ref[...] = (dot(flat_ref[...], wco_ref[0:L * d, :])
                      + wco_ref[L * d:L * d + 1, :])

    return kernel


# ----------------------------------------------------------------------------
# Forward pass: one grid-less pallas_call, 5 input DMAs, 1 output DMA
# ----------------------------------------------------------------------------
def decode_head_forward(packed, inputs):
    B = packed["batch"]
    d = packed["d_model"]
    lengths = packed["lengths"]
    period_num = packed["period_num"]
    L_last = lengths[-1]
    R = L_last * B
    assert len(inputs) == period_num and inputs[0].shape[0] == B

    # Fold batch into rows (l-major: row = l*B + b), zero-pad every level to R
    # rows, and stack into ONE dense input array -> a single input DMA.
    xs = []
    for x, Li in zip(inputs, lengths):
        xf = jnp.transpose(x, (1, 0, 2)).reshape(Li * B, d)
        xs.append(jnp.pad(xf, ((0, R - Li * B), (0, 0))))
    xstack = jnp.stack(xs).astype(jnp.float32)

    kernel = _make_kernel(B, d, L_last, packed["n_scales"], period_num)
    vmem = pl.BlockSpec(memory_space=pltpu.MemorySpace.VMEM)
    out = pl.pallas_call(
        kernel,
        out_shape=jax.ShapeDtypeStruct((B, packed["p_pad"]), jnp.float32),
        in_specs=[vmem] * 5,
        out_specs=vmem,
        scratch_shapes=[pltpu.VMEM((R, d), jnp.float32),            # feat
                        pltpu.VMEM((B, L_last * d), jnp.float32)],  # flatten
    )(xstack, packed["mix"], packed["wch"], packed["bias"], packed["wco"])
    return out[:, :packed["pred_len"]]


# ----------------------------------------------------------------------------
# Pure-JAX reference (mirrors the PyTorch control flow, channels-last)
# ----------------------------------------------------------------------------
def _reference_forward(params, inputs, pool_scales=(1, 2, 3, 6), period_num=3):
    laterals = [_conv1d_nlc(inputs[i], *params["lateral"][i])
                for i in range(period_num - 1)]
    x = inputs[-1]
    L = x.shape[1]
    psp = [x]
    for si, s in enumerate(pool_scales):
        pooled = _mix(adaptive_pool_matrix(s, L), x)
        convd = _conv1d_nlc(pooled, *params["ppm"][si])
        psp.append(_mix(interp_matrix(L, s), convd))
    laterals.append(_conv1d_nlc(jnp.concatenate(psp, axis=-1),
                                *params["bottleneck"]))
    for i in range(len(laterals) - 1):
        Ln, Li = laterals[i + 1].shape[1], laterals[i].shape[1]
        laterals[i + 1] = laterals[i + 1] + _mix(interp_matrix(Ln, Li),
                                                 laterals[i])
    fpn = [_conv1d_nlc(laterals[i], *params["fpn"][i])
           for i in range(len(laterals) - 1)]
    fpn.append(laterals[-1])
    L_last = fpn[-1].shape[1]
    for i in range(len(laterals) - 1):
        fpn[i] = _mix(interp_matrix(L_last, fpn[i].shape[1]), fpn[i])
    feat = _conv1d_nlc(jnp.concatenate(fpn, axis=-1), *params["fpn_bottleneck"])
    seasonal = _conv1d_nlc(feat, *params["conv_seg"])
    flat = seasonal.reshape(seasonal.shape[0], -1)
    w, b = params["output"]
    return flat @ w + b


# ----------------------------------------------------------------------------
if __name__ == "__main__":
    B = 2
    d_model = 32
    token_num_max = 8
    pred_len = 16
    period_num = 3
    pool_scales = (1, 2, 3, 6)
    lengths = (2, 4, 8)   # last length == token_num_max

    key = jax.random.PRNGKey(0)
    kparams, kin = jax.random.split(key)
    params = init_params(kparams, token_num_max, d_model, pred_len,
                         pool_scales, period_num)
    packed = pack_params(params, lengths, B, d_model, pred_len,
                         pool_scales, period_num)
    inkeys = jax.random.split(kin, period_num)
    inputs = [jax.random.normal(inkeys[i], (B, lengths[i], d_model),
                                jnp.float32)
              for i in range(period_num)]

    out = jax.block_until_ready(decode_head_forward(packed, inputs))
    assert out.shape == (B, pred_len), out.shape
    assert bool(jnp.all(jnp.isfinite(out)))

    ref = jax.block_until_ready(
        _reference_forward(params, inputs, pool_scales, period_num))
    np.testing.assert_allclose(np.asarray(out), np.asarray(ref),
                               rtol=5e-2, atol=2e-3)
    print("KERNEL_OK")
</pallas_src>

<mosaic_0001>
module attributes {stable_mosaic.version = 11 : i64} {
  func.func @kernel(%arg0: memref<3x16x32xf32, #tpu.memory_space<vmem>>, %arg1: memref<400x16xf32, #tpu.memory_space<vmem>>, %arg2: memref<32x32x32xf32, #tpu.memory_space<vmem>>, %arg3: memref<21x32xf32, #tpu.memory_space<vmem>>, %arg4: memref<257x128xf32, #tpu.memory_space<vmem>>, %arg5: memref<2x128xf32, #tpu.memory_space<vmem>>, %arg6: memref<16x32xf32, #tpu.memory_space<vmem>>, %arg7: memref<2x256xf32, #tpu.memory_space<vmem>>) attributes {dimension_semantics = [], scalar_prefetch = 0 : i64, scratch_operands = 2 : i64, tpu.core_type = #tpu.core_type<tc>} {
    %c0 = arith.constant 0 : index
    %c0_0 = arith.constant 0 : index
    %c0_1 = arith.constant 0 : index
    %0 = vector.load %arg0[%c0, %c0_0, %c0_1] : memref<3x16x32xf32, #tpu.memory_space<vmem>>, vector<1x16x32xf32>
    %1 = vector.shape_cast %0 : vector<1x16x32xf32> to vector<16x32xf32>
    %c15 = arith.constant 15 : index
    %c0_2 = arith.constant 0 : index
    %c0_3 = arith.constant 0 : index
    %2 = vector.load %arg2[%c15, %c0_2, %c0_3] : memref<32x32x32xf32, #tpu.memory_space<vmem>>, vector<1x32x32xf32>
    %3 = vector.shape_cast %2 : vector<1x32x32xf32> to vector<32x32xf32>
    %cst = arith.constant dense<0.000000e+00> : vector<16x32xf32>
    %4 = tpu.matmul %1, %3, %cst {dimension_numbers = #tpu.dot_dimension_numbers<[1], [0], [0], [1], [0, 0, 1, 1], [], []>} : vector<16x32xf32>, vector<32x32xf32>, vector<16x32xf32> -> vector<16x32xf32>
    %c0_4 = arith.constant 0 : index
    %c0_5 = arith.constant 0 : index
    %5 = vector.load %arg3[%c0_4, %c0_5] : memref<21x32xf32, #tpu.memory_space<vmem>>, vector<1x32xf32>
    %6 = vector.broadcast %5 : vector<1x32xf32> to vector<16x32xf32>
    %7 = arith.addf %4, %6 : vector<16x32xf32>
    %c1 = arith.constant 1 : index
    %c0_6 = arith.constant 0 : index
    %c0_7 = arith.constant 0 : index
    %8 = vector.load %arg0[%c1, %c0_6, %c0_7] : memref<3x16x32xf32, #tpu.memory_space<vmem>>, vector<1x16x32xf32>
    %9 = vector.shape_cast %8 : vector<1x16x32xf32> to vector<16x32xf32>
    %c16 = arith.constant 16 : index
    %c0_8 = arith.constant 0 : index
    %c0_9 = arith.constant 0 : index
    %10 = vector.load %arg2[%c16, %c0_8, %c0_9] : memref<32x32x32xf32, #tpu.memory_space<vmem>>, vector<1x32x32xf32>
    %11 = vector.shape_cast %10 : vector<1x32x32xf32> to vector<32x32xf32>
    %cst_10 = arith.constant dense<0.000000e+00> : vector<16x32xf32>
    %12 = tpu.matmul %9, %11, %cst_10 {dimension_numbers = #tpu.dot_dimension_numbers<[1], [0], [0], [1], [0, 0, 1, 1], [], []>} : vector<16x32xf32>, vector<32x32xf32>, vector<16x32xf32> -> vector<16x32xf32>
    %c1_11 = arith.constant 1 : index
    %c0_12 = arith.constant 0 : index
    %13 = vector.load %arg3[%c1_11, %c0_12] : memref<21x32xf32, #tpu.memory_space<vmem>>, vector<1x32xf32>
    %14 = vector.broadcast %13 : vector<1x32xf32> to vector<16x32xf32>
    %15 = arith.addf %12, %14 : vector<16x32xf32>
    %c2 = arith.constant 2 : index
    %c0_13 = arith.constant 0 : index
    %c0_14 = arith.constant 0 : index
    %16 = vector.load %arg0[%c2, %c0_13, %c0_14] : memref<3x16x32xf32, #tpu.memory_space<vmem>>, vector<1x16x32xf32>
    %17 = vector.shape_cast %16 : vector<1x16x32xf32> to vector<16x32xf32>
    %c0_15 = arith.constant 0 : index
    %c0_16 = arith.constant 0 : index
    %18 = vector.load %arg1[%c0_15, %c0_16] : memref<400x16xf32, #tpu.memory_space<vmem>>, vector<240x16xf32>
    %cst_17 = arith.constant dense<0.000000e+00> : vector<240x32xf32>
    %19 = tpu.matmul %18, %17, %cst_17 {dimension_numbers = #tpu.dot_dimension_numbers<[1], [0], [0], [1], [0, 0, 1, 1], [], []>} : vector<240x16xf32>, vector<16x32xf32>, vector<240x32xf32> -> vector<240x32xf32>
    %c5 = arith.constant 5 : index
    %c0_18 = arith.constant 0 : index
    %20 = vector.load %arg3[%c5, %c0_18] : memref<21x32xf32, #tpu.memory_space<vmem>>, vector<16x32xf32>
    %21 = vector.extract_strided_slice %19 {offsets = [0, 0], sizes = [16, 32], strides = [1, 1]} : vector<240x32xf32> to vector<16x32xf32>
    %c0_19 = arith.constant 0 : index
    %c0_20 = arith.constant 0 : index
    %c0_21 = arith.constant 0 : index
    %22 = vector.load %arg2[%c0_19, %c0_20, %c0_21] : memref<32x32x32xf32, #tpu.memory_space<vmem>>, vector<1x32x32xf32>
    %23 = vector.shape_cast %22 : vector<1x32x32xf32> to vector<32x32xf32>
    %cst_22 = arith.constant dense<0.000000e+00> : vector<16x32xf32>
    %24 = tpu.matmul %21, %23, %cst_22 {dimension_numbers = #tpu.dot_dimension_numbers<[1], [0], [0], [1], [0, 0, 1, 1], [], []>} : vector<16x32xf32>, vector<32x32xf32>, vector<16x32xf32> -> vector<16x32xf32>
    %25 = arith.addf %20, %24 : vector<16x32xf32>
    %26 = vector.extract_strided_slice %19 {offsets = [16, 0], sizes = [16, 32], strides = [1, 1]} : vector<240x32xf32> to vector<16x32xf32>
    %c1_23 = arith.constant 1 : index
    %c0_24 = arith.constant 0 : index
    %c0_25 = arith.constant 0 : index
    %27 = vector.load %arg2[%c1_23, %c0_24, %c0_25] : memref<32x32x32xf32, #tpu.memory_space<vmem>>, vector<1x32x32xf32>
    %28 = vector.shape_cast %27 : vector<1x32x32xf32> to vector<32x32xf32>
    %cst_26 = arith.constant dense<0.000000e+00> : vector<16x32xf32>
    %29 = tpu.matmul %26, %28, %cst_26 {dimension_numbers = #tpu.dot_dimension_numbers<[1], [0], [0], [1], [0, 0, 1, 1], [], []>} : vector<16x32xf32>, vector<32x32xf32>, vector<16x32xf32> -> vector<16x32xf32>
    %30 = arith.addf %25, %29 : vector<16x32xf32>
    %31 = vector.extract_strided_slice %19 {offsets = [32, 0], sizes = [16, 32], strides = [1, 1]} : vector<240x32xf32> to vector<16x32xf32>
    %c2_27 = arith.constant 2 : index
    %c0_28 = arith.constant 0 : index
    %c0_29 = arith.constant 0 : index
    %32 = vector.load %arg2[%c2_27, %c0_28, %c0_29] : memref<32x32x32xf32, #tpu.memory_space<vmem>>, vector<1x32x32xf32>
    %33 = vector.shape_cast %32 : vector<1x32x32xf32> to vector<32x32xf32>
    %cst_30 = arith.constant dense<0.000000e+00> : vector<16x32xf32>
    %34 = tpu.matmul %31, %33, %cst_30 {dimension_numbers = #tpu.dot_dimension_numbers<[1], [0], [0], [1], [0, 0, 1, 1], [], []>} : vector<16x32xf32>, vector<32x32xf32>, vector<16x32xf32> -> vector<16x32xf32>
    %35 = arith.addf %30, %34 : vector<16x32xf32>
    %36 = vector.extract_strided_slice %19 {offsets = [48, 0], sizes = [16, 32], strides = [1, 1]} : vector<240x32xf32> to vector<16x32xf32>
    %c3 = arith.constant 3 : index
    %c0_31 = arith.constant 0 : index
    %c0_32 = arith.constant 0 : index
    %37 = vector.load %arg2[%c3, %c0_31, %c0_32] : memref<32x32x32xf32, #tpu.memory_space<vmem>>, vector<1x32x32xf32>
    %38 = vector.shape_cast %37 : vector<1x32x32xf32> to vector<32x32xf32>
    %cst_33 = arith.constant dense<0.000000e+00> : vector<16x32xf32>
    %39 = tpu.matmul %36, %38, %cst_33 {dimension_numbers = #tpu.dot_dimension_numbers<[1], [0], [0], [1], [0, 0, 1, 1], [], []>} : vector<16x32xf32>, vector<32x32xf32>, vector<16x32xf32> -> vector<16x32xf32>
    %40 = arith.addf %35, %39 : vector<16x32xf32>
    %41 = vector.extract_strided_slice %19 {offsets = [64, 0], sizes = [16, 32], strides = [1, 1]} : vector<240x32xf32> to vector<16x32xf32>
    %c4 = arith.constant 4 : index
    %c0_34 = arith.constant 0 : index
    %c0_35 = arith.constant 0 : index
    %42 = vector.load %arg2[%c4, %c0_34, %c0_35] : memref<32x32x32xf32, #tpu.memory_space<vmem>>, vector<1x32x32xf32>
    %43 = vector.shape_cast %42 : vector<1x32x32xf32> to vector<32x32xf32>
    %cst_36 = arith.constant dense<0.000000e+00> : vector<16x32xf32>
    %44 = tpu.matmul %41, %43, %cst_36 {dimension_numbers = #tpu.dot_dimension_numbers<[1], [0], [0], [1], [0, 0, 1, 1], [], []>} : vector<16x32xf32>, vector<32x32xf32>, vector<16x32xf32> -> vector<16x32xf32>
    %45 = arith.addf %40, %44 : vector<16x32xf32>
    %46 = vector.extract_strided_slice %19 {offsets = [80, 0], sizes = [16, 32], strides = [1, 1]} : vector<240x32xf32> to vector<16x32xf32>
    %c5_37 = arith.constant 5 : index
    %c0_38 = arith.constant 0 : index
    %c0_39 = arith.constant 0 : index
    %47 = vector.load %arg2[%c5_37, %c0_38, %c0_39] : memref<32x32x32xf32, #tpu.memory_space<vmem>>, vector<1x32x32xf32>
    %48 = vector.shape_cast %47 : vector<1x32x32xf32> to vector<32x32xf32>
    %cst_40 = arith.constant dense<0.000000e+00> : vector<16x32xf32>
    %49 = tpu.matmul %46, %48, %cst_40 {dimension_numbers = #tpu.dot_dimension_numbers<[1], [0], [0], [1], [0, 0, 1, 1], [], []>} : vector<16x32xf32>, vector<32x32xf32>, vector<16x32xf32> -> vector<16x32xf32>
    %50 = arith.addf %45, %49 : vector<16x32xf32>
    %51 = vector.extract_strided_slice %19 {offsets = [96, 0], sizes = [16, 32], strides = [1, 1]} : vector<240x32xf32> to vector<16x32xf32>
    %c6 = arith.constant 6 : index
    %c0_41 = arith.constant 0 : index
    %c0_42 = arith.constant 0 : index
    %52 = vector.load %arg2[%c6, %c0_41, %c0_42] : memref<32x32x32xf32, #tpu.memory_space<vmem>>, vector<1x32x32xf32>
    %53 = vector.shape_cast %52 : vector<1x32x32xf32> to vector<32x32xf32>
    %cst_43 = arith.constant dense<0.000000e+00> : vector<16x32xf32>
    %54 = tpu.matmul %51, %53, %cst_43 {dimension_numbers = #tpu.dot_dimension_numbers<[1], [0], [0], [1], [0, 0, 1, 1], [], []>} : vector<16x32xf32>, vector<32x32xf32>, vector<16x32xf32> -> vector<16x32xf32>
    %55 = arith.addf %50, %54 : vector<16x32xf32>
    %56 = vector.extract_strided_slice %19 {offsets = [112, 0], sizes = [16, 32], strides = [1, 1]} : vector<240x32xf32> to vector<16x32xf32>
    %c7 = arith.constant 7 : index
    %c0_44 = arith.constant 0 : index
    %c0_45 = arith.constant 0 : index
    %57 = vector.load %arg2[%c7, %c0_44, %c0_45] : memref<32x32x32xf32, #tpu.memory_space<vmem>>, vector<1x32x32xf32>
    %58 = vector.shape_cast %57 : vector<1x32x32xf32> to vector<32x32xf32>
    %cst_46 = arith.constant dense<0.000000e+00> : vector<16x32xf32>
    %59 = tpu.matmul %56, %58, %cst_46 {dimension_numbers = #tpu.dot_dimension_numbers<[1], [0], [0], [1], [0, 0, 1, 1], [], []>} : vector<16x32xf32>, vector<32x32xf32>, vector<16x32xf32> -> vector<16x32xf32>
    %60 = arith.addf %55, %59 : vector<16x32xf32>
    %61 = vector.extract_strided_slice %19 {offsets = [128, 0], sizes = [16, 32], strides = [1, 1]} : vector<240x32xf32> to vector<16x32xf32>
    %c8 = arith.constant 8 : index
    %c0_47 = arith.constant 0 : index
    %c0_48 = arith.constant 0 : index
    %62 = vector.load %arg2[%c8, %c0_47, %c0_48] : memref<32x32x32xf32, #tpu.memory_space<vmem>>, vector<1x32x32xf32>
    %63 = vector.shape_cast %62 : vector<1x32x32xf32> to vector<32x32xf32>
    %cst_49 = arith.constant dense<0.000000e+00> : vector<16x32xf32>
    %64 = tpu.matmul %61, %63, %cst_49 {dimension_numbers = #tpu.dot_dimension_numbers<[1], [0], [0], [1], [0, 0, 1, 1], [], []>} : vector<16x32xf32>, vector<32x32xf32>, vector<16x32xf32> -> vector<16x32xf32>
    %65 = arith.addf %60, %64 : vector<16x32xf32>
    %66 = vector.extract_strided_slice %19 {offsets = [144, 0], sizes = [16, 32], strides = [1, 1]} : vector<240x32xf32> to vector<16x32xf32>
    %c9 = arith.constant 9 : index
    %c0_50 = arith.constant 0 : index
    %c0_51 = arith.constant 0 : index
    %67 = vector.load %arg2[%c9, %c0_50, %c0_51] : memref<32x32x32xf32, #tpu.memory_space<vmem>>, vector<1x32x32xf32>
    %68 = vector.shape_cast %67 : vector<1x32x32xf32> to vector<32x32xf32>
    %cst_52 = arith.constant dense<0.000000e+00> : vector<16x32xf32>
    %69 = tpu.matmul %66, %68, %cst_52 {dimension_numbers = #tpu.dot_dimension_numbers<[1], [0], [0], [1], [0, 0, 1, 1], [], []>} : vector<16x32xf32>, vector<32x32xf32>, vector<16x32xf32> -> vector<16x32xf32>
    %70 = arith.addf %65, %69 : vector<16x32xf32>
    %71 = vector.extract_strided_slice %19 {offsets = [160, 0], sizes = [16, 32], strides = [1, 1]} : vector<240x32xf32> to vector<16x32xf32>
    %c10 = arith.constant 10 : index
    %c0_53 = arith.constant 0 : index
    %c0_54 = arith.constant 0 : index
    %72 = vector.load %arg2[%c10, %c0_53, %c0_54] : memref<32x32x32xf32, #tpu.memory_space<vmem>>, vector<1x32x32xf32>
    %73 = vector.shape_cast %72 : vector<1x32x32xf32> to vector<32x32xf32>
    %cst_55 = arith.constant dense<0.000000e+00> : vector<16x32xf32>
    %74 = tpu.matmul %71, %73, %cst_55 {dimension_numbers = #tpu.dot_dimension_numbers<[1], [0], [0], [1], [0, 0, 1, 1], [], []>} : vector<16x32xf32>, vector<32x32xf32>, vector<16x32xf32> -> vector<16x32xf32>
    %75 = arith.addf %70, %74 : vector<16x32xf32>
    %76 = vector.extract_strided_slice %19 {offsets = [176, 0], sizes = [16, 32], strides = [1, 1]} : vector<240x32xf32> to vector<16x32xf32>
    %c11 = arith.constant 11 : index
    %c0_56 = arith.constant 0 : index
    %c0_57 = arith.constant 0 : index
    %77 = vector.load %arg2[%c11, %c0_56, %c0_57] : memref<32x32x32xf32, #tpu.memory_space<vmem>>, vector<1x32x32xf32>
    %78 = vector.shape_cast %77 : vector<1x32x32xf32> to vector<32x32xf32>
    %cst_58 = arith.constant dense<0.000000e+00> : vector<16x32xf32>
    %79 = tpu.matmul %76, %78, %cst_58 {dimension_numbers = #tpu.dot_dimension_numbers<[1], [0], [0], [1], [0, 0, 1, 1], [], []>} : vector<16x32xf32>, vector<32x32xf32>, vector<16x32xf32> -> vector<16x32xf32>
    %80 = arith.addf %75, %79 : vector<16x32xf32>
    %81 = vector.extract_strided_slice %19 {offsets = [192, 0], sizes = [16, 32], strides = [1, 1]} : vector<240x32xf32> to vector<16x32xf32>
    %c12 = arith.constant 12 : index
    %c0_59 = arith.constant 0 : index
    %c0_60 = arith.constant 0 : index
    %82 = vector.load %arg2[%c12, %c0_59, %c0_60] : memref<32x32x32xf32, #tpu.memory_space<vmem>>, vector<1x32x32xf32>
    %83 = vector.shape_cast %82 : vector<1x32x32xf32> to vector<32x32xf32>
    %cst_61 = arith.constant dense<0.000000e+00> : vector<16x32xf32>
    %84 = tpu.matmul %81, %83, %cst_61 {dimension_numbers = #tpu.dot_dimension_numbers<[1], [0], [0], [1], [0, 0, 1, 1], [], []>} : vector<16x32xf32>, vector<32x32xf32>, vector<16x32xf32> -> vector<16x32xf32>
    %85 = arith.addf %80, %84 : vector<16x32xf32>
    %86 = vector.extract_strided_slice %19 {offsets = [208, 0], sizes = [16, 32], strides = [1, 1]} : vector<240x32xf32> to vector<16x32xf32>
    %c13 = arith.constant 13 : index
    %c0_62 = arith.constant 0 : index
    %c0_63 = arith.constant 0 : index
    %87 = vector.load %arg2[%c13, %c0_62, %c0_63] : memref<32x32x32xf32, #tpu.memory_space<vmem>>, vector<1x32x32xf32>
    %88 = vector.shape_cast %87 : vector<1x32x32xf32> to vector<32x32xf32>
    %cst_64 = arith.constant dense<0.000000e+00> : vector<16x32xf32>
    %89 = tpu.matmul %86, %88, %cst_64 {dimension_numbers = #tpu.dot_dimension_numbers<[1], [0], [0], [1], [0, 0, 1, 1], [], []>} : vector<16x32xf32>, vector<32x32xf32>, vector<16x32xf32> -> vector<16x32xf32>
    %90 = arith.addf %85, %89 : vector<16x32xf32>
    %91 = vector.extract_strided_slice %19 {offsets = [224, 0], sizes = [16, 32], strides = [1, 1]} : vector<240x32xf32> to vector<16x32xf32>
    %c14 = arith.constant 14 : index
    %c0_65 = arith.constant 0 : index
    %c0_66 = arith.constant 0 : index
    %92 = vector.load %arg2[%c14, %c0_65, %c0_66] : memref<32x32x32xf32, #tpu.memory_space<vmem>>, vector<1x32x32xf32>
    %93 = vector.shape_cast %92 : vector<1x32x32xf32> to vector<32x32xf32>
    %cst_67 = arith.constant dense<0.000000e+00> : vector<16x32xf32>
    %94 = tpu.matmul %91, %93, %cst_67 {dimension_numbers = #tpu.dot_dimension_numbers<[1], [0], [0], [1], [0, 0, 1, 1], [], []>} : vector<16x32xf32>, vector<32x32xf32>, vector<16x32xf32> -> vector<16x32xf32>
    %95 = arith.addf %90, %94 : vector<16x32xf32>
    %c240 = arith.constant 240 : index
    %c0_68 = arith.constant 0 : index
    %96 = vector.load %arg1[%c240, %c0_68] : memref<400x16xf32, #tpu.memory_space<vmem>>, vector<16x16xf32>
    %cst_69 = arith.constant dense<0.000000e+00> : vector<16x32xf32>
    %97 = tpu.matmul %96, %7, %cst_69 {dimension_numbers = #tpu.dot_dimension_numbers<[1], [0], [0], [1], [0, 0, 1, 1], [], []>} : vector<16x16xf32>, vector<16x32xf32>, vector<16x32xf32> -> vector<16x32xf32>
    %98 = arith.addf %15, %97 : vector<16x32xf32>
    %c256 = arith.constant 256 : index
    %c0_70 = arith.constant 0 : index
    %99 = vector.load %arg1[%c256, %c0_70] : memref<400x16xf32, #tpu.memory_space<vmem>>, vector<16x16xf32>
    %cst_71 = arith.constant dense<0.000000e+00> : vector<16x32xf32>
    %100 = tpu.matmul %99, %98, %cst_71 {dimension_numbers = #tpu.dot_dimension_numbers<[1], [0], [0], [1], [0, 0, 1, 1], [], []>} : vector<16x16xf32>, vector<16x32xf32>, vector<16x32xf32> -> vector<16x32xf32>
    %101 = arith.addf %95, %100 : vector<16x32xf32>
    %c272 = arith.constant 272 : index
    %c0_72 = arith.constant 0 : index
    %102 = vector.load %arg1[%c272, %c0_72] : memref<400x16xf32, #tpu.memory_space<vmem>>, vector<48x16xf32>
    %cst_73 = arith.constant dense<0.000000e+00> : vector<48x32xf32>
    %103 = tpu.matmul %102, %7, %cst_73 {dimension_numbers = #tpu.dot_dimension_numbers<[1], [0], [0], [1], [0, 0, 1, 1], [], []>} : vector<48x16xf32>, vector<16x32xf32>, vector<48x32xf32> -> vector<48x32xf32>
    %c2_74 = arith.constant 2 : index
    %c0_75 = arith.constant 0 : index
    %104 = vector.load %arg3[%c2_74, %c0_75] : memref<21x32xf32, #tpu.memory_space<vmem>>, vector<1x32xf32>
    %105 = vector.extract_strided_slice %103 {offsets = [0, 0], sizes = [16, 32], strides = [1, 1]} : vector<48x32xf32> to vector<16x32xf32>
    %c17 = arith.constant 17 : index
    %c0_76 = arith.constant 0 : index
    %c0_77 = arith.constant 0 : index
    %106 = vector.load %arg2[%c17, %c0_76, %c0_77] : memref<32x32x32xf32, #tpu.memory_space<vmem>>, vector<1x32x32xf32>
    %107 = vector.shape_cast %106 : vector<1x32x32xf32> to vector<32x32xf32>
    %cst_78 = arith.constant dense<0.000000e+00> : vector<16x32xf32>
    %108 = tpu.matmul %105, %107, %cst_78 {dimension_numbers = #tpu.dot_dimension_numbers<[1], [0], [0], [1], [0, 0, 1, 1], [], []>} : vector<16x32xf32>, vector<32x32xf32>, vector<16x32xf32> -> vector<16x32xf32>
    %109 = vector.broadcast %104 : vector<1x32xf32> to vector<16x32xf32>
    %110 = arith.addf %109, %108 : vector<16x32xf32>
    %111 = vector.extract_strided_slice %103 {offsets = [16, 0], sizes = [16, 32], strides = [1, 1]} : vector<48x32xf32> to vector<16x32xf32>
    %c18 = arith.constant 18 : index
    %c0_79 = arith.constant 0 : index
    %c0_80 = arith.constant 0 : index
    %112 = vector.load %arg2[%c18, %c0_79, %c0_80] : memref<32x32x32xf32, #tpu.memory_space<vmem>>, vector<1x32x32xf32>
    %113 = vector.shape_cast %112 : vector<1x32x32xf32> to vector<32x32xf32>
    %cst_81 = arith.constant dense<0.000000e+00> : vector<16x32xf32>
    %114 = tpu.matmul %111, %113, %cst_81 {dimension_numbers = #tpu.dot_dimension_numbers<[1], [0], [0], [1], [0, 0, 1, 1], [], []>} : vector<16x32xf32>, vector<32x32xf32>, vector<16x32xf32> -> vector<16x32xf32>
    %115 = arith.addf %110, %114 : vector<16x32xf32>
    %116 = vector.extract_strided_slice %103 {offsets = [32, 0], sizes = [16, 32], strides = [1, 1]} : vector<48x32xf32> to vector<16x32xf32>
    %c19 = arith.constant 19 : index
    %c0_82 = arith.constant 0 : index
    %c0_83 = arith.constant 0 : index
    %117 = vector.load %arg2[%c19, %c0_82, %c0_83] : memref<32x32x32xf32, #tpu.memory_space<vmem>>, vector<1x32x32xf32>
    %118 = vector.shape_cast %117 : vector<1x32x32xf32> to vector<32x32xf32>
    %cst_84 = arith.constant dense<0.000000e+00> : vector<16x32xf32>
    %119 = tpu.matmul %116, %118, %cst_84 {dimension_numbers = #tpu.dot_dimension_numbers<[1], [0], [0], [1], [0, 0, 1, 1], [], []>} : vector<16x32xf32>, vector<32x32xf32>, vector<16x32xf32> -> vector<16x32xf32>
    %120 = arith.addf %115, %119 : vector<16x32xf32>
    %c320 = arith.constant 320 : index
    %c0_85 = arith.constant 0 : index
    %121 = vector.load %arg1[%c320, %c0_85] : memref<400x16xf32, #tpu.memory_space<vmem>>, vector<48x16xf32>
    %cst_86 = arith.constant dense<0.000000e+00> : vector<48x32xf32>
    %122 = tpu.matmul %121, %98, %cst_86 {dimension_numbers = #tpu.dot_dimension_numbers<[1], [0], [0], [1], [0, 0, 1, 1], [], []>} : vector<48x16xf32>, vector<16x32xf32>, vector<48x32xf32> -> vector<48x32xf32>
    %c3_87 = arith.constant 3 : index
    %c0_88 = arith.constant 0 : index
    %123 = vector.load %arg3[%c3_87, %c0_88] : memref<21x32xf32, #tpu.memory_space<vmem>>, vector<1x32xf32>
    %124 = vector.extract_strided_slice %122 {offsets = [0, 0], sizes = [16, 32], strides = [1, 1]} : vector<48x32xf32> to vector<16x32xf32>
    %c20 = arith.constant 20 : index
    %c0_89 = arith.constant 0 : index
    %c0_90 = arith.constant 0 : index
    %125 = vector.load %arg2[%c20, %c0_89, %c0_90] : memref<32x32x32xf32, #tpu.memory_space<vmem>>, vector<1x32x32xf32>
    %126 = vector.shape_cast %125 : vector<1x32x32xf32> to vector<32x32xf32>
    %cst_91 = arith.constant dense<0.000000e+00> : vector<16x32xf32>
    %127 = tpu.matmul %124, %126, %cst_91 {dimension_numbers = #tpu.dot_dimension_numbers<[1], [0], [0], [1], [0, 0, 1, 1], [], []>} : vector<16x32xf32>, vector<32x32xf32>, vector<16x32xf32> -> vector<16x32xf32>
    %128 = vector.broadcast %123 : vector<1x32xf32> to vector<16x32xf32>
    %129 = arith.addf %128, %127 : vector<16x32xf32>
    %130 = vector.extract_strided_slice %122 {offsets = [16, 0], sizes = [16, 32], strides = [1, 1]} : vector<48x32xf32> to vector<16x32xf32>
    %c21 = arith.constant 21 : index
    %c0_92 = arith.constant 0 : index
    %c0_93 = arith.constant 0 : index
    %131 = vector.load %arg2[%c21, %c0_92, %c0_93] : memref<32x32x32xf32, #tpu.memory_space<vmem>>, vector<1x32x32xf32>
    %132 = vector.shape_cast %131 : vector<1x32x32xf32> to vector<32x32xf32>
    %cst_94 = arith.constant dense<0.000000e+00> : vector<16x32xf32>
    %133 = tpu.matmul %130, %132, %cst_94 {dimension_numbers = #tpu.dot_dimension_numbers<[1], [0], [0], [1], [0, 0, 1, 1], [], []>} : vector<16x32xf32>, vector<32x32xf32>, vector<16x32xf32> -> vector<16x32xf32>
    %134 = arith.addf %129, %133 : vector<16x32xf32>
    %135 = vector.extract_strided_slice %122 {offsets = [32, 0], sizes = [16, 32], strides = [1, 1]} : vector<48x32xf32> to vector<16x32xf32>
    %c22 = arith.constant 22 : index
    %c0_95 = arith.constant 0 : index
    %c0_96 = arith.constant 0 : index
    %136 = vector.load %arg2[%c22, %c0_95, %c0_96] : memref<32x32x32xf32, #tpu.memory_space<vmem>>, vector<1x32x32xf32>
    %137 = vector.shape_cast %136 : vector<1x32x32xf32> to vector<32x32xf32>
    %cst_97 = arith.constant dense<0.000000e+00> : vector<16x32xf32>
    %138 = tpu.matmul %135, %137, %cst_97 {dimension_numbers = #tpu.dot_dimension_numbers<[1], [0], [0], [1], [0, 0, 1, 1], [], []>} : vector<16x32xf32>, vector<32x32xf32>, vector<16x32xf32> -> vector<16x32xf32>
    %139 = arith.addf %134, %138 : vector<16x32xf32>
    %c23 = arith.constant 23 : index
    %c0_98 = arith.constant 0 : index
    %c0_99 = arith.constant 0 : index
    %140 = vector.load %arg2[%c23, %c0_98, %c0_99] : memref<32x32x32xf32, #tpu.memory_space<vmem>>, vector<1x32x32xf32>
    %141 = vector.shape_cast %140 : vector<1x32x32xf32> to vector<32x32xf32>
    %cst_100 = arith.constant dense<0.000000e+00> : vector<16x32xf32>
    %142 = tpu.matmul %120, %141, %cst_100 {dimension_numbers = #tpu.dot_dimension_numbers<[1], [0], [0], [1], [0, 0, 1, 1], [], []>} : vector<16x32xf32>, vector<32x32xf32>, vector<16x32xf32> -> vector<16x32xf32>
    %c24 = arith.constant 24 : index
    %c0_101 = arith.constant 0 : index
    %c0_102 = arith.constant 0 : index
    %143 = vector.load %arg2[%c24, %c0_101, %c0_102] : memref<32x32x32xf32, #tpu.memory_space<vmem>>, vector<1x32x32xf32>
    %144 = vector.shape_cast %143 : vector<1x32x32xf32> to vector<32x32xf32>
    %cst_103 = arith.constant dense<0.000000e+00> : vector<16x32xf32>
    %145 = tpu.matmul %139, %144, %cst_103 {dimension_numbers = #tpu.dot_dimension_numbers<[1], [0], [0], [1], [0, 0, 1, 1], [], []>} : vector<16x32xf32>, vector<32x32xf32>, vector<16x32xf32> -> vector<16x32xf32>
    %146 = arith.addf %142, %145 : vector<16x32xf32>
    %c25 = arith.constant 25 : index
    %c0_104 = arith.constant 0 : index
    %c0_105 = arith.constant 0 : index
    %147 = vector.load %arg2[%c25, %c0_104, %c0_105] : memref<32x32x32xf32, #tpu.memory_space<vmem>>, vector<1x32x32xf32>
    %148 = vector.shape_cast %147 : vector<1x32x32xf32> to vector<32x32xf32>
    %cst_106 = arith.constant dense<0.000000e+00> : vector<16x32xf32>
    %149 = tpu.matmul %101, %148, %cst_106 {dimension_numbers = #tpu.dot_dimension_numbers<[1], [0], [0], [1], [0, 0, 1, 1], [], []>} : vector<16x32xf32>, vector<32x32xf32>, vector<16x32xf32> -> vector<16x32xf32>
    %150 = arith.addf %146, %149 : vector<16x32xf32>
    %c26 = arith.constant 26 : index
    %c0_107 = arith.constant 0 : index
    %c0_108 = arith.constant 0 : index
    %151 = vector.load %arg2[%c26, %c0_107, %c0_108] : memref<32x32x32xf32, #tpu.memory_space<vmem>>, vector<1x32x32xf32>
    %152 = vector.shape_cast %151 : vector<1x32x32xf32> to vector<32x32xf32>
    %cst_109 = arith.constant dense<0.000000e+00> : vector<16x32xf32>
    %153 = tpu.matmul %120, %152, %cst_109 {dimension_numbers = #tpu.dot_dimension_numbers<[1], [0], [0], [1], [0, 0, 1, 1], [], []>} : vector<16x32xf32>, vector<32x32xf32>, vector<16x32xf32> -> vector<16x32xf32>
    %c27 = arith.constant 27 : index
    %c0_110 = arith.constant 0 : index
    %c0_111 = arith.constant 0 : index
    %154 = vector.load %arg2[%c27, %c0_110, %c0_111] : memref<32x32x32xf32, #tpu.memory_space<vmem>>, vector<1x32x32xf32>
    %155 = vector.shape_cast %154 : vector<1x32x32xf32> to vector<32x32xf32>
    %cst_112 = arith.constant dense<0.000000e+00> : vector<16x32xf32>
    %156 = tpu.matmul %139, %155, %cst_112 {dimension_numbers = #tpu.dot_dimension_numbers<[1], [0], [0], [1], [0, 0, 1, 1], [], []>} : vector<16x32xf32>, vector<32x32xf32>, vector<16x32xf32> -> vector<16x32xf32>
    %157 = arith.addf %153, %156 : vector<16x32xf32>
    %c28 = arith.constant 28 : index
    %c0_113 = arith.constant 0 : index
    %c0_114 = arith.constant 0 : index
    %158 = vector.load %arg2[%c28, %c0_113, %c0_114] : memref<32x32x32xf32, #tpu.memory_space<vmem>>, vector<1x32x32xf32>
    %159 = vector.shape_cast %158 : vector<1x32x32xf32> to vector<32x32xf32>
    %cst_115 = arith.constant dense<0.000000e+00> : vector<16x32xf32>
    %160 = tpu.matmul %101, %159, %cst_115 {dimension_numbers = #tpu.dot_dimension_numbers<[1], [0], [0], [1], [0, 0, 1, 1], [], []>} : vector<16x32xf32>, vector<32x32xf32>, vector<16x32xf32> -> vector<16x32xf32>
    %161 = arith.addf %157, %160 : vector<16x32xf32>
    %c29 = arith.constant 29 : index
    %c0_116 = arith.constant 0 : index
    %c0_117 = arith.constant 0 : index
    %162 = vector.load %arg2[%c29, %c0_116, %c0_117] : memref<32x32x32xf32, #tpu.memory_space<vmem>>, vector<1x32x32xf32>
    %163 = vector.shape_cast %162 : vector<1x32x32xf32> to vector<32x32xf32>
    %cst_118 = arith.constant dense<0.000000e+00> : vector<16x32xf32>
    %164 = tpu.matmul %120, %163, %cst_118 {dimension_numbers = #tpu.dot_dimension_numbers<[1], [0], [0], [1], [0, 0, 1, 1], [], []>} : vector<16x32xf32>, vector<32x32xf32>, vector<16x32xf32> -> vector<16x32xf32>
    %c30 = arith.constant 30 : index
    %c0_119 = arith.constant 0 : index
    %c0_120 = arith.constant 0 : index
    %165 = vector.load %arg2[%c30, %c0_119, %c0_120] : memref<32x32x32xf32, #tpu.memory_space<vmem>>, vector<1x32x32xf32>
    %166 = vector.shape_cast %165 : vector<1x32x32xf32> to vector<32x32xf32>
    %cst_121 = arith.constant dense<0.000000e+00> : vector<16x32xf32>
    %167 = tpu.matmul %139, %166, %cst_121 {dimension_numbers = #tpu.dot_dimension_numbers<[1], [0], [0], [1], [0, 0, 1, 1], [], []>} : vector<16x32xf32>, vector<32x32xf32>, vector<16x32xf32> -> vector<16x32xf32>
    %168 = arith.addf %164, %167 : vector<16x32xf32>
    %c31 = arith.constant 31 : index
    %c0_122 = arith.constant 0 : index
    %c0_123 = arith.constant 0 : index
    %169 = vector.load %arg2[%c31, %c0_122, %c0_123] : memref<32x32x32xf32, #tpu.memory_space<vmem>>, vector<1x32x32xf32>
    %170 = vector.shape_cast %169 : vector<1x32x32xf32> to vector<32x32xf32>
    %cst_124 = arith.constant dense<0.000000e+00> : vector<16x32xf32>
    %171 = tpu.matmul %101, %170, %cst_124 {dimension_numbers = #tpu.dot_dimension_numbers<[1], [0], [0], [1], [0, 0, 1, 1], [], []>} : vector<16x32xf32>, vector<32x32xf32>, vector<16x32xf32> -> vector<16x32xf32>
    %172 = arith.addf %168, %171 : vector<16x32xf32>
    %c368 = arith.constant 368 : index
    %c0_125 = arith.constant 0 : index
    %173 = vector.load %arg1[%c368, %c0_125] : memref<400x16xf32, #tpu.memory_space<vmem>>, vector<16x16xf32>
    %cst_126 = arith.constant dense<0.000000e+00> : vector<16x32xf32>
    %174 = tpu.matmul %173, %150, %cst_126 {dimension_numbers = #tpu.dot_dimension_numbers<[1], [0], [0], [1], [0, 0, 1, 1], [], []>} : vector<16x16xf32>, vector<16x32xf32>, vector<16x32xf32> -> vector<16x32xf32>
    %175 = arith.addf %174, %161 : vector<16x32xf32>
    %c384 = arith.constant 384 : index
    %c0_127 = arith.constant 0 : index
    %176 = vector.load %arg1[%c384, %c0_127] : memref<400x16xf32, #tpu.memory_space<vmem>>, vector<16x16xf32>
    %cst_128 = arith.constant dense<0.000000e+00> : vector<16x32xf32>
    %177 = tpu.matmul %176, %172, %cst_128 {dimension_numbers = #tpu.dot_dimension_numbers<[1], [0], [0], [1], [0, 0, 1, 1], [], []>} : vector<16x16xf32>, vector<16x32xf32>, vector<16x32xf32> -> vector<16x32xf32>
    %178 = arith.addf %175, %177 : vector<16x32xf32>
    %c4_129 = arith.constant 4 : index
    %c0_130 = arith.constant 0 : index
    %179 = vector.load %arg3[%c4_129, %c0_130] : memref<21x32xf32, #tpu.memory_space<vmem>>, vector<1x32xf32>
    %180 = vector.broadcast %179 : vector<1x32xf32> to vector<16x32xf32>
    %181 = arith.addf %178, %180 : vector<16x32xf32>
    %c0_131 = arith.constant 0 : index
    %c0_132 = arith.constant 0 : index
    %182 = vector.load %arg6[%c0_131, %c0_132] : memref<16x32xf32, #tpu.memory_space<vmem>>, vector<16x32xf32>
    tpu.vector_store %arg6[%c0_131, %c0_132], %181 {strides = array<i32>} : memref<16x32xf32, #tpu.memory_space<vmem>>, vector<16x32xf32>,
    %c0_133 = arith.constant 0 : index
    %c0_134 = arith.constant 0 : index
    %183 = vector.load %arg6[%c0_133, %c0_134] : memref<16x32xf32, #tpu.memory_space<vmem>>, vector<2x32xf32>
    %c0_135 = arith.constant 0 : index
    %c0_136 = arith.constant 0 : index
    %184 = vector.load %arg7[%c0_135, %c0_136] : memref<2x256xf32, #tpu.memory_space<vmem>>, vector<2x32xf32>
    tpu.vector_store %arg7[%c0_135, %c0_136], %183 {strides = array<i32>} : memref<2x256xf32, #tpu.memory_space<vmem>>, vector<2x32xf32>,
    %c2_137 = arith.constant 2 : index
    %c0_138 = arith.constant 0 : index
    %185 = vector.load %arg6[%c2_137, %c0_138] : memref<16x32xf32, #tpu.memory_space<vmem>>, vector<2x32xf32>
    %c0_139 = arith.constant 0 : index
    %c32 = arith.constant 32 : index
    %186 = vector.load %arg7[%c0_139, %c32] : memref<2x256xf32, #tpu.memory_space<vmem>>, vector<2x32xf32>
    tpu.vector_store %arg7[%c0_139, %c32], %185 {strides = array<i32>} : memref<2x256xf32, #tpu.memory_space<vmem>>, vector<2x32xf32>,
    %c4_140 = arith.constant 4 : index
    %c0_141 = arith.constant 0 : index
    %187 = vector.load %arg6[%c4_140, %c0_141] : memref<16x32xf32, #tpu.memory_space<vmem>>, vector<2x32xf32>
    %c0_142 = arith.constant 0 : index
    %c64 = arith.constant 64 : index
    %188 = vector.load %arg7[%c0_142, %c64] : memref<2x256xf32, #tpu.memory_space<vmem>>, vector<2x32xf32>
    tpu.vector_store %arg7[%c0_142, %c64], %187 {strides = array<i32>} : memref<2x256xf32, #tpu.memory_space<vmem>>, vector<2x32xf32>,
    %c6_143 = arith.constant 6 : index
    %c0_144 = arith.constant 0 : index
    %189 = vector.load %arg6[%c6_143, %c0_144] : memref<16x32xf32, #tpu.memory_space<vmem>>, vector<2x32xf32>
    %c0_145 = arith.constant 0 : index
    %c96 = arith.constant 96 : index
    %190 = vector.load %arg7[%c0_145, %c96] : memref<2x256xf32, #tpu.memory_space<vmem>>, vector<2x32xf32>
    tpu.vector_store %arg7[%c0_145, %c96], %189 {strides = array<i32>} : memref<2x256xf32, #tpu.memory_space<vmem>>, vector<2x32xf32>,
    %c8_146 = arith.constant 8 : index
    %c0_147 = arith.constant 0 : index
    %191 = vector.load %arg6[%c8_146, %c0_147] : memref<16x32xf32, #tpu.memory_space<vmem>>, vector<2x32xf32>
    %c0_148 = arith.constant 0 : index
    %c128 = arith.constant 128 : index
    %192 = vector.load %arg7[%c0_148, %c128] : memref<2x256xf32, #tpu.memory_space<vmem>>, vector<2x32xf32>
    tpu.vector_store %arg7[%c0_148, %c128], %191 {strides = array<i32>} : memref<2x256xf32, #tpu.memory_space<vmem>>, vector<2x32xf32>,
    %c10_149 = arith.constant 10 : index
    %c0_150 = arith.constant 0 : index
    %193 = vector.load %arg6[%c10_149, %c0_150] : memref<16x32xf32, #tpu.memory_space<vmem>>, vector<2x32xf32>
    %c0_151 = arith.constant 0 : index
    %c160 = arith.constant 160 : index
    %194 = vector.load %arg7[%c0_151, %c160] : memref<2x256xf32, #tpu.memory_space<vmem>>, vector<2x32xf32>
    tpu.vector_store %arg7[%c0_151, %c160], %193 {strides = array<i32>} : memref<2x256xf32, #tpu.memory_space<vmem>>, vector<2x32xf32>,
    %c12_152 = arith.constant 12 : index
    %c0_153 = arith.constant 0 : index
    %195 = vector.load %arg6[%c12_152, %c0_153] : memref<16x32xf32, #tpu.memory_space<vmem>>, vector<2x32xf32>
    %c0_154 = arith.constant 0 : index
    %c192 = arith.constant 192 : index
    %196 = vector.load %arg7[%c0_154, %c192] : memref<2x256xf32, #tpu.memory_space<vmem>>, vector<2x32xf32>
    tpu.vector_store %arg7[%c0_154, %c192], %195 {strides = array<i32>} : memref<2x256xf32, #tpu.memory_space<vmem>>, vector<2x32xf32>,
    %c14_155 = arith.constant 14 : index
    %c0_156 = arith.constant 0 : index
    %197 = vector.load %arg6[%c14_155, %c0_156] : memref<16x32xf32, #tpu.memory_space<vmem>>, vector<2x32xf32>
    %c0_157 = arith.constant 0 : index
    %c224 = arith.constant 224 : index
    %198 = vector.load %arg7[%c0_157, %c224] : memref<2x256xf32, #tpu.memory_space<vmem>>, vector<2x32xf32>
    tpu.vector_store %arg7[%c0_157, %c224], %197 {strides = array<i32>} : memref<2x256xf32, #tpu.memory_space<vmem>>, vector<2x32xf32>,
    %c0_158 = arith.constant 0 : index
    %c0_159 = arith.constant 0 : index
    %199 = vector.load %arg7[%c0_158, %c0_159] : memref<2x256xf32, #tpu.memory_space<vmem>>, vector<2x256xf32>
    %c0_160 = arith.constant 0 : index
    %c0_161 = arith.constant 0 : index
    %200 = vector.load %arg4[%c0_160, %c0_161] : memref<257x128xf32, #tpu.memory_space<vmem>>, vector<256x128xf32>
    %cst_162 = arith.constant dense<0.000000e+00> : vector<2x128xf32>
    %201 = tpu.matmul %199, %200, %cst_162 {dimension_numbers = #tpu.dot_dimension_numbers<[1], [0], [0], [1], [0, 0, 1, 1], [], []>} : vector<2x256xf32>, vector<256x128xf32>, vector<2x128xf32> -> vector<2x128xf32>
    %c256_163 = arith.constant 256 : index
    %c0_164 = arith.constant 0 : index
    %202 = vector.load %arg4[%c256_163, %c0_164] : memref<257x128xf32, #tpu.memory_space<vmem>>, vector<1x128xf32>
    %203 = vector.broadcast %202 : vector<1x128xf32> to vector<2x128xf32>
    %204 = arith.addf %201, %203 : vector<2x128xf32>
    %c0_165 = arith.constant 0 : index
    %c0_166 = arith.constant 0 : index
    %205 = vector.load %arg5[%c0_165, %c0_166] : memref<2x128xf32, #tpu.memory_space<vmem>>, vector<2x128xf32>
    tpu.vector_store %arg5[%c0_165, %c0_166], %204 {strides = array<i32>} : memref<2x128xf32, #tpu.memory_space<vmem>>, vector<2x128xf32>,
    return
  }
}

</mosaic_0001>

<llo_original>
// kernel: tpu_custom_call.1
$region0: #{tpu_custom_call.1}
  #allocation0 [shape = 'u32[]', space=smem, size = 0x4, offset = 0x4, fixed_abs, tag = 'smem constant byte address 0x4 - core index']
  #allocation1 [shape = 'u32[144,128]{1,0:T(1,128)}', space=vmem, size = 0x12000, scoped, tag = 'internal scratch']
  #allocation2 [shape = 'f32[16,32]{1,0:T(8,128)}', space=vmem, size = 0x2000, scoped, tag = 'scratch operand']
  #allocation3 [shape = 'f32[2,256]{1,0:T(2,128)}', space=vmem, size = 0x800, scoped, tag = 'scratch operand']
  %s0 = inlined_call_operand.vmem [shape: f32[3,16,32], index: 0, kind: input, shape index: {}]
  %s1 = inlined_call_operand.vmem [shape: f32[400,16], index: 1, kind: input, shape index: {}]
  %s2 = inlined_call_operand.hbm [shape: f32[32,32,32], index: 2, kind: input, shape index: {}]
  %s3 = inlined_call_operand.vmem [shape: f32[21,32], index: 3, kind: input, shape index: {}]
  %s4 = inlined_call_operand.vmem [shape: f32[257,128], index: 4, kind: input, shape index: {}]
  %s5 = inlined_call_operand.hbm [shape: f32[2,128], index: 5, kind: output, shape index: {}]
  %s6 = sld [smem:[#allocation0]]
  $region34: #{tpu_custom_call.1} parent=0
    _
  %s8 = ssub.s32 1, %s6
  %s9 = scalar_select 0, %s8, %s6
  $region1: #{tpu_custom_call.1} parent=0
    #allocation4 [shape = 'u8[524288]{0}', space=vmem, size = 0x80000, scoped, tag = 'input window, operand 2, single buffered']
    #allocation5 [shape = 's32[1]{0}', space=sflag, size = 0x4, scoped, tag = 'scoped memory for tpu_custom_call.1']
    #allocation6 [shape = 's32[1]{0}', space=sflag, size = 0x4, scoped, tag = 'scoped memory for tpu_custom_call.1']
    #allocation7 [shape = 'u8[1024]{0}', space=vmem, size = 0x400, scoped, tag = 'output window, operand 0, single buffered']
    %10 = vsyncpa [#allocation5], 0
    %11 = vsyncpa [#allocation6], 0
    // Predicated region
    $region2: #{tpu_custom_call.1} parent=1 // pred_check
      _
    $region3: #{tpu_custom_call.1} parent=1 // pred_check_branch
      %13 = sbr.rel (0) target = $region5
    $region4: #{tpu_custom_call.1} parent=1 // pred_region
      _
    $region5: #{tpu_custom_call.1} parent=1 // pred_fallthru
      _
    // Predicated region
    $region6: #{tpu_custom_call.1} parent=1 // pred_check
      _
    $region7: #{tpu_custom_call.1} parent=1 // pred_check_branch
      %15 = sbr.rel (0) target = $region9
    $region8: #{tpu_custom_call.1} parent=1 // pred_region
      _
    $region9: #{tpu_custom_call.1} parent=1 // pred_fallthru
      _
    // Predicated region
    $region10: #{tpu_custom_call.1} parent=1 // pred_check
      _
    $region11: #{tpu_custom_call.1} parent=1 // pred_check_branch
      %17 = sbr.rel (0) target = $region13
    $region12: #{tpu_custom_call.1} parent=1 // pred_region
      %s19 = ssub.s32 16384, 16384
      %20 = vsyncadd [#allocation5], %s19
      %s21 = sshll.u32 [#allocation4], 4
      %s22 = int_to_ptr.vmem [resolvable:$true] %s21
      %27 = dma.hbm_to_vmem [thread:$0]  %s2, 16384, %s22, [#allocation5], 128, 128, 8
    $region13: #{tpu_custom_call.1} parent=1 // pred_fallthru
      _
    // Predicated region
    $region14: #{tpu_custom_call.1} parent=1 // pred_check
      _
    $region15: #{tpu_custom_call.1} parent=1 // pred_check_branch
      %29 = sbr.rel (0) target = $region17
    $region16: #{tpu_custom_call.1} parent=1 // pred_region
      _
    $region17: #{tpu_custom_call.1} parent=1 // pred_fallthru
      _
    // Predicated region
    $region18: #{tpu_custom_call.1} parent=1 // pred_check
      _
    $region19: #{tpu_custom_call.1} parent=1 // pred_check_branch
      %31 = sbr.rel (0) target = $region21
    $region20: #{tpu_custom_call.1} parent=1 // pred_region
      _
    $region21: #{tpu_custom_call.1} parent=1 // pred_fallthru
      _
    // Predicated region
    $region22: #{tpu_custom_call.1} parent=1 // pred_check
      _
    $region23: #{tpu_custom_call.1} parent=1 // pred_check_branch
      %33 = sbr.rel (0) target = $region25
    $region24: #{tpu_custom_call.1} parent=1 // pred_region
      %34 = dma.done [#allocation5], 16384
    $region25: #{tpu_custom_call.1} parent=1 // pred_fallthru
      _
    %v35 = vld [vmem:[%s0] sm:$0xff]
    %v36 = vld [vmem:[%s0 + $0x8] sm:$0xff]
    %s37 = scalar_lea.vmem [#allocation4], 480
    %v38 = vld [vmem:[%s37] sm:$0xff]
    %v39 = vld [vmem:[%s37 + $0x8] sm:$0xff]
    %v40 = vld [vmem:[%s37 + $0x10] sm:$0xff]
    %v41 = vld [vmem:[%s37 + $0x18] sm:$0xff]
    %v42 = vld [vmem:[%s3] sm:$0x1]
    %v43 = vlaneseq
    %v44 = vshrl.u32 %v43, 7
    %v45 = vsub.s32 0, %v44
    %v46 = vrot.slane %v42, %v45
    %vm47 = vcmask 261120
    %v49 = vsel %vm47, %v35, 0
    %v52 = vsel %vm47, %v36, 0
    %54 = vmatprep.subr.mxu0 0.0
    %55 = vmatpush1.msra.mxu0 0.0
    %56 = vmatprep.subr.mxu0 0.0
    %57 = vmatpush1.msra.mxu0 0.0
    %58 = vmatprep.subr.mxu0 0.0
    %59 = vmatpush1.msra.mxu0 0.0
    %60 = vmatprep.subr.mxu0 0.0
    %61 = vmatpush1.msra.mxu0 0.0
    %62 = vmatprep.subr.mxu0 0.0
    %63 = vmatpush1.msra.mxu0 0.0
    %64 = vmatprep.subr.mxu0 0.0
    %65 = vmatpush1.msra.mxu0 0.0
    %66 = vmatprep.subr.mxu0 0.0
    %67 = vmatpush1.msra.mxu0 0.0
    %68 = vmatprep.subr.mxu0 0.0
    %69 = vmatpush1.msra.mxu0 0.0
    %70 = vmatprep.subr.mxu0 0.0
    %71 = vmatpush1.msra.mxu0 0.0
    %72 = vmatprep.subr.mxu0 0.0
    %73 = vmatpush1.msra.mxu0 0.0
    %74 = vmatprep.subr.mxu0 0.0
    %75 = vmatpush1.msra.mxu0 0.0
    %76 = vmatprep.subr.mxu0 0.0
    %77 = vmatpush1.msra.mxu0 0.0
    %78 = vmatprep.subr.mxu0 0.0
    %79 = vmatpush1.msra.mxu0 %v41
    %80 = vmatprep.subr.mxu0 0.0
    %81 = vmatpush1.msra.mxu0 %v40
    %82 = vmatprep.subr.mxu0 0.0
    %83 = vmatpush1.msra.mxu0 %v39
    %84 = vmatprep.subr.mxu0 0.0
    %85 = vmatpush1.msra.mxu0 %v38
    %86 = vmatprep.subr.mxu0 0.0
    %87 = vmatpush2.msra.mxu0 0.0
    %88 = vmatprep.subr.mxu0 0.0
    %89 = vmatpush2.msra.mxu0 0.0
    %90 = vmatprep.subr.mxu0 0.0
    %91 = vmatpush2.msra.mxu0 0.0
    %92 = vmatprep.subr.mxu0 0.0
    %93 = vmatpush2.msra.mxu0 0.0
    %94 = vmatprep.subr.mxu0 0.0
    %95 = vmatpush2.msra.mxu0 0.0
    %96 = vmatprep.subr.mxu0 0.0
    %97 = vmatpush2.msra.mxu0 0.0
    %98 = vmatprep.subr.mxu0 0.0
    %99 = vmatpush2.msra.mxu0 0.0
    %100 = vmatprep.subr.mxu0 0.0
    %101 = vmatpush2.msra.mxu0 0.0
    %102 = vmatprep.subr.mxu0 0.0
    %103 = vmatpush2.msra.mxu0 0.0
    %104 = vmatprep.subr.mxu0 0.0
    %105 = vmatpush2.msra.mxu0 0.0
    %106 = vmatprep.subr.mxu0 0.0
    %107 = vmatpush2.msra.mxu0 0.0
    %108 = vmatprep.subr.mxu0 0.0
    %109 = vmatpush2.msra.mxu0 0.0
    %110 = vmatprep.subr.mxu0 0.0
    %111 = vmatpush2.msra.mxu0 0.0
    %112 = vmatprep.subr.mxu0 0.0
    %113 = vmatpush2.msra.mxu0 0.0
    %114 = vmatprep.subr.mxu0 0.0
    %115 = vmatpush2.msra.mxu0 0.0
    %116 = vmatprep.subr.mxu0 0.0
    %117 = vmatpush2.msra.mxu0 0.0
    %118 = vmatprep.mubr.f32.mxu0 0.0
    %119 = vmatmul.mubr.f32.gmra.mxu0 %v49
    %v120 = vpop.f32.mrf.mxu0
    %v121 = vadd.f32 %v46, %v120
    %v122 = vpop.f32.mrf.mxu0
    %123 = vmatprep.mubr.f32.mxu0 0.0
    %124 = vmatmul.mubr.f32.gmra.mxu0 %v52
    %v125 = vpop.f32.mrf.mxu0
    %v126 = vadd.f32 %v46, %v125
    %v127 = vpop.f32.mrf.mxu0
    %128 = vdwg.mxu0
    %s129 = scalar_lea.vmem %s0, 16
    %v130 = vld [vmem:[%s129] sm:$0xff]
    %v131 = vld [vmem:[%s129 + $0x8] sm:$0xff]
    %s132 = scalar_lea.vmem [#allocation4], 512
    %v133 = vld [vmem:[%s132] sm:$0xff]
    %v134 = vld [vmem:[%s132 + $0x8] sm:$0xff]
    %v135 = vld [vmem:[%s132 + $0x10] sm:$0xff]
    %v136 = vld [vmem:[%s132 + $0x18] sm:$0xff]
    %v137 = vld [vmem:[%s3 + $0x1] sm:$0x1]
    %v138 = vlaneseq
    %v139 = vshrl.u32 %v138, 7
    %v140 = vsub.s32 0, %v139
    %v141 = vrot.slane %v137, %v140
    %v143 = vsel %vm47, %v130, 0
    %v146 = vsel %vm47, %v131, 0
    %148 = vmatprep.subr.mxu0 0.0
    %149 = vmatpush1.msra.mxu0 0.0
    %150 = vmatprep.subr.mxu0 0.0
    %151 = vmatpush1.msra.mxu0 0.0
    %152 = vmatprep.subr.mxu0 0.0
    %153 = vmatpush1.msra.mxu0 0.0
    %154 = vmatprep.subr.mxu0 0.0
    %155 = vmatpush1.msra.mxu0 0.0
    %156 = vmatprep.subr.mxu0 0.0
    %157 = vmatpush1.msra.mxu0 0.0
    %158 = vmatprep.subr.mxu0 0.0
    %159 = vmatpush1.msra.mxu0 0.0
    %160 = vmatprep.subr.mxu0 0.0
    %161 = vmatpush1.msra.mxu0 0.0
    %162 = vmatprep.subr.mxu0 0.0
    %163 = vmatpush1.msra.mxu0 0.0
    %164 = vmatprep.subr.mxu0 0.0
    %165 = vmatpush1.msra.mxu0 0.0
    %166 = vmatprep.subr.mxu0 0.0
    %167 = vmatpush1.msra.mxu0 0.0
    %168 = vmatprep.subr.mxu0 0.0
    %169 = vmatpush1.msra.mxu0 0.0
    %170 = vmatprep.subr.mxu0 0.0
    %171 = vmatpush1.msra.mxu0 0.0
    %172 = vmatprep.subr.mxu0 0.0
    %173 = vmatpush1.msra.mxu0 %v136
    %174 = vmatprep.subr.mxu0 0.0
    %175 = vmatpush1.msra.mxu0 %v135
    %176 = vmatprep.subr.mxu0 0.0
    %177 = vmatpush1.msra.mxu0 %v134
    %178 = vmatprep.subr.mxu0 0.0
    %179 = vmatpush1.msra.mxu0 %v133
    %180 = vmatprep.subr.mxu0 0.0
    %181 = vmatpush2.msra.mxu0 0.0
    %182 = vmatprep.subr.mxu0 0.0
    %183 = vmatpush2.msra.mxu0 0.0
    %184 = vmatprep.subr.mxu0 0.0
    %185 = vmatpush2.msra.mxu0 0.0
    %186 = vmatprep.subr.mxu0 0.0
    %187 = vmatpush2.msra.mxu0 0.0
    %188 = vmatprep.subr.mxu0 0.0
    %189 = vmatpush2.msra.mxu0 0.0
    %190 = vmatprep.subr.mxu0 0.0
    %191 = vmatpush2.msra.mxu0 0.0
    %192 = vmatprep.subr.mxu0 0.0
    %193 = vmatpush2.msra.mxu0 0.0
    %194 = vmatprep.subr.mxu0 0.0
    %195 = vmatpush2.msra.mxu0 0.0
    %196 = vmatprep.subr.mxu0 0.0
    %197 = vmatpush2.msra.mxu0 0.0
    %198 = vmatprep.subr.mxu0 0.0
    %199 = vmatpush2.msra.mxu0 0.0
    %200 = vmatprep.subr.mxu0 0.0
    %201 = vmatpush2.msra.mxu0 0.0
    %202 = vmatprep.subr.mxu0 0.0
    %203 = vmatpush2.msra.mxu0 0.0
    %204 = vmatprep.subr.mxu0 0.0
    %205 = vmatpush2.msra.mxu0 0.0
    %206 = vmatprep.subr.mxu0 0.0
    %207 = vmatpush2.msra.mxu0 0.0
    %208 = vmatprep.subr.mxu0 0.0
    %209 = vmatpush2.msra.mxu0 0.0
    %210 = vmatprep.subr.mxu0 0.0
    %211 = vmatpush2.msra.mxu0 0.0
    %212 = vmatprep.mubr.f32.mxu0 0.0
    %213 = vmatmul.mubr.f32.gmra.mxu0 %v143
    %v214 = vpop.f32.mrf.mxu0
    %v215 = vadd.f32 %v141, %v214
    %v216 = vpop.f32.mrf.mxu0
    %217 = vmatprep.mubr.f32.mxu0 0.0
    %218 = vmatmul.mubr.f32.gmra.mxu0 %v146
    %v219 = vpop.f32.mrf.mxu0
    %v220 = vadd.f32 %v141, %v219
    %v221 = vpop.f32.mrf.mxu0
    %222 = vdwg.mxu0
    %s223 = scalar_lea.vmem %s0, 32
    %v224 = vld [vmem:[%s223] sm:$0xff]
    %v225 = vld [vmem:[%s223 + $0x8] sm:$0xff]
    %v226 = vld [vmem:[%s1] sm:$0xff]
    %v227 = vld [vmem:[%s1 + $0x8] sm:$0xff]
    %v228 = vld [vmem:[%s1 + $0x10] sm:$0xff]
    %v229 = vld [vmem:[%s1 + $0x18] sm:$0xff]
    %v230 = vld [vmem:[%s1 + $0x20] sm:$0xff]
    %v231 = vld [vmem:[%s1 + $0x28] sm:$0xff]
    %v232 = vld [vmem:[%s1 + $0x30] sm:$0xff]
    %v233 = vld [vmem:[%s1 + $0x38] sm:$0xff]
    %v234 = vld [vmem:[%s1 + $0x40] sm:$0xff]
    %v235 = vld [vmem:[%s1 + $0x48] sm:$0xff]
    %v236 = vld [vmem:[%s1 + $0x50] sm:$0xff]
    %v237 = vld [vmem:[%s1 + $0x58] sm:$0xff]
    %v238 = vld [vmem:[%s1 + $0x60] sm:$0xff]
    %v239 = vld [vmem:[%s1 + $0x68] sm:$0xff]
    %v240 = vld [vmem:[%s1 + $0x70] sm:$0xff]
    %v241 = vld [vmem:[%s1 + $0x78] sm:$0xff]
    %v242 = vld [vmem:[%s1 + $0x80] sm:$0xff]
    %v243 = vld [vmem:[%s1 + $0x88] sm:$0xff]
    %v244 = vld [vmem:[%s1 + $0x90] sm:$0xff]
    %v245 = vld [vmem:[%s1 + $0x98] sm:$0xff]
    %v246 = vld [vmem:[%s1 + $0xa0] sm:$0xff]
    %v247 = vld [vmem:[%s1 + $0xa8] sm:$0xff]
    %v248 = vld [vmem:[%s1 + $0xb0] sm:$0xff]
    %v249 = vld [vmem:[%s1 + $0xb8] sm:$0xff]
    %v250 = vld [vmem:[%s1 + $0xc0] sm:$0xff]
    %v251 = vld [vmem:[%s1 + $0xc8] sm:$0xff]
    %v252 = vld [vmem:[%s1 + $0xd0] sm:$0xff]
    %v253 = vld [vmem:[%s1 + $0xd8] sm:$0xff]
    %v254 = vld [vmem:[%s1 + $0xe0] sm:$0xff]
    %v255 = vld [vmem:[%s1 + $0xe8] sm:$0xff]
    %vm256 = vcmask 130048
    %v258 = vsel %vm256, %v226, 0
    %v261 = vsel %vm256, %v227, 0
    %v264 = vsel %vm256, %v228, 0
    %v267 = vsel %vm256, %v229, 0
    %v270 = vsel %vm256, %v230, 0
    %v273 = vsel %vm256, %v231, 0
    %v276 = vsel %vm256, %v232, 0
    %v279 = vsel %vm256, %v233, 0
    %v282 = vsel %vm256, %v234, 0
    %v285 = vsel %vm256, %v235, 0
    %v288 = vsel %vm256, %v236, 0
    %v291 = vsel %vm256, %v237, 0
    %v294 = vsel %vm256, %v238, 0
    %v297 = vsel %vm256, %v239, 0
    %v300 = vsel %vm256, %v240, 0
    %v303 = vsel %vm256, %v241, 0
    %v306 = vsel %vm256, %v242, 0
    %v309 = vsel %vm256, %v243, 0
    %v312 = vsel %vm256, %v244, 0
    %v315 = vsel %vm256, %v245, 0
    %v318 = vsel %vm256, %v246, 0
    %v321 = vsel %vm256, %v247, 0
    %v324 = vsel %vm256, %v248, 0
    %v327 = vsel %vm256, %v249, 0
    %v330 = vsel %vm256, %v250, 0
    %v333 = vsel %vm256, %v251, 0
    %v336 = vsel %vm256, %v252, 0
    %v339 = vsel %vm256, %v253, 0
    %v342 = vsel %vm256, %v254, 0
    %v345 = vsel %vm256, %v255, 0
    %347 = vmatprep.subr.mxu0 0.0
    %348 = vmatpush1.msra.mxu0 0.0
    %349 = vmatprep.subr.mxu0 0.0
    %350 = vmatpush1.msra.mxu0 0.0
    %351 = vmatprep.subr.mxu0 0.0
    %352 = vmatpush1.msra.mxu0 0.0
    %353 = vmatprep.subr.mxu0 0.0
    %354 = vmatpush1.msra.mxu0 0.0
    %355 = vmatprep.subr.mxu0 0.0
    %356 = vmatpush1.msra.mxu0 0.0
    %357 = vmatprep.subr.mxu0 0.0
    %358 = vmatpush1.msra.mxu0 0.0
    %359 = vmatprep.subr.mxu0 0.0
    %360 = vmatpush1.msra.mxu0 0.0
    %361 = vmatprep.subr.mxu0 0.0
    %362 = vmatpush1.msra.mxu0 0.0
    %363 = vmatprep.subr.mxu0 0.0
    %364 = vmatpush1.msra.mxu0 0.0
    %365 = vmatprep.subr.mxu0 0.0
    %366 = vmatpush1.msra.mxu0 0.0
    %367 = vmatprep.subr.mxu0 0.0
    %368 = vmatpush1.msra.mxu0 0.0
    %369 = vmatprep.subr.mxu0 0.0
    %370 = vmatpush1.msra.mxu0 0.0
    %371 = vmatprep.subr.mxu0 0.0
    %372 = vmatpush1.msra.mxu0 0.0
    %373 = vmatprep.subr.mxu0 0.0
    %374 = vmatpush1.msra.mxu0 0.0
    %375 = vmatprep.subr.mxu0 0.0
    %376 = vmatpush1.msra.mxu0 %v225
    %377 = vmatprep.subr.mxu0 0.0
    %378 = vmatpush1.msra.mxu0 %v224
    %379 = vmatprep.subr.mxu0 0.0
    %380 = vmatpush2.msra.mxu0 0.0
    %381 = vmatprep.subr.mxu0 0.0
    %382 = vmatpush2.msra.mxu0 0.0
    %383 = vmatprep.subr.mxu0 0.0
    %384 = vmatpush2.msra.mxu0 0.0
    %385 = vmatprep.subr.mxu0 0.0
    %386 = vmatpush2.msra.mxu0 0.0
    %387 = vmatprep.subr.mxu0 0.0
    %388 = vmatpush2.msra.mxu0 0.0
    %389 = vmatprep.subr.mxu0 0.0
    %390 = vmatpush2.msra.mxu0 0.0
    %391 = vmatprep.subr.mxu0 0.0
    %392 = vmatpush2.msra.mxu0 0.0
    %393 = vmatprep.subr.mxu0 0.0
    %394 = vmatpush2.msra.mxu0 0.0
    %395 = vmatprep.subr.mxu0 0.0
    %396 = vmatpush2.msra.mxu0 0.0
    %397 = vmatprep.subr.mxu0 0.0
    %398 = vmatpush2.msra.mxu0 0.0
    %399 = vmatprep.subr.mxu0 0.0
    %400 = vmatpush2.msra.mxu0 0.0
    %401 = vmatprep.subr.mxu0 0.0
    %402 = vmatpush2.msra.mxu0 0.0
    %403 = vmatprep.subr.mxu0 0.0
    %404 = vmatpush2.msra.mxu0 0.0
    %405 = vmatprep.subr.mxu0 0.0
    %406 = vmatpush2.msra.mxu0 0.0
    %407 = vmatprep.subr.mxu0 0.0
    %408 = vmatpush2.msra.mxu0 0.0
    %409 = vmatprep.subr.mxu0 0.0
    %410 = vmatpush2.msra.mxu0 0.0
    %411 = vmatprep.mubr.f32.mxu0 0.0
    %412 = vmatmul.mubr.f32.gmra.mxu0 %v258
    %v413 = vpop.f32.mrf.mxu0
    %v414 = vadd.f32 0.0, %v413
    %v415 = vpop.f32.mrf.mxu0
    %416 = vmatprep.mubr.f32.mxu0 0.0
    %417 = vmatmul.mubr.f32.gmra.mxu0 %v261
    %v418 = vpop.f32.mrf.mxu0
    %v419 = vadd.f32 0.0, %v418
    %v420 = vpop.f32.mrf.mxu0
    %421 = vmatprep.mubr.f32.mxu0 0.0
    %422 = vmatmul.mubr.f32.gmra.mxu0 %v264
    %v423 = vpop.f32.mrf.mxu0
    %v424 = vadd.f32 0.0, %v423
    %v425 = vpop.f32.mrf.mxu0
    %426 = vmatprep.mubr.f32.mxu0 0.0
    %427 = vmatmul.mubr.f32.gmra.mxu0 %v267
    %v428 = vpop.f32.mrf.mxu0
    %v429 = vadd.f32 0.0, %v428
    %v430 = vpop.f32.mrf.mxu0
    %431 = vmatprep.mubr.f32.mxu0 0.0
    %432 = vmatmul.mubr.f32.gmra.mxu0 %v270
    %v433 = vpop.f32.mrf.mxu0
    %v434 = vadd.f32 0.0, %v433
    %v435 = vpop.f32.mrf.mxu0
    %436 = vmatprep.mubr.f32.mxu0 0.0
    %437 = vmatmul.mubr.f32.gmra.mxu0 %v273
    %v438 = vpop.f32.mrf.mxu0
    %v439 = vadd.f32 0.0, %v438
    %v440 = vpop.f32.mrf.mxu0
    %441 = vmatprep.mubr.f32.mxu0 0.0
    %442 = vmatmul.mubr.f32.gmra.mxu0 %v276
    %v443 = vpop.f32.mrf.mxu0
    %v444 = vadd.f32 0.0, %v443
    %v445 = vpop.f32.mrf.mxu0
    %446 = vmatprep.mubr.f32.mxu0 0.0
    %447 = vmatmul.mubr.f32.gmra.mxu0 %v279
    %v448 = vpop.f32.mrf.mxu0
    %v449 = vadd.f32 0.0, %v448
    %v450 = vpop.f32.mrf.mxu0
    %451 = vmatprep.mubr.f32.mxu0 0.0
    %452 = vmatmul.mubr.f32.gmra.mxu0 %v282
    %v453 = vpop.f32.mrf.mxu0
    %v454 = vadd.f32 0.0, %v453
    %v455 = vpop.f32.mrf.mxu0
    %456 = vmatprep.mubr.f32.mxu0 0.0
    %457 = vmatmul.mubr.f32.gmra.mxu0 %v285
    %v458 = vpop.f32.mrf.mxu0
    %v459 = vadd.f32 0.0, %v458
    %v460 = vpop.f32.mrf.mxu0
    %461 = vmatprep.mubr.f32.mxu0 0.0
    %462 = vmatmul.mubr.f32.gmra.mxu0 %v288
    %v463 = vpop.f32.mrf.mxu0
    %v464 = vadd.f32 0.0, %v463
    %v465 = vpop.f32.mrf.mxu0
    %466 = vmatprep.mubr.f32.mxu0 0.0
    %467 = vmatmul.mubr.f32.gmra.mxu0 %v291
    %v468 = vpop.f32.mrf.mxu0
    %v469 = vadd.f32 0.0, %v468
    %v470 = vpop.f32.mrf.mxu0
    %471 = vmatprep.mubr.f32.mxu0 0.0
    %472 = vmatmul.mubr.f32.gmra.mxu0 %v294
    %v473 = vpop.f32.mrf.mxu0
    %v474 = vadd.f32 0.0, %v473
    %v475 = vpop.f32.mrf.mxu0
    %476 = vmatprep.mubr.f32.mxu0 0.0
    %477 = vmatmul.mubr.f32.gmra.mxu0 %v297
    %v478 = vpop.f32.mrf.mxu0
    %v479 = vadd.f32 0.0, %v478
    %v480 = vpop.f32.mrf.mxu0
    %481 = vmatprep.mubr.f32.mxu0 0.0
    %482 = vmatmul.mubr.f32.gmra.mxu0 %v300
    %v483 = vpop.f32.mrf.mxu0
    %v484 = vadd.f32 0.0, %v483
    %v485 = vpop.f32.mrf.mxu0
    %486 = vmatprep.mubr.f32.mxu0 0.0
    %487 = vmatmul.mubr.f32.gmra.mxu0 %v303
    %v488 = vpop.f32.mrf.mxu0
    %v489 = vadd.f32 0.0, %v488
    %v490 = vpop.f32.mrf.mxu0
    %491 = vmatprep.mubr.f32.mxu0 0.0
    %492 = vmatmul.mubr.f32.gmra.mxu0 %v306
    %v493 = vpop.f32.mrf.mxu0
    %v494 = vadd.f32 0.0, %v493
    %v495 = vpop.f32.mrf.mxu0
    %496 = vmatprep.mubr.f32.mxu0 0.0
    %497 = vmatmul.mubr.f32.gmra.mxu0 %v309
    %v498 = vpop.f32.mrf.mxu0
    %v499 = vadd.f32 0.0, %v498
    %v500 = vpop.f32.mrf.mxu0
    %501 = vmatprep.mubr.f32.mxu0 0.0
    %502 = vmatmul.mubr.f32.gmra.mxu0 %v312
    %v503 = vpop.f32.mrf.mxu0
    %v504 = vadd.f32 0.0, %v503
    %v505 = vpop.f32.mrf.mxu0
    %506 = vmatprep.mubr.f32.mxu0 0.0
    %507 = vmatmul.mubr.f32.gmra.mxu0 %v315
    %v508 = vpop.f32.mrf.mxu0
    %v509 = vadd.f32 0.0, %v508
    %v510 = vpop.f32.mrf.mxu0
    %511 = vmatprep.mubr.f32.mxu0 0.0
    %512 = vmatmul.mubr.f32.gmra.mxu0 %v318
    %v513 = vpop.f32.mrf.mxu0
    %v514 = vadd.f32 0.0, %v513
    %v515 = vpop.f32.mrf.mxu0
    %516 = vmatprep.mubr.f32.mxu0 0.0
    %517 = vmatmul.mubr.f32.gmra.mxu0 %v321
    %v518 = vpop.f32.mrf.mxu0
    %v519 = vadd.f32 0.0, %v518
    %v520 = vpop.f32.mrf.mxu0
    %521 = vmatprep.mubr.f32.mxu0 0.0
    %522 = vmatmul.mubr.f32.gmra.mxu0 %v324
    %v523 = vpop.f32.mrf.mxu0
    %v524 = vadd.f32 0.0, %v523
    %v525 = vpop.f32.mrf.mxu0
    %526 = vmatprep.mubr.f32.mxu0 0.0
    %527 = vmatmul.mubr.f32.gmra.mxu0 %v327
    %v528 = vpop.f32.mrf.mxu0
    %v529 = vadd.f32 0.0, %v528
    %v530 = vpop.f32.mrf.mxu0
    %531 = vmatprep.mubr.f32.mxu0 0.0
    %532 = vmatmul.mubr.f32.gmra.mxu0 %v330
    %v533 = vpop.f32.mrf.mxu0
    %v534 = vadd.f32 0.0, %v533
    %v535 = vpop.f32.mrf.mxu0
    %536 = vmatprep.mubr.f32.mxu0 0.0
    %537 = vmatmul.mubr.f32.gmra.mxu0 %v333
    %v538 = vpop.f32.mrf.mxu0
    %v539 = vadd.f32 0.0, %v538
    %v540 = vpop.f32.mrf.mxu0
    %541 = vmatprep.mubr.f32.mxu0 0.0
    %542 = vmatmul.mubr.f32.gmra.mxu0 %v336
    %v543 = vpop.f32.mrf.mxu0
    %v544 = vadd.f32 0.0, %v543
    %v545 = vpop.f32.mrf.mxu0
    %546 = vmatprep.mubr.f32.mxu0 0.0
    %547 = vmatmul.mubr.f32.gmra.mxu0 %v339
    %v548 = vpop.f32.mrf.mxu0
    %v549 = vadd.f32 0.0, %v548
    %v550 = vpop.f32.mrf.mxu0
    %551 = vmatprep.mubr.f32.mxu0 0.0
    %552 = vmatmul.mubr.f32.gmra.mxu0 %v342
    %v553 = vpop.f32.mrf.mxu0
    %v554 = vadd.f32 0.0, %v553
    %v555 = vpop.f32.mrf.mxu0
    %556 = vmatprep.mubr.f32.mxu0 0.0
    %557 = vmatmul.mubr.f32.gmra.mxu0 %v345
    %v558 = vpop.f32.mrf.mxu0
    %v559 = vadd.f32 0.0, %v558
    %v560 = vpop.f32.mrf.mxu0
    %561 = vdwg.mxu0
    %v562 = vld [vmem:[%s3 + $0x5] sm:$0xff]
    %v563 = vld [vmem:[%s3 + $0xd] sm:$0xff]
    %v564 = vld [vmem:[#allocation4] sm:$0xff]
    %v565 = vld [vmem:[#allocation4 + $0x8] sm:$0xff]
    %v566 = vld [vmem:[#allocation4 + $0x10] sm:$0xff]
    %v567 = vld [vmem:[#allocation4 + $0x18] sm:$0xff]
    %v569 = vsel %vm47, %v414, 0
    %v572 = vsel %vm47, %v419, 0
    %574 = vmatprep.subr.mxu0 0.0
    %575 = vmatpush1.msra.mxu0 0.0
    %576 = vmatprep.subr.mxu0 0.0
    %577 = vmatpush1.msra.mxu0 0.0
    %578 = vmatprep.subr.mxu0 0.0
    %579 = vmatpush1.msra.mxu0 0.0
    %580 = vmatprep.subr.mxu0 0.0
    %581 = vmatpush1.msra.mxu0 0.0
    %582 = vmatprep.subr.mxu0 0.0
    %583 = vmatpush1.msra.mxu0 0.0
    %584 = vmatprep.subr.mxu0 0.0
    %585 = vmatpush1.msra.mxu0 0.0
    %586 = vmatprep.subr.mxu0 0.0
    %587 = vmatpush1.msra.mxu0 0.0
    %588 = vmatprep.subr.mxu0 0.0
    %589 = vmatpush1.msra.mxu0 0.0
    %590 = vmatprep.subr.mxu0 0.0
    %591 = vmatpush1.msra.mxu0 0.0
    %592 = vmatprep.subr.mxu0 0.0
    %593 = vmatpush1.msra.mxu0 0.0
    %594 = vmatprep.subr.mxu0 0.0
    %595 = vmatpush1.msra.mxu0 0.0
    %596 = vmatprep.subr.mxu0 0.0
    %597 = vmatpush1.msra.mxu0 0.0
    %598 = vmatprep.subr.mxu0 0.0
    %599 = vmatpush1.msra.mxu0 %v567
    %600 = vmatprep.subr.mxu0 0.0
    %601 = vmatpush1.msra.mxu0 %v566
    %602 = vmatprep.subr.mxu0 0.0
    %603 = vmatpush1.msra.mxu0 %v565
    %604 = vmatprep.subr.mxu0 0.0
    %605 = vmatpush1.msra.mxu0 %v564
    %606 = vmatprep.subr.mxu0 0.0
    %607 = vmatpush2.msra.mxu0 0.0
    %608 = vmatprep.subr.mxu0 0.0
    %609 = vmatpush2.msra.mxu0 0.0
    %610 = vmatprep.subr.mxu0 0.0
    %611 = vmatpush2.msra.mxu0 0.0
    %612 = vmatprep.subr.mxu0 0.0
    %613 = vmatpush2.msra.mxu0 0.0
    %614 = vmatprep.subr.mxu0 0.0
    %615 = vmatpush2.msra.mxu0 0.0
    %616 = vmatprep.subr.mxu0 0.0
    %617 = vmatpush2.msra.mxu0 0.0
    %618 = vmatprep.subr.mxu0 0.0
    %619 = vmatpush2.msra.mxu0 0.0
    %620 = vmatprep.subr.mxu0 0.0
    %621 = vmatpush2.msra.mxu0 0.0
    %622 = vmatprep.subr.mxu0 0.0
    %623 = vmatpush2.msra.mxu0 0.0
    %624 = vmatprep.subr.mxu0 0.0
    %625 = vmatpush2.msra.mxu0 0.0
    %626 = vmatprep.subr.mxu0 0.0
    %627 = vmatpush2.msra.mxu0 0.0
    %628 = vmatprep.subr.mxu0 0.0
    %629 = vmatpush2.msra.mxu0 0.0
    %630 = vmatprep.subr.mxu0 0.0
    %631 = vmatpush2.msra.mxu0 0.0
    %632 = vmatprep.subr.mxu0 0.0
    %633 = vmatpush2.msra.mxu0 0.0
    %634 = vmatprep.subr.mxu0 0.0
    %635 = vmatpush2.msra.mxu0 0.0
    %636 = vmatprep.subr.mxu0 0.0
    %637 = vmatpush2.msra.mxu0 0.0
    %638 = vmatprep.mubr.f32.mxu0 0.0
    %639 = vmatmul.mubr.f32.gmra.mxu0 %v569
    %v640 = vpop.f32.mrf.mxu0
    %v641 = vadd.f32 0.0, %v640
    %v642 = vpop.f32.mrf.mxu0
    %643 = vmatprep.mubr.f32.mxu0 0.0
    %644 = vmatmul.mubr.f32.gmra.mxu0 %v572
    %v645 = vpop.f32.mrf.mxu0
    %v646 = vadd.f32 0.0, %v645
    %v647 = vpop.f32.mrf.mxu0
    %648 = vdwg.mxu0
    %v649 = vadd.f32 %v562, %v641
    %v650 = vadd.f32 %v563, %v646
    %s651 = scalar_lea.vmem [#allocation4], 32
    %v652 = vld [vmem:[%s651] sm:$0xff]
    %v653 = vld [vmem:[%s651 + $0x8] sm:$0xff]
    %v654 = vld [vmem:[%s651 + $0x10] sm:$0xff]
    %v655 = vld [vmem:[%s651 + $0x18] sm:$0xff]
    %v657 = vsel %vm47, %v424, 0
    %v660 = vsel %vm47, %v429, 0
    %662 = vmatprep.subr.mxu0 0.0
    %663 = vmatpush1.msra.mxu0 0.0
    %664 = vmatprep.subr.mxu0 0.0
    %665 = vmatpush1.msra.mxu0 0.0
    %666 = vmatprep.subr.mxu0 0.0
    %667 = vmatpush1.msra.mxu0 0.0
    %668 = vmatprep.subr.mxu0 0.0
    %669 = vmatpush1.msra.mxu0 0.0
    %670 = vmatprep.subr.mxu0 0.0
    %671 = vmatpush1.msra.mxu0 0.0
    %672 = vmatprep.subr.mxu0 0.0
    %673 = vmatpush1.msra.mxu0 0.0
    %674 = vmatprep.subr.mxu0 0.0
    %675 = vmatpush1.msra.mxu0 0.0
    %676 = vmatprep.subr.mxu0 0.0
    %677 = vmatpush1.msra.mxu0 0.0
    %678 = vmatprep.subr.mxu0 0.0
    %679 = vmatpush1.msra.mxu0 0.0
    %680 = vmatprep.subr.mxu0 0.0
    %681 = vmatpush1.msra.mxu0 0.0
    %682 = vmatprep.subr.mxu0 0.0
    %683 = vmatpush1.msra.mxu0 0.0
    %684 = vmatprep.subr.mxu0 0.0
    %685 = vmatpush1.msra.mxu0 0.0
    %686 = vmatprep.subr.mxu0 0.0
    %687 = vmatpush1.msra.mxu0 %v655
    %688 = vmatprep.subr.mxu0 0.0
    %689 = vmatpush1.msra.mxu0 %v654
    %690 = vmatprep.subr.mxu0 0.0
    %691 = vmatpush1.msra.mxu0 %v653
    %692 = vmatprep.subr.mxu0 0.0
    %693 = vmatpush1.msra.mxu0 %v652
    %694 = vmatprep.subr.mxu0 0.0
    %695 = vmatpush2.msra.mxu0 0.0
    %696 = vmatprep.subr.mxu0 0.0
    %697 = vmatpush2.msra.mxu0 0.0
    %698 = vmatprep.subr.mxu0 0.0
    %699 = vmatpush2.msra.mxu0 0.0
    %700 = vmatprep.subr.mxu0 0.0
    %701 = vmatpush2.msra.mxu0 0.0
    %702 = vmatprep.subr.mxu0 0.0
    %703 = vmatpush2.msra.mxu0 0.0
    %704 = vmatprep.subr.mxu0 0.0
    %705 = vmatpush2.msra.mxu0 0.0
    %706 = vmatprep.subr.mxu0 0.0
    %707 = vmatpush2.msra.mxu0 0.0
    %708 = vmatprep.subr.mxu0 0.0
    %709 = vmatpush2.msra.mxu0 0.0
    %710 = vmatprep.subr.mxu0 0.0
    %711 = vmatpush2.msra.mxu0 0.0
    %712 = vmatprep.subr.mxu0 0.0
    %713 = vmatpush2.msra.mxu0 0.0
    %714 = vmatprep.subr.mxu0 0.0
    %715 = vmatpush2.msra.mxu0 0.0
    %716 = vmatprep.subr.mxu0 0.0
    %717 = vmatpush2.msra.mxu0 0.0
    %718 = vmatprep.subr.mxu0 0.0
    %719 = vmatpush2.msra.mxu0 0.0
    %720 = vmatprep.subr.mxu0 0.0
    %721 = vmatpush2.msra.mxu0 0.0
    %722 = vmatprep.subr.mxu0 0.0
    %723 = vmatpush2.msra.mxu0 0.0
    %724 = vmatprep.subr.mxu0 0.0
    %725 = vmatpush2.msra.mxu0 0.0
    %726 = vmatprep.mubr.f32.mxu0 0.0
    %727 = vmatmul.mubr.f32.gmra.mxu0 %v657
    %v728 = vpop.f32.mrf.mxu0
    %v729 = vadd.f32 0.0, %v728
    %v730 = vpop.f32.mrf.mxu0
    %731 = vmatprep.mubr.f32.mxu0 0.0
    %732 = vmatmul.mubr.f32.gmra.mxu0 %v660
    %v733 = vpop.f32.mrf.mxu0
    %v734 = vadd.f32 0.0, %v733
    %v735 = vpop.f32.mrf.mxu0
    %736 = vdwg.mxu0
    %v737 = vadd.f32 %v649, %v729
    %v738 = vadd.f32 %v650, %v734
    %s739 = scalar_lea.vmem [#allocation4], 64
    %v740 = vld [vmem:[%s739] sm:$0xff]
    %v741 = vld [vmem:[%s739 + $0x8] sm:$0xff]
    %v742 = vld [vmem:[%s739 + $0x10] sm:$0xff]
    %v743 = vld [vmem:[%s739 + $0x18] sm:$0xff]
    %v745 = vsel %vm47, %v434, 0
    %v748 = vsel %vm47, %v439, 0
    %750 = vmatprep.subr.mxu0 0.0
    %751 = vmatpush1.msra.mxu0 0.0
    %752 = vmatprep.subr.mxu0 0.0
    %753 = vmatpush1.msra.mxu0 0.0
    %754 = vmatprep.subr.mxu0 0.0
    %755 = vmatpush1.msra.mxu0 0.0
    %756 = vmatprep.subr.mxu0 0.0
    %757 = vmatpush1.msra.mxu0 0.0
    %758 = vmatprep.subr.mxu0 0.0
    %759 = vmatpush1.msra.mxu0 0.0
    %760 = vmatprep.subr.mxu0 0.0
    %761 = vmatpush1.msra.mxu0 0.0
    %762 = vmatprep.subr.mxu0 0.0
    %763 = vmatpush1.msra.mxu0 0.0
    %764 = vmatprep.subr.mxu0 0.0
    %765 = vmatpush1.msra.mxu0 0.0
    %766 = vmatprep.subr.mxu0 0.0
    %767 = vmatpush1.msra.mxu0 0.0
    %768 = vmatprep.subr.mxu0 0.0
    %769 = vmatpush1.msra.mxu0 0.0
    %770 = vmatprep.subr.mxu0 0.0
    %771 = vmatpush1.msra.mxu0 0.0
    %772 = vmatprep.subr.mxu0 0.0
    %773 = vmatpush1.msra.mxu0 0.0
    %774 = vmatprep.subr.mxu0 0.0
    %775 = vmatpush1.msra.mxu0 %v743
    %776 = vmatprep.subr.mxu0 0.0
    %777 = vmatpush1.msra.mxu0 %v742
    %778 = vmatprep.subr.mxu0 0.0
    %779 = vmatpush1.msra.mxu0 %v741
    %780 = vmatprep.subr.mxu0 0.0
    %781 = vmatpush1.msra.mxu0 %v740
    %782 = vmatprep.subr.mxu0 0.0
    %783 = vmatpush2.msra.mxu0 0.0
    %784 = vmatprep.subr.mxu0 0.0
    %785 = vmatpush2.msra.mxu0 0.0
    %786 = vmatprep.subr.mxu0 0.0
    %787 = vmatpush2.msra.mxu0 0.0
    %788 = vmatprep.subr.mxu0 0.0
    %789 = vmatpush2.msra.mxu0 0.0
    %790 = vmatprep.subr.mxu0 0.0
    %791 = vmatpush2.msra.mxu0 0.0
    %792 = vmatprep.subr.mxu0 0.0
    %793 = vmatpush2.msra.mxu0 0.0
    %794 = vmatprep.subr.mxu0 0.0
    %795 = vmatpush2.msra.mxu0 0.0
    %796 = vmatprep.subr.mxu0 0.0
    %797 = vmatpush2.msra.mxu0 0.0
    %798 = vmatprep.subr.mxu0 0.0
    %799 = vmatpush2.msra.mxu0 0.0
    %800 = vmatprep.subr.mxu0 0.0
    %801 = vmatpush2.msra.mxu0 0.0
    %802 = vmatprep.subr.mxu0 0.0
    %803 = vmatpush2.msra.mxu0 0.0
    %804 = vmatprep.subr.mxu0 0.0
    %805 = vmatpush2.msra.mxu0 0.0
    %806 = vmatprep.subr.mxu0 0.0
    %807 = vmatpush2.msra.mxu0 0.0
    %808 = vmatprep.subr.mxu0 0.0
    %809 = vmatpush2.msra.mxu0 0.0
    %810 = vmatprep.subr.mxu0 0.0
    %811 = vmatpush2.msra.mxu0 0.0
    %812 = vmatprep.subr.mxu0 0.0
    %813 = vmatpush2.msra.mxu0 0.0
    %814 = vmatprep.mubr.f32.mxu0 0.0
    %815 = vmatmul.mubr.f32.gmra.mxu0 %v745
    %v816 = vpop.f32.mrf.mxu0
    %v817 = vadd.f32 0.0, %v816
    %v818 = vpop.f32.mrf.mxu0
    %819 = vmatprep.mubr.f32.mxu0 0.0
    %820 = vmatmul.mubr.f32.gmra.mxu0 %v748
    %v821 = vpop.f32.mrf.mxu0
    %v822 = vadd.f32 0.0, %v821
    %v823 = vpop.f32.mrf.mxu0
    %824 = vdwg.mxu0
    %v825 = vadd.f32 %v737, %v817
    %v826 = vadd.f32 %v738, %v822
    %s827 = scalar_lea.vmem [#allocation4], 96
    %v828 = vld [vmem:[%s827] sm:$0xff]
    %v829 = vld [vmem:[%s827 + $0x8] sm:$0xff]
    %v830 = vld [vmem:[%s827 + $0x10] sm:$0xff]
    %v831 = vld [vmem:[%s827 + $0x18] sm:$0xff]
    %v833 = vsel %vm47, %v444, 0
    %v836 = vsel %vm47, %v449, 0
    %838 = vmatprep.subr.mxu0 0.0
    %839 = vmatpush1.msra.mxu0 0.0
    %840 = vmatprep.subr.mxu0 0.0
    %841 = vmatpush1.msra.mxu0 0.0
    %842 = vmatprep.subr.mxu0 0.0
    %843 = vmatpush1.msra.mxu0 0.0
    %844 = vmatprep.subr.mxu0 0.0
    %845 = vmatpush1.msra.mxu0 0.0
    %846 = vmatprep.subr.mxu0 0.0
    %847 = vmatpush1.msra.mxu0 0.0
    %848 = vmatprep.subr.mxu0 0.0
    %849 = vmatpush1.msra.mxu0 0.0
    %850 = vmatprep.subr.mxu0 0.0
    %851 = vmatpush1.msra.mxu0 0.0
    %852 = vmatprep.subr.mxu0 0.0
    %853 = vmatpush1.msra.mxu0 0.0
    %854 = vmatprep.subr.mxu0 0.0
    %855 = vmatpush1.msra.mxu0 0.0
    %856 = vmatprep.subr.mxu0 0.0
    %857 = vmatpush1.msra.mxu0 0.0
    %858 = vmatprep.subr.mxu0 0.0
    %859 = vmatpush1.msra.mxu0 0.0
    %860 = vmatprep.subr.mxu0 0.0
    %861 = vmatpush1.msra.mxu0 0.0
    %862 = vmatprep.subr.mxu0 0.0
    %863 = vmatpush1.msra.mxu0 %v831
    %864 = vmatprep.subr.mxu0 0.0
    %865 = vmatpush1.msra.mxu0 %v830
    %866 = vmatprep.subr.mxu0 0.0
    %867 = vmatpush1.msra.mxu0 %v829
    %868 = vmatprep.subr.mxu0 0.0
    %869 = vmatpush1.msra.mxu0 %v828
    %870 = vmatprep.subr.mxu0 0.0
    %871 = vmatpush2.msra.mxu0 0.0
    %872 = vmatprep.subr.mxu0 0.0
    %873 = vmatpush2.msra.mxu0 0.0
    %874 = vmatprep.subr.mxu0 0.0
    %875 = vmatpush2.msra.mxu0 0.0
    %876 = vmatprep.subr.mxu0 0.0
    %877 = vmatpush2.msra.mxu0 0.0
    %878 = vmatprep.subr.mxu0 0.0
    %879 = vmatpush2.msra.mxu0 0.0
    %880 = vmatprep.subr.mxu0 0.0
    %881 = vmatpush2.msra.mxu0 0.0
    %882 = vmatprep.subr.mxu0 0.0
    %883 = vmatpush2.msra.mxu0 0.0
    %884 = vmatprep.subr.mxu0 0.0
    %885 = vmatpush2.msra.mxu0 0.0
    %886 = vmatprep.subr.mxu0 0.0
    %887 = vmatpush2.msra.mxu0 0.0
    %888 = vmatprep.subr.mxu0 0.0
    %889 = vmatpush2.msra.mxu0 0.0
    %890 = vmatprep.subr.mxu0 0.0
    %891 = vmatpush2.msra.mxu0 0.0
    %892 = vmatprep.subr.mxu0 0.0
    %893 = vmatpush2.msra.mxu0 0.0
    %894 = vmatprep.subr.mxu0 0.0
    %895 = vmatpush2.msra.mxu0 0.0
    %896 = vmatprep.subr.mxu0 0.0
    %897 = vmatpush2.msra.mxu0 0.0
    %898 = vmatprep.subr.mxu0 0.0
    %899 = vmatpush2.msra.mxu0 0.0
    %900 = vmatprep.subr.mxu0 0.0
    %901 = vmatpush2.msra.mxu0 0.0
    %902 = vmatprep.mubr.f32.mxu0 0.0
    %903 = vmatmul.mubr.f32.gmra.mxu0 %v833
    %v904 = vpop.f32.mrf.mxu0
    %v905 = vadd.f32 0.0, %v904
    %v906 = vpop.f32.mrf.mxu0
    %907 = vmatprep.mubr.f32.mxu0 0.0
    %908 = vmatmul.mubr.f32.gmra.mxu0 %v836
    %v909 = vpop.f32.mrf.mxu0
    %v910 = vadd.f32 0.0, %v909
    %v911 = vpop.f32.mrf.mxu0
    %912 = vdwg.mxu0
    %v913 = vadd.f32 %v825, %v905
    %v914 = vadd.f32 %v826, %v910
    %s915 = scalar_lea.vmem [#allocation4], 128
    %v916 = vld [vmem:[%s915] sm:$0xff]
    %v917 = vld [vmem:[%s915 + $0x8] sm:$0xff]
    %v918 = vld [vmem:[%s915 + $0x10] sm:$0xff]
    %v919 = vld [vmem:[%s915 + $0x18] sm:$0xff]
    %v921 = vsel %vm47, %v454, 0
    %v924 = vsel %vm47, %v459, 0
    %926 = vmatprep.subr.mxu0 0.0
    %927 = vmatpush1.msra.mxu0 0.0
    %928 = vmatprep.subr.mxu0 0.0
    %929 = vmatpush1.msra.mxu0 0.0
    %930 = vmatprep.subr.mxu0 0.0
    %931 = vmatpush1.msra.mxu0 0.0
    %932 = vmatprep.subr.mxu0 0.0
    %933 = vmatpush1.msra.mxu0 0.0
    %934 = vmatprep.subr.mxu0 0.0
    %935 = vmatpush1.msra.mxu0 0.0
    %936 = vmatprep.subr.mxu0 0.0
    %937 = vmatpush1.msra.mxu0 0.0
    %938 = vmatprep.subr.mxu0 0.0
    %939 = vmatpush1.msra.mxu0 0.0
    %940 = vmatprep.subr.mxu0 0.0
    %941 = vmatpush1.msra.mxu0 0.0
    %942 = vmatprep.subr.mxu0 0.0
    %943 = vmatpush1.msra.mxu0 0.0
    %944 = vmatprep.subr.mxu0 0.0
    %945 = vmatpush1.msra.mxu0 0.0
    %946 = vmatprep.subr.mxu0 0.0
    %947 = vmatpush1.msra.mxu0 0.0
    %948 = vmatprep.subr.mxu0 0.0
    %949 = vmatpush1.msra.mxu0 0.0
    %950 = vmatprep.subr.mxu0 0.0
    %951 = vmatpush1.msra.mxu0 %v919
    %952 = vmatprep.subr.mxu0 0.0
    %953 = vmatpush1.msra.mxu0 %v918
    %954 = vmatprep.subr.mxu0 0.0
    %955 = vmatpush1.msra.mxu0 %v917
    %956 = vmatprep.subr.mxu0 0.0
    %957 = vmatpush1.msra.mxu0 %v916
    %958 = vmatprep.subr.mxu0 0.0
    %959 = vmatpush2.msra.mxu0 0.0
    %960 = vmatprep.subr.mxu0 0.0
    %961 = vmatpush2.msra.mxu0 0.0
    %962 = vmatprep.subr.mxu0 0.0
    %963 = vmatpush2.msra.mxu0 0.0
    %964 = vmatprep.subr.mxu0 0.0
    %965 = vmatpush2.msra.mxu0 0.0
    %966 = vmatprep.subr.mxu0 0.0
    %967 = vmatpush2.msra.mxu0 0.0
    %968 = vmatprep.subr.mxu0 0.0
    %969 = vmatpush2.msra.mxu0 0.0
    %970 = vmatprep.subr.mxu0 0.0
    %971 = vmatpush2.msra.mxu0 0.0
    %972 = vmatprep.subr.mxu0 0.0
    %973 = vmatpush2.msra.mxu0 0.0
    %974 = vmatprep.subr.mxu0 0.0
    %975 = vmatpush2.msra.mxu0 0.0
    %976 = vmatprep.subr.mxu0 0.0
    %977 = vmatpush2.msra.mxu0 0.0
    %978 = vmatprep.subr.mxu0 0.0
    %979 = vmatpush2.msra.mxu0 0.0
    %980 = vmatprep.subr.mxu0 0.0
    %981 = vmatpush2.msra.mxu0 0.0
    %982 = vmatprep.subr.mxu0 0.0
    %983 = vmatpush2.msra.mxu0 0.0
    %984 = vmatprep.subr.mxu0 0.0
    %985 = vmatpush2.msra.mxu0 0.0
    %986 = vmatprep.subr.mxu0 0.0
    %987 = vmatpush2.msra.mxu0 0.0
    %988 = vmatprep.subr.mxu0 0.0
    %989 = vmatpush2.msra.mxu0 0.0
    %990 = vmatprep.mubr.f32.mxu0 0.0
    %991 = vmatmul.mubr.f32.gmra.mxu0 %v921
    %v992 = vpop.f32.mrf.mxu0
    %v993 = vadd.f32 0.0, %v992
    %v994 = vpop.f32.mrf.mxu0
    %995 = vmatprep.mubr.f32.mxu0 0.0
    %996 = vmatmul.mubr.f32.gmra.mxu0 %v924
    %v997 = vpop.f32.mrf.mxu0
    %v998 = vadd.f32 0.0, %v997
    %v999 = vpop.f32.mrf.mxu0
    %1000 = vdwg.mxu0
    %v1001 = vadd.f32 %v913, %v993
    %v1002 = vadd.f32 %v914, %v998
    %s1003 = scalar_lea.vmem [#allocation4], 160
    %v1004 = vld [vmem:[%s1003] sm:$0xff]
    %v1005 = vld [vmem:[%s1003 + $0x8] sm:$0xff]
    %v1006 = vld [vmem:[%s1003 + $0x10] sm:$0xff]
    %v1007 = vld [vmem:[%s1003 + $0x18] sm:$0xff]
    %v1009 = vsel %vm47, %v464, 0
    %v1012 = vsel %vm47, %v469, 0
    %1014 = vmatprep.subr.mxu0 0.0
    %1015 = vmatpush1.msra.mxu0 0.0
    %1016 = vmatprep.subr.mxu0 0.0
    %1017 = vmatpush1.msra.mxu0 0.0
    %1018 = vmatprep.subr.mxu0 0.0
    %1019 = vmatpush1.msra.mxu0 0.0
    %1020 = vmatprep.subr.mxu0 0.0
    %1021 = vmatpush1.msra.mxu0 0.0
    %1022 = vmatprep.subr.mxu0 0.0
    %1023 = vmatpush1.msra.mxu0 0.0
    %1024 = vmatprep.subr.mxu0 0.0
    %1025 = vmatpush1.msra.mxu0 0.0
    %1026 = vmatprep.subr.mxu0 0.0
    %1027 = vmatpush1.msra.mxu0 0.0
    %1028 = vmatprep.subr.mxu0 0.0
    %1029 = vmatpush1.msra.mxu0 0.0
    %1030 = vmatprep.subr.mxu0 0.0
    %1031 = vmatpush1.msra.mxu0 0.0
    %1032 = vmatprep.subr.mxu0 0.0
    %1033 = vmatpush1.msra.mxu0 0.0
    %1034 = vmatprep.subr.mxu0 0.0
    %1035 = vmatpush1.msra.mxu0 0.0
    %1036 = vmatprep.subr.mxu0 0.0
    %1037 = vmatpush1.msra.mxu0 0.0
    %1038 = vmatprep.subr.mxu0 0.0
    %1039 = vmatpush1.msra.mxu0 %v1007
    %1040 = vmatprep.subr.mxu0 0.0
    %1041 = vmatpush1.msra.mxu0 %v1006
    %1042 = vmatprep.subr.mxu0 0.0
    %1043 = vmatpush1.msra.mxu0 %v1005
    %1044 = vmatprep.subr.mxu0 0.0
    %1045 = vmatpush1.msra.mxu0 %v1004
    %1046 = vmatprep.subr.mxu0 0.0
    %1047 = vmatpush2.msra.mxu0 0.0
    %1048 = vmatprep.subr.mxu0 0.0
    %1049 = vmatpush2.msra.mxu0 0.0
    %1050 = vmatprep.subr.mxu0 0.0
    %1051 = vmatpush2.msra.mxu0 0.0
    %1052 = vmatprep.subr.mxu0 0.0
    %1053 = vmatpush2.msra.mxu0 0.0
    %1054 = vmatprep.subr.mxu0 0.0
    %1055 = vmatpush2.msra.mxu0 0.0
    %1056 = vmatprep.subr.mxu0 0.0
    %1057 = vmatpush2.msra.mxu0 0.0
    %1058 = vmatprep.subr.mxu0 0.0
    %1059 = vmatpush2.msra.mxu0 0.0
    %1060 = vmatprep.subr.mxu0 0.0
    %1061 = vmatpush2.msra.mxu0 0.0
    %1062 = vmatprep.subr.mxu0 0.0
    %1063 = vmatpush2.msra.mxu0 0.0
    %1064 = vmatprep.subr.mxu0 0.0
    %1065 = vmatpush2.msra.mxu0 0.0
    %1066 = vmatprep.subr.mxu0 0.0
    %1067 = vmatpush2.msra.mxu0 0.0
    %1068 = vmatprep.subr.mxu0 0.0
    %1069 = vmatpush2.msra.mxu0 0.0
    %1070 = vmatprep.subr.mxu0 0.0
    %1071 = vmatpush2.msra.mxu0 0.0
    %1072 = vmatprep.subr.mxu0 0.0
    %1073 = vmatpush2.msra.mxu0 0.0
    %1074 = vmatprep.subr.mxu0 0.0
    %1075 = vmatpush2.msra.mxu0 0.0
    %1076 = vmatprep.subr.mxu0 0.0
    %1077 = vmatpush2.msra.mxu0 0.0
    %1078 = vmatprep.mubr.f32.mxu0 0.0
    %1079 = vmatmul.mubr.f32.gmra.mxu0 %v1009
    %v1080 = vpop.f32.mrf.mxu0
    %v1081 = vadd.f32 0.0, %v1080
    %v1082 = vpop.f32.mrf.mxu0
    %1083 = vmatprep.mubr.f32.mxu0 0.0
    %1084 = vmatmul.mubr.f32.gmra.mxu0 %v1012
    %v1085 = vpop.f32.mrf.mxu0
    %v1086 = vadd.f32 0.0, %v1085
    %v1087 = vpop.f32.mrf.mxu0
    %1088 = vdwg.mxu0
    %v1089 = vadd.f32 %v1001, %v1081
    %v1090 = vadd.f32 %v1002, %v1086
    %s1091 = scalar_lea.vmem [#allocation4], 192
    %v1092 = vld [vmem:[%s1091] sm:$0xff]
    %v1093 = vld [vmem:[%s1091 + $0x8] sm:$0xff]
    %v1094 = vld [vmem:[%s1091 + $0x10] sm:$0xff]
    %v1095 = vld [vmem:[%s1091 + $0x18] sm:$0xff]
    %v1097 = vsel %vm47, %v474, 0
    %v1100 = vsel %vm47, %v479, 0
    %1102 = vmatprep.subr.mxu0 0.0
    %1103 = vmatpush1.msra.mxu0 0.0
    %1104 = vmatprep.subr.mxu0 0.0
    %1105 = vmatpush1.msra.mxu0 0.0
    %1106 = vmatprep.subr.mxu0 0.0
    %1107 = vmatpush1.msra.mxu0 0.0
    %1108 = vmatprep.subr.mxu0 0.0
    %1109 = vmatpush1.msra.mxu0 0.0
    %1110 = vmatprep.subr.mxu0 0.0
    %1111 = vmatpush1.msra.mxu0 0.0
    %1112 = vmatprep.subr.mxu0 0.0
    %1113 = vmatpush1.msra.mxu0 0.0
    %1114 = vmatprep.subr.mxu0 0.0
    %1115 = vmatpush1.msra.mxu0 0.0
    %1116 = vmatprep.subr.mxu0 0.0
    %1117 = vmatpush1.msra.mxu0 0.0
    %1118 = vmatprep.subr.mxu0 0.0
    %1119 = vmatpush1.msra.mxu0 0.0
    %1120 = vmatprep.subr.mxu0 0.0
    %1121 = vmatpush1.msra.mxu0 0.0
    %1122 = vmatprep.subr.mxu0 0.0
    %1123 = vmatpush1.msra.mxu0 0.0
    %1124 = vmatprep.subr.mxu0 0.0
    %1125 = vmatpush1.msra.mxu0 0.0
    %1126 = vmatprep.subr.mxu0 0.0
    %1127 = vmatpush1.msra.mxu0 %v1095
    %1128 = vmatprep.subr.mxu0 0.0
    %1129 = vmatpush1.msra.mxu0 %v1094
    %1130 = vmatprep.subr.mxu0 0.0
    %1131 = vmatpush1.msra.mxu0 %v1093
    %1132 = vmatprep.subr.mxu0 0.0
    %1133 = vmatpush1.msra.mxu0 %v1092
    %1134 = vmatprep.subr.mxu0 0.0
    %1135 = vmatpush2.msra.mxu0 0.0
    %1136 = vmatprep.subr.mxu0 0.0
    %1137 = vmatpush2.msra.mxu0 0.0
    %1138 = vmatprep.subr.mxu0 0.0
    %1139 = vmatpush2.msra.mxu0 0.0
    %1140 = vmatprep.subr.mxu0 0.0
    %1141 = vmatpush2.msra.mxu0 0.0
    %1142 = vmatprep.subr.mxu0 0.0
    %1143 = vmatpush2.msra.mxu0 0.0
    %1144 = vmatprep.subr.mxu0 0.0
    %1145 = vmatpush2.msra.mxu0 0.0
    %1146 = vmatprep.subr.mxu0 0.0
    %1147 = vmatpush2.msra.mxu0 0.0
    %1148 = vmatprep.subr.mxu0 0.0
    %1149 = vmatpush2.msra.mxu0 0.0
    %1150 = vmatprep.subr.mxu0 0.0
    %1151 = vmatpush2.msra.mxu0 0.0
    %1152 = vmatprep.subr.mxu0 0.0
    %1153 = vmatpush2.msra.mxu0 0.0
    %1154 = vmatprep.subr.mxu0 0.0
    %1155 = vmatpush2.msra.mxu0 0.0
    %1156 = vmatprep.subr.mxu0 0.0
    %1157 = vmatpush2.msra.mxu0 0.0
    %1158 = vmatprep.subr.mxu0 0.0
    %1159 = vmatpush2.msra.mxu0 0.0
    %1160 = vmatprep.subr.mxu0 0.0
    %1161 = vmatpush2.msra.mxu0 0.0
    %1162 = vmatprep.subr.mxu0 0.0
    %1163 = vmatpush2.msra.mxu0 0.0
    %1164 = vmatprep.subr.mxu0 0.0
    %1165 = vmatpush2.msra.mxu0 0.0
    %1166 = vmatprep.mubr.f32.mxu0 0.0
    %1167 = vmatmul.mubr.f32.gmra.mxu0 %v1097
    %v1168 = vpop.f32.mrf.mxu0
    %v1169 = vadd.f32 0.0, %v1168
    %v1170 = vpop.f32.mrf.mxu0
    %1171 = vmatprep.mubr.f32.mxu0 0.0
    %1172 = vmatmul.mubr.f32.gmra.mxu0 %v1100
    %v1173 = vpop.f32.mrf.mxu0
    %v1174 = vadd.f32 0.0, %v1173
    %v1175 = vpop.f32.mrf.mxu0
    %1176 = vdwg.mxu0
    %v1177 = vadd.f32 %v1089, %v1169
    %v1178 = vadd.f32 %v1090, %v1174
    %s1179 = scalar_lea.vmem [#allocation4], 224
    %v1180 = vld [vmem:[%s1179] sm:$0xff]
    %v1181 = vld [vmem:[%s1179 + $0x8] sm:$0xff]
    %v1182 = vld [vmem:[%s1179 + $0x10] sm:$0xff]
    %v1183 = vld [vmem:[%s1179 + $0x18] sm:$0xff]
    %v1185 = vsel %vm47, %v484, 0
    %v1188 = vsel %vm47, %v489, 0
    %1190 = vmatprep.subr.mxu0 0.0
    %1191 = vmatpush1.msra.mxu0 0.0
    %1192 = vmatprep.subr.mxu0 0.0
    %1193 = vmatpush1.msra.mxu0 0.0
    %1194 = vmatprep.subr.mxu0 0.0
    %1195 = vmatpush1.msra.mxu0 0.0
    %1196 = vmatprep.subr.mxu0 0.0
    %1197 = vmatpush1.msra.mxu0 0.0
    %1198 = vmatprep.subr.mxu0 0.0
    %1199 = vmatpush1.msra.mxu0 0.0
    %1200 = vmatprep.subr.mxu0 0.0
    %1201 = vmatpush1.msra.mxu0 0.0
    %1202 = vmatprep.subr.mxu0 0.0
    %1203 = vmatpush1.msra.mxu0 0.0
    %1204 = vmatprep.subr.mxu0 0.0
    %1205 = vmatpush1.msra.mxu0 0.0
    %1206 = vmatprep.subr.mxu0 0.0
    %1207 = vmatpush1.msra.mxu0 0.0
    %1208 = vmatprep.subr.mxu0 0.0
    %1209 = vmatpush1.msra.mxu0 0.0
    %1210 = vmatprep.subr.mxu0 0.0
    %1211 = vmatpush1.msra.mxu0 0.0
    %1212 = vmatprep.subr.mxu0 0.0
    %1213 = vmatpush1.msra.mxu0 0.0
    %1214 = vmatprep.subr.mxu0 0.0
    %1215 = vmatpush1.msra.mxu0 %v1183
    %1216 = vmatprep.subr.mxu0 0.0
    %1217 = vmatpush1.msra.mxu0 %v1182
    %1218 = vmatprep.subr.mxu0 0.0
    %1219 = vmatpush1.msra.mxu0 %v1181
    %1220 = vmatprep.subr.mxu0 0.0
    %1221 = vmatpush1.msra.mxu0 %v1180
    %1222 = vmatprep.subr.mxu0 0.0
    %1223 = vmatpush2.msra.mxu0 0.0
    %1224 = vmatprep.subr.mxu0 0.0
    %1225 = vmatpush2.msra.mxu0 0.0
    %1226 = vmatprep.subr.mxu0 0.0
    %1227 = vmatpush2.msra.mxu0 0.0
    %1228 = vmatprep.subr.mxu0 0.0
    %1229 = vmatpush2.msra.mxu0 0.0
    %1230 = vmatprep.subr.mxu0 0.0
    %1231 = vmatpush2.msra.mxu0 0.0
    %1232 = vmatprep.subr.mxu0 0.0
    %1233 = vmatpush2.msra.mxu0 0.0
    %1234 = vmatprep.subr.mxu0 0.0
    %1235 = vmatpush2.msra.mxu0 0.0
    %1236 = vmatprep.subr.mxu0 0.0
    %1237 = vmatpush2.msra.mxu0 0.0
    %1238 = vmatprep.subr.mxu0 0.0
    %1239 = vmatpush2.msra.mxu0 0.0
    %1240 = vmatprep.subr.mxu0 0.0
    %1241 = vmatpush2.msra.mxu0 0.0
    %1242 = vmatprep.subr.mxu0 0.0
    %1243 = vmatpush2.msra.mxu0 0.0
    %1244 = vmatprep.subr.mxu0 0.0
    %1245 = vmatpush2.msra.mxu0 0.0
    %1246 = vmatprep.subr.mxu0 0.0
    %1247 = vmatpush2.msra.mxu0 0.0
    %1248 = vmatprep.subr.mxu0 0.0
    %1249 = vmatpush2.msra.mxu0 0.0
    %1250 = vmatprep.subr.mxu0 0.0
    %1251 = vmatpush2.msra.mxu0 0.0
    %1252 = vmatprep.subr.mxu0 0.0
    %1253 = vmatpush2.msra.mxu0 0.0
    %1254 = vmatprep.mubr.f32.mxu0 0.0
    %1255 = vmatmul.mubr.f32.gmra.mxu0 %v1185
    %v1256 = vpop.f32.mrf.mxu0
    %v1257 = vadd.f32 0.0, %v1256
    %v1258 = vpop.f32.mrf.mxu0
    %1259 = vmatprep.mubr.f32.mxu0 0.0
    %1260 = vmatmul.mubr.f32.gmra.mxu0 %v1188
    %v1261 = vpop.f32.mrf.mxu0
    %v1262 = vadd.f32 0.0, %v1261
    %v1263 = vpop.f32.mrf.mxu0
    %1264 = vdwg.mxu0
    %v1265 = vadd.f32 %v1177, %v1257
    %v1266 = vadd.f32 %v1178, %v1262
    %s1267 = scalar_lea.vmem [#allocation4], 256
    %v1268 = vld [vmem:[%s1267] sm:$0xff]
    %v1269 = vld [vmem:[%s1267 + $0x8] sm:$0xff]
    %v1270 = vld [vmem:[%s1267 + $0x10] sm:$0xff]
    %v1271 = vld [vmem:[%s1267 + $0x18] sm:$0xff]
    %v1273 = vsel %vm47, %v494, 0
    %v1276 = vsel %vm47, %v499, 0
    %1278 = vmatprep.subr.mxu0 0.0
    %1279 = vmatpush1.msra.mxu0 0.0
    %1280 = vmatprep.subr.mxu0 0.0
    %1281 = vmatpush1.msra.mxu0 0.0
    %1282 = vmatprep.subr.mxu0 0.0
    %1283 = vmatpush1.msra.mxu0 0.0
    %1284 = vmatprep.subr.mxu0 0.0
    %1285 = vmatpush1.msra.mxu0 0.0
    %1286 = vmatprep.subr.mxu0 0.0
    %1287 = vmatpush1.msra.mxu0 0.0
    %1288 = vmatprep.subr.mxu0 0.0
    %1289 = vmatpush1.msra.mxu0 0.0
    %1290 = vmatprep.subr.mxu0 0.0
    %1291 = vmatpush1.msra.mxu0 0.0
    %1292 = vmatprep.subr.mxu0 0.0
    %1293 = vmatpush1.msra.mxu0 0.0
    %1294 = vmatprep.subr.mxu0 0.0
    %1295 = vmatpush1.msra.mxu0 0.0
    %1296 = vmatprep.subr.mxu0 0.0
    %1297 = vmatpush1.msra.mxu0 0.0
    %1298 = vmatprep.subr.mxu0 0.0
    %1299 = vmatpush1.msra.mxu0 0.0
    %1300 = vmatprep.subr.mxu0 0.0
    %1301 = vmatpush1.msra.mxu0 0.0
    %1302 = vmatprep.subr.mxu0 0.0
    %1303 = vmatpush1.msra.mxu0 %v1271
    %1304 = vmatprep.subr.mxu0 0.0
    %1305 = vmatpush1.msra.mxu0 %v1270
    %1306 = vmatprep.subr.mxu0 0.0
    %1307 = vmatpush1.msra.mxu0 %v1269
    %1308 = vmatprep.subr.mxu0 0.0
    %1309 = vmatpush1.msra.mxu0 %v1268
    %1310 = vmatprep.subr.mxu0 0.0
    %1311 = vmatpush2.msra.mxu0 0.0
    %1312 = vmatprep.subr.mxu0 0.0
    %1313 = vmatpush2.msra.mxu0 0.0
    %1314 = vmatprep.subr.mxu0 0.0
    %1315 = vmatpush2.msra.mxu0 0.0
    %1316 = vmatprep.subr.mxu0 0.0
    %1317 = vmatpush2.msra.mxu0 0.0
    %1318 = vmatprep.subr.mxu0 0.0
    %1319 = vmatpush2.msra.mxu0 0.0
    %1320 = vmatprep.subr.mxu0 0.0
    %1321 = vmatpush2.msra.mxu0 0.0
    %1322 = vmatprep.subr.mxu0 0.0
    %1323 = vmatpush2.msra.mxu0 0.0
    %1324 = vmatprep.subr.mxu0 0.0
    %1325 = vmatpush2.msra.mxu0 0.0
    %1326 = vmatprep.subr.mxu0 0.0
    %1327 = vmatpush2.msra.mxu0 0.0
    %1328 = vmatprep.subr.mxu0 0.0
    %1329 = vmatpush2.msra.mxu0 0.0
    %1330 = vmatprep.subr.mxu0 0.0
    %1331 = vmatpush2.msra.mxu0 0.0
    %1332 = vmatprep.subr.mxu0 0.0
    %1333 = vmatpush2.msra.mxu0 0.0
    %1334 = vmatprep.subr.mxu0 0.0
    %1335 = vmatpush2.msra.mxu0 0.0
    %1336 = vmatprep.subr.mxu0 0.0
    %1337 = vmatpush2.msra.mxu0 0.0
    %1338 = vmatprep.subr.mxu0 0.0
    %1339 = vmatpush2.msra.mxu0 0.0
    %1340 = vmatprep.subr.mxu0 0.0
    %1341 = vmatpush2.msra.mxu0 0.0
    %1342 = vmatprep.mubr.f32.mxu0 0.0
    %1343 = vmatmul.mubr.f32.gmra.mxu0 %v1273
    %v1344 = vpop.f32.mrf.mxu0
    %v1345 = vadd.f32 0.0, %v1344
    %v1346 = vpop.f32.mrf.mxu0
    %1347 = vmatprep.mubr.f32.mxu0 0.0
    %1348 = vmatmul.mubr.f32.gmra.mxu0 %v1276
    %v1349 = vpop.f32.mrf.mxu0
    %v1350 = vadd.f32 0.0, %v1349
    %v1351 = vpop.f32.mrf.mxu0
    %1352 = vdwg.mxu0
    %v1353 = vadd.f32 %v1265, %v1345
    %v1354 = vadd.f32 %v1266, %v1350
    %s1355 = scalar_lea.vmem [#allocation4], 288
    %v1356 = vld [vmem:[%s1355] sm:$0xff]
    %v1357 = vld [vmem:[%s1355 + $0x8] sm:$0xff]
    %v1358 = vld [vmem:[%s1355 + $0x10] sm:$0xff]
    %v1359 = vld [vmem:[%s1355 + $0x18] sm:$0xff]
    %v1361 = vsel %vm47, %v504, 0
    %v1364 = vsel %vm47, %v509, 0
    %1366 = vmatprep.subr.mxu0 0.0
    %1367 = vmatpush1.msra.mxu0 0.0
    %1368 = vmatprep.subr.mxu0 0.0
    %1369 = vmatpush1.msra.mxu0 0.0
    %1370 = vmatprep.subr.mxu0 0.0
    %1371 = vmatpush1.msra.mxu0 0.0
    %1372 = vmatprep.subr.mxu0 0.0
    %1373 = vmatpush1.msra.mxu0 0.0
    %1374 = vmatprep.subr.mxu0 0.0
    %1375 = vmatpush1.msra.mxu0 0.0
    %1376 = vmatprep.subr.mxu0 0.0
    %1377 = vmatpush1.msra.mxu0 0.0
    %1378 = vmatprep.subr.mxu0 0.0
    %1379 = vmatpush1.msra.mxu0 0.0
    %1380 = vmatprep.subr.mxu0 0.0
    %1381 = vmatpush1.msra.mxu0 0.0
    %1382 = vmatprep.subr.mxu0 0.0
    %1383 = vmatpush1.msra.mxu0 0.0
    %1384 = vmatprep.subr.mxu0 0.0
    %1385 = vmatpush1.msra.mxu0 0.0
    %1386 = vmatprep.subr.mxu0 0.0
    %1387 = vmatpush1.msra.mxu0 0.0
    %1388 = vmatprep.subr.mxu0 0.0
    %1389 = vmatpush1.msra.mxu0 0.0
    %1390 = vmatprep.subr.mxu0 0.0
    %1391 = vmatpush1.msra.mxu0 %v1359
    %1392 = vmatprep.subr.mxu0 0.0
    %1393 = vmatpush1.msra.mxu0 %v1358
    %1394 = vmatprep.subr.mxu0 0.0
    %1395 = vmatpush1.msra.mxu0 %v1357
    %1396 = vmatprep.subr.mxu0 0.0
    %1397 = vmatpush1.msra.mxu0 %v1356
    %1398 = vmatprep.subr.mxu0 0.0
    %1399 = vmatpush2.msra.mxu0 0.0
    %1400 = vmatprep.subr.mxu0 0.0
    %1401 = vmatpush2.msra.mxu0 0.0
    %1402 = vmatprep.subr.mxu0 0.0
    %1403 = vmatpush2.msra.mxu0 0.0
    %1404 = vmatprep.subr.mxu0 0.0
    %1405 = vmatpush2.msra.mxu0 0.0
    %1406 = vmatprep.subr.mxu0 0.0
    %1407 = vmatpush2.msra.mxu0 0.0
    %1408 = vmatprep.subr.mxu0 0.0
    %1409 = vmatpush2.msra.mxu0 0.0
    %1410 = vmatprep.subr.mxu0 0.0
    %1411 = vmatpush2.msra.mxu0 0.0
    %1412 = vmatprep.subr.mxu0 0.0
    %1413 = vmatpush2.msra.mxu0 0.0
    %1414 = vmatprep.subr.mxu0 0.0
    %1415 = vmatpush2.msra.mxu0 0.0
    %1416 = vmatprep.subr.mxu0 0.0
    %1417 = vmatpush2.msra.mxu0 0.0
    %1418 = vmatprep.subr.mxu0 0.0
    %1419 = vmatpush2.msra.mxu0 0.0
    %1420 = vmatprep.subr.mxu0 0.0
    %1421 = vmatpush2.msra.mxu0 0.0
    %1422 = vmatprep.subr.mxu0 0.0
    %1423 = vmatpush2.msra.mxu0 0.0
    %1424 = vmatprep.subr.mxu0 0.0
    %1425 = vmatpush2.msra.mxu0 0.0
    %1426 = vmatprep.subr.mxu0 0.0
    %1427 = vmatpush2.msra.mxu0 0.0
    %1428 = vmatprep.subr.mxu0 0.0
    %1429 = vmatpush2.msra.mxu0 0.0
    %1430 = vmatprep.mubr.f32.mxu0 0.0
    %1431 = vmatmul.mubr.f32.gmra.mxu0 %v1361
    %v1432 = vpop.f32.mrf.mxu0
    %v1433 = vadd.f32 0.0, %v1432
    %v1434 = vpop.f32.mrf.mxu0
    %1435 = vmatprep.mubr.f32.mxu0 0.0
    %1436 = vmatmul.mubr.f32.gmra.mxu0 %v1364
    %v1437 = vpop.f32.mrf.mxu0
    %v1438 = vadd.f32 0.0, %v1437
    %v1439 = vpop.f32.mrf.mxu0
    %1440 = vdwg.mxu0
    %v1441 = vadd.f32 %v1353, %v1433
    %v1442 = vadd.f32 %v1354, %v1438
    %s1443 = scalar_lea.vmem [#allocation4], 320
    %v1444 = vld [vmem:[%s1443] sm:$0xff]
    %v1445 = vld [vmem:[%s1443 + $0x8] sm:$0xff]
    %v1446 = vld [vmem:[%s1443 + $0x10] sm:$0xff]
    %v1447 = vld [vmem:[%s1443 + $0x18] sm:$0xff]
    %v1449 = vsel %vm47, %v514, 0
    %v1452 = vsel %vm47, %v519, 0
    %1454 = vmatprep.subr.mxu0 0.0
    %1455 = vmatpush1.msra.mxu0 0.0
    %1456 = vmatprep.subr.mxu0 0.0
    %1457 = vmatpush1.msra.mxu0 0.0
    %1458 = vmatprep.subr.mxu0 0.0
    %1459 = vmatpush1.msra.mxu0 0.0
    %1460 = vmatprep.subr.mxu0 0.0
    %1461 = vmatpush1.msra.mxu0 0.0
    %1462 = vmatprep.subr.mxu0 0.0
    %1463 = vmatpush1.msra.mxu0 0.0
    %1464 = vmatprep.subr.mxu0 0.0
    %1465 = vmatpush1.msra.mxu0 0.0
    %1466 = vmatprep.subr.mxu0 0.0
    %1467 = vmatpush1.msra.mxu0 0.0
    %1468 = vmatprep.subr.mxu0 0.0
    %1469 = vmatpush1.msra.mxu0 0.0
    %1470 = vmatprep.subr.mxu0 0.0
    %1471 = vmatpush1.msra.mxu0 0.0
    %1472 = vmatprep.subr.mxu0 0.0
    %1473 = vmatpush1.msra.mxu0 0.0
    %1474 = vmatprep.subr.mxu0 0.0
    %1475 = vmatpush1.msra.mxu0 0.0
    %1476 = vmatprep.subr.mxu0 0.0
    %1477 = vmatpush1.msra.mxu0 0.0
    %1478 = vmatprep.subr.mxu0 0.0
    %1479 = vmatpush1.msra.mxu0 %v1447
    %1480 = vmatprep.subr.mxu0 0.0
    %1481 = vmatpush1.msra.mxu0 %v1446
    %1482 = vmatprep.subr.mxu0 0.0
    %1483 = vmatpush1.msra.mxu0 %v1445
    %1484 = vmatprep.subr.mxu0 0.0
    %1485 = vmatpush1.msra.mxu0 %v1444
    %1486 = vmatprep.subr.mxu0 0.0
    %1487 = vmatpush2.msra.mxu0 0.0
    %1488 = vmatprep.subr.mxu0 0.0
    %1489 = vmatpush2.msra.mxu0 0.0
    %1490 = vmatprep.subr.mxu0 0.0
    %1491 = vmatpush2.msra.mxu0 0.0
    %1492 = vmatprep.subr.mxu0 0.0
    %1493 = vmatpush2.msra.mxu0 0.0
    %1494 = vmatprep.subr.mxu0 0.0
    %1495 = vmatpush2.msra.mxu0 0.0
    %1496 = vmatprep.subr.mxu0 0.0
    %1497 = vmatpush2.msra.mxu0 0.0
    %1498 = vmatprep.subr.mxu0 0.0
    %1499 = vmatpush2.msra.mxu0 0.0
    %1500 = vmatprep.subr.mxu0 0.0
    %1501 = vmatpush2.msra.mxu0 0.0
    %1502 = vmatprep.subr.mxu0 0.0
    %1503 = vmatpush2.msra.mxu0 0.0
    %1504 = vmatprep.subr.mxu0 0.0
    %1505 = vmatpush2.msra.mxu0 0.0
    %1506 = vmatprep.subr.mxu0 0.0
    %1507 = vmatpush2.msra.mxu0 0.0
    %1508 = vmatprep.subr.mxu0 0.0
    %1509 = vmatpush2.msra.mxu0 0.0
    %1510 = vmatprep.subr.mxu0 0.0
    %1511 = vmatpush2.msra.mxu0 0.0
    %1512 = vmatprep.subr.mxu0 0.0
    %1513 = vmatpush2.msra.mxu0 0.0
    %1514 = vmatprep.subr.mxu0 0.0
    %1515 = vmatpush2.msra.mxu0 0.0
    %1516 = vmatprep.subr.mxu0 0.0
    %1517 = vmatpush2.msra.mxu0 0.0
    %1518 = vmatprep.mubr.f32.mxu0 0.0
    %1519 = vmatmul.mubr.f32.gmra.mxu0 %v1449
    %v1520 = vpop.f32.mrf.mxu0
    %v1521 = vadd.f32 0.0, %v1520
    %v1522 = vpop.f32.mrf.mxu0
    %1523 = vmatprep.mubr.f32.mxu0 0.0
    %1524 = vmatmul.mubr.f32.gmra.mxu0 %v1452
    %v1525 = vpop.f32.mrf.mxu0
    %v1526 = vadd.f32 0.0, %v1525
    %v1527 = vpop.f32.mrf.mxu0
    %1528 = vdwg.mxu0
    %v1529 = vadd.f32 %v1441, %v1521
    %v1530 = vadd.f32 %v1442, %v1526
    %s1531 = scalar_lea.vmem [#allocation4], 352
    %v1532 = vld [vmem:[%s1531] sm:$0xff]
    %v1533 = vld [vmem:[%s1531 + $0x8] sm:$0xff]
    %v1534 = vld [vmem:[%s1531 + $0x10] sm:$0xff]
    %v1535 = vld [vmem:[%s1531 + $0x18] sm:$0xff]
    %v1537 = vsel %vm47, %v524, 0
    %v1540 = vsel %vm47, %v529, 0
    %1542 = vmatprep.subr.mxu0 0.0
    %1543 = vmatpush1.msra.mxu0 0.0
    %1544 = vmatprep.subr.mxu0 0.0
    %1545 = vmatpush1.msra.mxu0 0.0
    %1546 = vmatprep.subr.mxu0 0.0
    %1547 = vmatpush1.msra.mxu0 0.0
    %1548 = vmatprep.subr.mxu0 0.0
    %1549 = vmatpush1.msra.mxu0 0.0
    %1550 = vmatprep.subr.mxu0 0.0
    %1551 = vmatpush1.msra.mxu0 0.0
    %1552 = vmatprep.subr.mxu0 0.0
    %1553 = vmatpush1.msra.mxu0 0.0
    %1554 = vmatprep.subr.mxu0 0.0
    %1555 = vmatpush1.msra.mxu0 0.0
    %1556 = vmatprep.subr.mxu0 0.0
    %1557 = vmatpush1.msra.mxu0 0.0
    %1558 = vmatprep.subr.mxu0 0.0
    %1559 = vmatpush1.msra.mxu0 0.0
    %1560 = vmatprep.subr.mxu0 0.0
    %1561 = vmatpush1.msra.mxu0 0.0
    %1562 = vmatprep.subr.mxu0 0.0
    %1563 = vmatpush1.msra.mxu0 0.0
    %1564 = vmatprep.subr.mxu0 0.0
    %1565 = vmatpush1.msra.mxu0 0.0
    %1566 = vmatprep.subr.mxu0 0.0
    %1567 = vmatpush1.msra.mxu0 %v1535
    %1568 = vmatprep.subr.mxu0 0.0
    %1569 = vmatpush1.msra.mxu0 %v1534
    %1570 = vmatprep.subr.mxu0 0.0
    %1571 = vmatpush1.msra.mxu0 %v1533
    %1572 = vmatprep.subr.mxu0 0.0
    %1573 = vmatpush1.msra.mxu0 %v1532
    %1574 = vmatprep.subr.mxu0 0.0
    %1575 = vmatpush2.msra.mxu0 0.0
    %1576 = vmatprep.subr.mxu0 0.0
    %1577 = vmatpush2.msra.mxu0 0.0
    %1578 = vmatprep.subr.mxu0 0.0
    %1579 = vmatpush2.msra.mxu0 0.0
    %1580 = vmatprep.subr.mxu0 0.0
    %1581 = vmatpush2.msra.mxu0 0.0
    %1582 = vmatprep.subr.mxu0 0.0
    %1583 = vmatpush2.msra.mxu0 0.0
    %1584 = vmatprep.subr.mxu0 0.0
    %1585 = vmatpush2.msra.mxu0 0.0
    %1586 = vmatprep.subr.mxu0 0.0
    %1587 = vmatpush2.msra.mxu0 0.0
    %1588 = vmatprep.subr.mxu0 0.0
    %1589 = vmatpush2.msra.mxu0 0.0
    %1590 = vmatprep.subr.mxu0 0.0
    %1591 = vmatpush2.msra.mxu0 0.0
    %1592 = vmatprep.subr.mxu0 0.0
    %1593 = vmatpush2.msra.mxu0 0.0
    %1594 = vmatprep.subr.mxu0 0.0
    %1595 = vmatpush2.msra.mxu0 0.0
    %1596 = vmatprep.subr.mxu0 0.0
    %1597 = vmatpush2.msra.mxu0 0.0
    %1598 = vmatprep.subr.mxu0 0.0
    %1599 = vmatpush2.msra.mxu0 0.0
    %1600 = vmatprep.subr.mxu0 0.0
    %1601 = vmatpush2.msra.mxu0 0.0
    %1602 = vmatprep.subr.mxu0 0.0
    %1603 = vmatpush2.msra.mxu0 0.0
    %1604 = vmatprep.subr.mxu0 0.0
    %1605 = vmatpush2.msra.mxu0 0.0
    %1606 = vmatprep.mubr.f32.mxu0 0.0
    %1607 = vmatmul.mubr.f32.gmra.mxu0 %v1537
    %v1608 = vpop.f32.mrf.mxu0
    %v1609 = vadd.f32 0.0, %v1608
    %v1610 = vpop.f32.mrf.mxu0
    %1611 = vmatprep.mubr.f32.mxu0 0.0
    %1612 = vmatmul.mubr.f32.gmra.mxu0 %v1540
    %v1613 = vpop.f32.mrf.mxu0
    %v1614 = vadd.f32 0.0, %v1613
    %v1615 = vpop.f32.mrf.mxu0
    %1616 = vdwg.mxu0
    %v1617 = vadd.f32 %v1529, %v1609
    %v1618 = vadd.f32 %v1530, %v1614
    %s1619 = scalar_lea.vmem [#allocation4], 384
    %v1620 = vld [vmem:[%s1619] sm:$0xff]
    %v1621 = vld [vmem:[%s1619 + $0x8] sm:$0xff]
    %v1622 = vld [vmem:[%s1619 + $0x10] sm:$0xff]
    %v1623 = vld [vmem:[%s1619 + $0x18] sm:$0xff]
    %v1625 = vsel %vm47, %v534, 0
    %v1628 = vsel %vm47, %v539, 0
    %1630 = vmatprep.subr.mxu0 0.0
    %1631 = vmatpush1.msra.mxu0 0.0
    %1632 = vmatprep.subr.mxu0 0.0
    %1633 = vmatpush1.msra.mxu0 0.0
    %1634 = vmatprep.subr.mxu0 0.0
    %1635 = vmatpush1.msra.mxu0 0.0
    %1636 = vmatprep.subr.mxu0 0.0
    %1637 = vmatpush1.msra.mxu0 0.0
    %1638 = vmatprep.subr.mxu0 0.0
    %1639 = vmatpush1.msra.mxu0 0.0
    %1640 = vmatprep.subr.mxu0 0.0
    %1641 = vmatpush1.msra.mxu0 0.0
    %1642 = vmatprep.subr.mxu0 0.0
    %1643 = vmatpush1.msra.mxu0 0.0
    %1644 = vmatprep.subr.mxu0 0.0
    %1645 = vmatpush1.msra.mxu0 0.0
    %1646 = vmatprep.subr.mxu0 0.0
    %1647 = vmatpush1.msra.mxu0 0.0
    %1648 = vmatprep.subr.mxu0 0.0
    %1649 = vmatpush1.msra.mxu0 0.0
    %1650 = vmatprep.subr.mxu0 0.0
    %1651 = vmatpush1.msra.mxu0 0.0
    %1652 = vmatprep.subr.mxu0 0.0
    %1653 = vmatpush1.msra.mxu0 0.0
    %1654 = vmatprep.subr.mxu0 0.0
    %1655 = vmatpush1.msra.mxu0 %v1623
    %1656 = vmatprep.subr.mxu0 0.0
    %1657 = vmatpush1.msra.mxu0 %v1622
    %1658 = vmatprep.subr.mxu0 0.0
    %1659 = vmatpush1.msra.mxu0 %v1621
    %1660 = vmatprep.subr.mxu0 0.0
    %1661 = vmatpush1.msra.mxu0 %v1620
    %1662 = vmatprep.subr.mxu0 0.0
    %1663 = vmatpush2.msra.mxu0 0.0
    %1664 = vmatprep.subr.mxu0 0.0
    %1665 = vmatpush2.msra.mxu0 0.0
    %1666 = vmatprep.subr.mxu0 0.0
    %1667 = vmatpush2.msra.mxu0 0.0
    %1668 = vmatprep.subr.mxu0 0.0
    %1669 = vmatpush2.msra.mxu0 0.0
    %1670 = vmatprep.subr.mxu0 0.0
    %1671 = vmatpush2.msra.mxu0 0.0
    %1672 = vmatprep.subr.mxu0 0.0
    %1673 = vmatpush2.msra.mxu0 0.0
    %1674 = vmatprep.subr.mxu0 0.0
    %1675 = vmatpush2.msra.mxu0 0.0
    %1676 = vmatprep.subr.mxu0 0.0
    %1677 = vmatpush2.msra.mxu0 0.0
    %1678 = vmatprep.subr.mxu0 0.0
    %1679 = vmatpush2.msra.mxu0 0.0
    %1680 = vmatprep.subr.mxu0 0.0
    %1681 = vmatpush2.msra.mxu0 0.0
    %1682 = vmatprep.subr.mxu0 0.0
    %1683 = vmatpush2.msra.mxu0 0.0
    %1684 = vmatprep.subr.mxu0 0.0
    %1685 = vmatpush2.msra.mxu0 0.0
    %1686 = vmatprep.subr.mxu0 0.0
    %1687 = vmatpush2.msra.mxu0 0.0
    %1688 = vmatprep.subr.mxu0 0.0
    %1689 = vmatpush2.msra.mxu0 0.0
    %1690 = vmatprep.subr.mxu0 0.0
    %1691 = vmatpush2.msra.mxu0 0.0
    %1692 = vmatprep.subr.mxu0 0.0
    %1693 = vmatpush2.msra.mxu0 0.0
    %1694 = vmatprep.mubr.f32.mxu0 0.0
    %1695 = vmatmul.mubr.f32.gmra.mxu0 %v1625
    %v1696 = vpop.f32.mrf.mxu0
    %v1697 = vadd.f32 0.0, %v1696
    %v1698 = vpop.f32.mrf.mxu0
    %1699 = vmatprep.mubr.f32.mxu0 0.0
    %1700 = vmatmul.mubr.f32.gmra.mxu0 %v1628
    %v1701 = vpop.f32.mrf.mxu0
    %v1702 = vadd.f32 0.0, %v1701
    %v1703 = vpop.f32.mrf.mxu0
    %1704 = vdwg.mxu0
    %v1705 = vadd.f32 %v1617, %v1697
    %v1706 = vadd.f32 %v1618, %v1702
    %s1707 = scalar_lea.vmem [#allocation4], 416
    %v1708 = vld [vmem:[%s1707] sm:$0xff]
    %v1709 = vld [vmem:[%s1707 + $0x8] sm:$0xff]
    %v1710 = vld [vmem:[%s1707 + $0x10] sm:$0xff]
    %v1711 = vld [vmem:[%s1707 + $0x18] sm:$0xff]
    %v1713 = vsel %vm47, %v544, 0
    %v1716 = vsel %vm47, %v549, 0
    %1718 = vmatprep.subr.mxu0 0.0
    %1719 = vmatpush1.msra.mxu0 0.0
    %1720 = vmatprep.subr.mxu0 0.0
    %1721 = vmatpush1.msra.mxu0 0.0
    %1722 = vmatprep.subr.mxu0 0.0
    %1723 = vmatpush1.msra.mxu0 0.0
    %1724 = vmatprep.subr.mxu0 0.0
    %1725 = vmatpush1.msra.mxu0 0.0
    %1726 = vmatprep.subr.mxu0 0.0
    %1727 = vmatpush1.msra.mxu0 0.0
    %1728 = vmatprep.subr.mxu0 0.0
    %1729 = vmatpush1.msra.mxu0 0.0
    %1730 = vmatprep.subr.mxu0 0.0
    %1731 = vmatpush1.msra.mxu0 0.0
    %1732 = vmatprep.subr.mxu0 0.0
    %1733 = vmatpush1.msra.mxu0 0.0
    %1734 = vmatprep.subr.mxu0 0.0
    %1735 = vmatpush1.msra.mxu0 0.0
    %1736 = vmatprep.subr.mxu0 0.0
    %1737 = vmatpush1.msra.mxu0 0.0
    %1738 = vmatprep.subr.mxu0 0.0
    %1739 = vmatpush1.msra.mxu0 0.0
    %1740 = vmatprep.subr.mxu0 0.0
    %1741 = vmatpush1.msra.mxu0 0.0
    %1742 = vmatprep.subr.mxu0 0.0
    %1743 = vmatpush1.msra.mxu0 %v1711
    %1744 = vmatprep.subr.mxu0 0.0
    %1745 = vmatpush1.msra.mxu0 %v1710
    %1746 = vmatprep.subr.mxu0 0.0
    %1747 = vmatpush1.msra.mxu0 %v1709
    %1748 = vmatprep.subr.mxu0 0.0
    %1749 = vmatpush1.msra.mxu0 %v1708
    %1750 = vmatprep.subr.mxu0 0.0
    %1751 = vmatpush2.msra.mxu0 0.0
    %1752 = vmatprep.subr.mxu0 0.0
    %1753 = vmatpush2.msra.mxu0 0.0
    %1754 = vmatprep.subr.mxu0 0.0
    %1755 = vmatpush2.msra.mxu0 0.0
    %1756 = vmatprep.subr.mxu0 0.0
    %1757 = vmatpush2.msra.mxu0 0.0
    %1758 = vmatprep.subr.mxu0 0.0
    %1759 = vmatpush2.msra.mxu0 0.0
    %1760 = vmatprep.subr.mxu0 0.0
    %1761 = vmatpush2.msra.mxu0 0.0
    %1762 = vmatprep.subr.mxu0 0.0
    %1763 = vmatpush2.msra.mxu0 0.0
    %1764 = vmatprep.subr.mxu0 0.0
    %1765 = vmatpush2.msra.mxu0 0.0
    %1766 = vmatprep.subr.mxu0 0.0
    %1767 = vmatpush2.msra.mxu0 0.0
    %1768 = vmatprep.subr.mxu0 0.0
    %1769 = vmatpush2.msra.mxu0 0.0
    %1770 = vmatprep.subr.mxu0 0.0
    %1771 = vmatpush2.msra.mxu0 0.0
    %1772 = vmatprep.subr.mxu0 0.0
    %1773 = vmatpush2.msra.mxu0 0.0
    %1774 = vmatprep.subr.mxu0 0.0
    %1775 = vmatpush2.msra.mxu0 0.0
    %1776 = vmatprep.subr.mxu0 0.0
    %1777 = vmatpush2.msra.mxu0 0.0
    %1778 = vmatprep.subr.mxu0 0.0
    %1779 = vmatpush2.msra.mxu0 0.0
    %1780 = vmatprep.subr.mxu0 0.0
    %1781 = vmatpush2.msra.mxu0 0.0
    %1782 = vmatprep.mubr.f32.mxu0 0.0
    %1783 = vmatmul.mubr.f32.gmra.mxu0 %v1713
    %v1784 = vpop.f32.mrf.mxu0
    %v1785 = vadd.f32 0.0, %v1784
    %v1786 = vpop.f32.mrf.mxu0
    %1787 = vmatprep.mubr.f32.mxu0 0.0
    %1788 = vmatmul.mubr.f32.gmra.mxu0 %v1716
    %v1789 = vpop.f32.mrf.mxu0
    %v1790 = vadd.f32 0.0, %v1789
    %v1791 = vpop.f32.mrf.mxu0
    %1792 = vdwg.mxu0
    %v1793 = vadd.f32 %v1705, %v1785
    %v1794 = vadd.f32 %v1706, %v1790
    %s1795 = scalar_lea.vmem [#allocation4], 448
    %v1796 = vld [vmem:[%s1795] sm:$0xff]
    %v1797 = vld [vmem:[%s1795 + $0x8] sm:$0xff]
    %v1798 = vld [vmem:[%s1795 + $0x10] sm:$0xff]
    %v1799 = vld [vmem:[%s1795 + $0x18] sm:$0xff]
    %v1801 = vsel %vm47, %v554, 0
    %v1804 = vsel %vm47, %v559, 0
    %1806 = vmatprep.subr.mxu0 0.0
    %1807 = vmatpush1.msra.mxu0 0.0
    %1808 = vmatprep.subr.mxu0 0.0
    %1809 = vmatpush1.msra.mxu0 0.0
    %1810 = vmatprep.subr.mxu0 0.0
    %1811 = vmatpush1.msra.mxu0 0.0
    %1812 = vmatprep.subr.mxu0 0.0
    %1813 = vmatpush1.msra.mxu0 0.0
    %1814 = vmatprep.subr.mxu0 0.0
    %1815 = vmatpush1.msra.mxu0 0.0
    %1816 = vmatprep.subr.mxu0 0.0
    %1817 = vmatpush1.msra.mxu0 0.0
    %1818 = vmatprep.subr.mxu0 0.0
    %1819 = vmatpush1.msra.mxu0 0.0
    %1820 = vmatprep.subr.mxu0 0.0
    %1821 = vmatpush1.msra.mxu0 0.0
    %1822 = vmatprep.subr.mxu0 0.0
    %1823 = vmatpush1.msra.mxu0 0.0
    %1824 = vmatprep.subr.mxu0 0.0
    %1825 = vmatpush1.msra.mxu0 0.0
    %1826 = vmatprep.subr.mxu0 0.0
    %1827 = vmatpush1.msra.mxu0 0.0
    %1828 = vmatprep.subr.mxu0 0.0
    %1829 = vmatpush1.msra.mxu0 0.0
    %1830 = vmatprep.subr.mxu0 0.0
    %1831 = vmatpush1.msra.mxu0 %v1799
    %1832 = vmatprep.subr.mxu0 0.0
    %1833 = vmatpush1.msra.mxu0 %v1798
    %1834 = vmatprep.subr.mxu0 0.0
    %1835 = vmatpush1.msra.mxu0 %v1797
    %1836 = vmatprep.subr.mxu0 0.0
    %1837 = vmatpush1.msra.mxu0 %v1796
    %1838 = vmatprep.subr.mxu0 0.0
    %1839 = vmatpush2.msra.mxu0 0.0
    %1840 = vmatprep.subr.mxu0 0.0
    %1841 = vmatpush2.msra.mxu0 0.0
    %1842 = vmatprep.subr.mxu0 0.0
    %1843 = vmatpush2.msra.mxu0 0.0
    %1844 = vmatprep.subr.mxu0 0.0
    %1845 = vmatpush2.msra.mxu0 0.0
    %1846 = vmatprep.subr.mxu0 0.0
    %1847 = vmatpush2.msra.mxu0 0.0
    %1848 = vmatprep.subr.mxu0 0.0
    %1849 = vmatpush2.msra.mxu0 0.0
    %1850 = vmatprep.subr.mxu0 0.0
    %1851 = vmatpush2.msra.mxu0 0.0
    %1852 = vmatprep.subr.mxu0 0.0
    %1853 = vmatpush2.msra.mxu0 0.0
    %1854 = vmatprep.subr.mxu0 0.0
    %1855 = vmatpush2.msra.mxu0 0.0
    %1856 = vmatprep.subr.mxu0 0.0
    %1857 = vmatpush2.msra.mxu0 0.0
    %1858 = vmatprep.subr.mxu0 0.0
    %1859 = vmatpush2.msra.mxu0 0.0
    %1860 = vmatprep.subr.mxu0 0.0
    %1861 = vmatpush2.msra.mxu0 0.0
    %1862 = vmatprep.subr.mxu0 0.0
    %1863 = vmatpush2.msra.mxu0 0.0
    %1864 = vmatprep.subr.mxu0 0.0
    %1865 = vmatpush2.msra.mxu0 0.0
    %1866 = vmatprep.subr.mxu0 0.0
    %1867 = vmatpush2.msra.mxu0 0.0
    %1868 = vmatprep.subr.mxu0 0.0
    %1869 = vmatpush2.msra.mxu0 0.0
    %1870 = vmatprep.mubr.f32.mxu0 0.0
    %1871 = vmatmul.mubr.f32.gmra.mxu0 %v1801
    %v1872 = vpop.f32.mrf.mxu0
    %v1873 = vadd.f32 0.0, %v1872
    %v1874 = vpop.f32.mrf.mxu0
    %1875 = vmatprep.mubr.f32.mxu0 0.0
    %1876 = vmatmul.mubr.f32.gmra.mxu0 %v1804
    %v1877 = vpop.f32.mrf.mxu0
    %v1878 = vadd.f32 0.0, %v1877
    %v1879 = vpop.f32.mrf.mxu0
    %1880 = vdwg.mxu0
    %v1881 = vadd.f32 %v1793, %v1873
    %v1882 = vadd.f32 %v1794, %v1878
    %v1883 = vld [vmem:[%s1 + $0xf0] sm:$0xff]
    %v1884 = vld [vmem:[%s1 + $0xf8] sm:$0xff]
    %v1886 = vsel %vm256, %v1883, 0
    %v1889 = vsel %vm256, %v1884, 0
    %1891 = vmatprep.subr.mxu0 0.0
    %1892 = vmatpush1.msra.mxu0 0.0
    %1893 = vmatprep.subr.mxu0 0.0
    %1894 = vmatpush1.msra.mxu0 0.0
    %1895 = vmatprep.subr.mxu0 0.0
    %1896 = vmatpush1.msra.mxu0 0.0
    %1897 = vmatprep.subr.mxu0 0.0
    %1898 = vmatpush1.msra.mxu0 0.0
    %1899 = vmatprep.subr.mxu0 0.0
    %1900 = vmatpush1.msra.mxu0 0.0
    %1901 = vmatprep.subr.mxu0 0.0
    %1902 = vmatpush1.msra.mxu0 0.0
    %1903 = vmatprep.subr.mxu0 0.0
    %1904 = vmatpush1.msra.mxu0 0.0
    %1905 = vmatprep.subr.mxu0 0.0
    %1906 = vmatpush1.msra.mxu0 0.0
    %1907 = vmatprep.subr.mxu0 0.0
    %1908 = vmatpush1.msra.mxu0 0.0
    %1909 = vmatprep.subr.mxu0 0.0
    %1910 = vmatpush1.msra.mxu0 0.0
    %1911 = vmatprep.subr.mxu0 0.0
    %1912 = vmatpush1.msra.mxu0 0.0
    %1913 = vmatprep.subr.mxu0 0.0
    %1914 = vmatpush1.msra.mxu0 0.0
    %1915 = vmatprep.subr.mxu0 0.0
    %1916 = vmatpush1.msra.mxu0 0.0
    %1917 = vmatprep.subr.mxu0 0.0
    %1918 = vmatpush1.msra.mxu0 0.0
    %1919 = vmatprep.subr.mxu0 0.0
    %1920 = vmatpush1.msra.mxu0 %v126
    %1921 = vmatprep.subr.mxu0 0.0
    %1922 = vmatpush1.msra.mxu0 %v121
    %1923 = vmatprep.subr.mxu0 0.0
    %1924 = vmatpush2.msra.mxu0 0.0
    %1925 = vmatprep.subr.mxu0 0.0
    %1926 = vmatpush2.msra.mxu0 0.0
    %1927 = vmatprep.subr.mxu0 0.0
    %1928 = vmatpush2.msra.mxu0 0.0
    %1929 = vmatprep.subr.mxu0 0.0
    %1930 = vmatpush2.msra.mxu0 0.0
    %1931 = vmatprep.subr.mxu0 0.0
    %1932 = vmatpush2.msra.mxu0 0.0
    %1933 = vmatprep.subr.mxu0 0.0
    %1934 = vmatpush2.msra.mxu0 0.0
    %1935 = vmatprep.subr.mxu0 0.0
    %1936 = vmatpush2.msra.mxu0 0.0
    %1937 = vmatprep.subr.mxu0 0.0
    %1938 = vmatpush2.msra.mxu0 0.0
    %1939 = vmatprep.subr.mxu0 0.0
    %1940 = vmatpush2.msra.mxu0 0.0
    %1941 = vmatprep.subr.mxu0 0.0
    %1942 = vmatpush2.msra.mxu0 0.0
    %1943 = vmatprep.subr.mxu0 0.0
    %1944 = vmatpush2.msra.mxu0 0.0
    %1945 = vmatprep.subr.mxu0 0.0
    %1946 = vmatpush2.msra.mxu0 0.0
    %1947 = vmatprep.subr.mxu0 0.0
    %1948 = vmatpush2.msra.mxu0 0.0
    %1949 = vmatprep.subr.mxu0 0.0
    %1950 = vmatpush2.msra.mxu0 0.0
    %1951 = vmatprep.subr.mxu0 0.0
    %1952 = vmatpush2.msra.mxu0 0.0
    %1953 = vmatprep.subr.mxu0 0.0
    %1954 = vmatpush2.msra.mxu0 0.0
    %1955 = vmatprep.mubr.f32.mxu0 0.0
    %1956 = vmatmul.mubr.f32.gmra.mxu0 %v1886
    %v1957 = vpop.f32.mrf.mxu0
    %v1958 = vadd.f32 0.0, %v1957
    %v1959 = vpop.f32.mrf.mxu0
    %1960 = vmatprep.mubr.f32.mxu0 0.0
    %1961 = vmatmul.mubr.f32.gmra.mxu0 %v1889
    %v1962 = vpop.f32.mrf.mxu0
    %v1963 = vadd.f32 0.0, %v1962
    %v1964 = vpop.f32.mrf.mxu0
    %1965 = vdwg.mxu0
    %v1966 = vadd.f32 %v215, %v1958
    %v1967 = vadd.f32 %v220, %v1963
    %v1968 = vld [vmem:[%s1 + $0x100] sm:$0xff]
    %v1969 = vld [vmem:[%s1 + $0x108] sm:$0xff]
    %v1971 = vsel %vm256, %v1968, 0
    %v1974 = vsel %vm256, %v1969, 0
    %1976 = vmatprep.subr.mxu0 0.0
    %1977 = vmatpush1.msra.mxu0 0.0
    %1978 = vmatprep.subr.mxu0 0.0
    %1979 = vmatpush1.msra.mxu0 0.0
    %1980 = vmatprep.subr.mxu0 0.0
    %1981 = vmatpush1.msra.mxu0 0.0
    %1982 = vmatprep.subr.mxu0 0.0
    %1983 = vmatpush1.msra.mxu0 0.0
    %1984 = vmatprep.subr.mxu0 0.0
    %1985 = vmatpush1.msra.mxu0 0.0
    %1986 = vmatprep.subr.mxu0 0.0
    %1987 = vmatpush1.msra.mxu0 0.0
    %1988 = vmatprep.subr.mxu0 0.0
    %1989 = vmatpush1.msra.mxu0 0.0
    %1990 = vmatprep.subr.mxu0 0.0
    %1991 = vmatpush1.msra.mxu0 0.0
    %1992 = vmatprep.subr.mxu0 0.0
    %1993 = vmatpush1.msra.mxu0 0.0
    %1994 = vmatprep.subr.mxu0 0.0
    %1995 = vmatpush1.msra.mxu0 0.0
    %1996 = vmatprep.subr.mxu0 0.0
    %1997 = vmatpush1.msra.mxu0 0.0
    %1998 = vmatprep.subr.mxu0 0.0
    %1999 = vmatpush1.msra.mxu0 0.0
    %2000 = vmatprep.subr.mxu0 0.0
    %2001 = vmatpush1.msra.mxu0 0.0
    %2002 = vmatprep.subr.mxu0 0.0
    %2003 = vmatpush1.msra.mxu0 0.0
    %2004 = vmatprep.subr.mxu0 0.0
    %2005 = vmatpush1.msra.mxu0 %v1967
    %2006 = vmatprep.subr.mxu0 0.0
    %2007 = vmatpush1.msra.mxu0 %v1966
    %2008 = vmatprep.subr.mxu0 0.0
    %2009 = vmatpush2.msra.mxu0 0.0
    %2010 = vmatprep.subr.mxu0 0.0
    %2011 = vmatpush2.msra.mxu0 0.0
    %2012 = vmatprep.subr.mxu0 0.0
    %2013 = vmatpush2.msra.mxu0 0.0
    %2014 = vmatprep.subr.mxu0 0.0
    %2015 = vmatpush2.msra.mxu0 0.0
    %2016 = vmatprep.subr.mxu0 0.0
    %2017 = vmatpush2.msra.mxu0 0.0
    %2018 = vmatprep.subr.mxu0 0.0
    %2019 = vmatpush2.msra.mxu0 0.0
    %2020 = vmatprep.subr.mxu0 0.0
    %2021 = vmatpush2.msra.mxu0 0.0
    %2022 = vmatprep.subr.mxu0 0.0
    %2023 = vmatpush2.msra.mxu0 0.0
    %2024 = vmatprep.subr.mxu0 0.0
    %2025 = vmatpush2.msra.mxu0 0.0
    %2026 = vmatprep.subr.mxu0 0.0
    %2027 = vmatpush2.msra.mxu0 0.0
    %2028 = vmatprep.subr.mxu0 0.0
    %2029 = vmatpush2.msra.mxu0 0.0
    %2030 = vmatprep.subr.mxu0 0.0
    %2031 = vmatpush2.msra.mxu0 0.0
    %2032 = vmatprep.subr.mxu0 0.0
    %2033 = vmatpush2.msra.mxu0 0.0
    %2034 = vmatprep.subr.mxu0 0.0
    %2035 = vmatpush2.msra.mxu0 0.0
    %2036 = vmatprep.subr.mxu0 0.0
    %2037 = vmatpush2.msra.mxu0 0.0
    %2038 = vmatprep.subr.mxu0 0.0
    %2039 = vmatpush2.msra.mxu0 0.0
    %2040 = vmatprep.mubr.f32.mxu0 0.0
    %2041 = vmatmul.mubr.f32.gmra.mxu0 %v1971
    %v2042 = vpop.f32.mrf.mxu0
    %v2043 = vadd.f32 0.0, %v2042
    %v2044 = vpop.f32.mrf.mxu0
    %2045 = vmatprep.mubr.f32.mxu0 0.0
    %2046 = vmatmul.mubr.f32.gmra.mxu0 %v1974
    %v2047 = vpop.f32.mrf.mxu0
    %v2048 = vadd.f32 0.0, %v2047
    %v2049 = vpop.f32.mrf.mxu0
    %2050 = vdwg.mxu0
    %v2051 = vadd.f32 %v1881, %v2043
    %v2052 = vadd.f32 %v1882, %v2048
    %v2053 = vld [vmem:[%s1 + $0x110] sm:$0xff]
    %v2054 = vld [vmem:[%s1 + $0x118] sm:$0xff]
    %v2055 = vld [vmem:[%s1 + $0x120] sm:$0xff]
    %v2056 = vld [vmem:[%s1 + $0x128] sm:$0xff]
    %v2057 = vld [vmem:[%s1 + $0x130] sm:$0xff]
    %v2058 = vld [vmem:[%s1 + $0x138] sm:$0xff]
    %v2060 = vsel %vm256, %v2053, 0
    %v2063 = vsel %vm256, %v2054, 0
    %v2066 = vsel %vm256, %v2055, 0
    %v2069 = vsel %vm256, %v2056, 0
    %v2072 = vsel %vm256, %v2057, 0
    %v2075 = vsel %vm256, %v2058, 0
    %2077 = vmatprep.subr.mxu0 0.0
    %2078 = vmatpush1.msra.mxu0 0.0
    %2079 = vmatprep.subr.mxu0 0.0
    %2080 = vmatpush1.msra.mxu0 0.0
    %2081 = vmatprep.subr.mxu0 0.0
    %2082 = vmatpush1.msra.mxu0 0.0
    %2083 = vmatprep.subr.mxu0 0.0
    %2084 = vmatpush1.msra.mxu0 0.0
    %2085 = vmatprep.subr.mxu0 0.0
    %2086 = vmatpush1.msra.mxu0 0.0
    %2087 = vmatprep.subr.mxu0 0.0
    %2088 = vmatpush1.msra.mxu0 0.0
    %2089 = vmatprep.subr.mxu0 0.0
    %2090 = vmatpush1.msra.mxu0 0.0
    %2091 = vmatprep.subr.mxu0 0.0
    %2092 = vmatpush1.msra.mxu0 0.0
    %2093 = vmatprep.subr.mxu0 0.0
    %2094 = vmatpush1.msra.mxu0 0.0
    %2095 = vmatprep.subr.mxu0 0.0
    %2096 = vmatpush1.msra.mxu0 0.0
    %2097 = vmatprep.subr.mxu0 0.0
    %2098 = vmatpush1.msra.mxu0 0.0
    %2099 = vmatprep.subr.mxu0 0.0
    %2100 = vmatpush1.msra.mxu0 0.0
    %2101 = vmatprep.subr.mxu0 0.0
    %2102 = vmatpush1.msra.mxu0 0.0
    %2103 = vmatprep.subr.mxu0 0.0
    %2104 = vmatpush1.msra.mxu0 0.0
    %2105 = vmatprep.subr.mxu0 0.0
    %2106 = vmatpush1.msra.mxu0 %v126
    %2107 = vmatprep.subr.mxu0 0.0
    %2108 = vmatpush1.msra.mxu0 %v121
    %2109 = vmatprep.subr.mxu0 0.0
    %2110 = vmatpush2.msra.mxu0 0.0
    %2111 = vmatprep.subr.mxu0 0.0
    %2112 = vmatpush2.msra.mxu0 0.0
    %2113 = vmatprep.subr.mxu0 0.0
    %2114 = vmatpush2.msra.mxu0 0.0
    %2115 = vmatprep.subr.mxu0 0.0
    %2116 = vmatpush2.msra.mxu0 0.0
    %2117 = vmatprep.subr.mxu0 0.0
    %2118 = vmatpush2.msra.mxu0 0.0
    %2119 = vmatprep.subr.mxu0 0.0
    %2120 = vmatpush2.msra.mxu0 0.0
    %2121 = vmatprep.subr.mxu0 0.0
    %2122 = vmatpush2.msra.mxu0 0.0
    %2123 = vmatprep.subr.mxu0 0.0
    %2124 = vmatpush2.msra.mxu0 0.0
    %2125 = vmatprep.subr.mxu0 0.0
    %2126 = vmatpush2.msra.mxu0 0.0
    %2127 = vmatprep.subr.mxu0 0.0
    %2128 = vmatpush2.msra.mxu0 0.0
    %2129 = vmatprep.subr.mxu0 0.0
    %2130 = vmatpush2.msra.mxu0 0.0
    %2131 = vmatprep.subr.mxu0 0.0
    %2132 = vmatpush2.msra.mxu0 0.0
    %2133 = vmatprep.subr.mxu0 0.0
    %2134 = vmatpush2.msra.mxu0 0.0
    %2135 = vmatprep.subr.mxu0 0.0
    %2136 = vmatpush2.msra.mxu0 0.0
    %2137 = vmatprep.subr.mxu0 0.0
    %2138 = vmatpush2.msra.mxu0 0.0
    %2139 = vmatprep.subr.mxu0 0.0
    %2140 = vmatpush2.msra.mxu0 0.0
    %2141 = vmatprep.mubr.f32.mxu0 0.0
    %2142 = vmatmul.mubr.f32.gmra.mxu0 %v2060
    %v2143 = vpop.f32.mrf.mxu0
    %v2144 = vadd.f32 0.0, %v2143
    %v2145 = vpop.f32.mrf.mxu0
    %2146 = vmatprep.mubr.f32.mxu0 0.0
    %2147 = vmatmul.mubr.f32.gmra.mxu0 %v2063
    %v2148 = vpop.f32.mrf.mxu0
    %v2149 = vadd.f32 0.0, %v2148
    %v2150 = vpop.f32.mrf.mxu0
    %2151 = vmatprep.mubr.f32.mxu0 0.0
    %2152 = vmatmul.mubr.f32.gmra.mxu0 %v2066
    %v2153 = vpop.f32.mrf.mxu0
    %v2154 = vadd.f32 0.0, %v2153
    %v2155 = vpop.f32.mrf.mxu0
    %2156 = vmatprep.mubr.f32.mxu0 0.0
    %2157 = vmatmul.mubr.f32.gmra.mxu0 %v2069
    %v2158 = vpop.f32.mrf.mxu0
    %v2159 = vadd.f32 0.0, %v2158
    %v2160 = vpop.f32.mrf.mxu0
    %2161 = vmatprep.mubr.f32.mxu0 0.0
    %2162 = vmatmul.mubr.f32.gmra.mxu0 %v2072
    %v2163 = vpop.f32.mrf.mxu0
    %v2164 = vadd.f32 0.0, %v2163
    %v2165 = vpop.f32.mrf.mxu0
    %2166 = vmatprep.mubr.f32.mxu0 0.0
    %2167 = vmatmul.mubr.f32.gmra.mxu0 %v2075
    %v2168 = vpop.f32.mrf.mxu0
    %v2169 = vadd.f32 0.0, %v2168
    %v2170 = vpop.f32.mrf.mxu0
    %2171 = vdwg.mxu0
    %v2172 = vld [vmem:[%s3 + $0x2] sm:$0x1]
    %s2173 = scalar_lea.vmem [#allocation4], 544
    %v2174 = vld [vmem:[%s2173] sm:$0xff]
    %v2175 = vld [vmem:[%s2173 + $0x8] sm:$0xff]
    %v2176 = vld [vmem:[%s2173 + $0x10] sm:$0xff]
    %v2177 = vld [vmem:[%s2173 + $0x18] sm:$0xff]
    %v2179 = vsel %vm47, %v2144, 0
    %v2182 = vsel %vm47, %v2149, 0
    %2184 = vmatprep.subr.mxu0 0.0
    %2185 = vmatpush1.msra.mxu0 0.0
    %2186 = vmatprep.subr.mxu0 0.0
    %2187 = vmatpush1.msra.mxu0 0.0
    %2188 = vmatprep.subr.mxu0 0.0
    %2189 = vmatpush1.msra.mxu0 0.0
    %2190 = vmatprep.subr.mxu0 0.0
    %2191 = vmatpush1.msra.mxu0 0.0
    %2192 = vmatprep.subr.mxu0 0.0
    %2193 = vmatpush1.msra.mxu0 0.0
    %2194 = vmatprep.subr.mxu0 0.0
    %2195 = vmatpush1.msra.mxu0 0.0
    %2196 = vmatprep.subr.mxu0 0.0
    %2197 = vmatpush1.msra.mxu0 0.0
    %2198 = vmatprep.subr.mxu0 0.0
    %2199 = vmatpush1.msra.mxu0 0.0
    %2200 = vmatprep.subr.mxu0 0.0
    %2201 = vmatpush1.msra.mxu0 0.0
    %2202 = vmatprep.subr.mxu0 0.0
    %2203 = vmatpush1.msra.mxu0 0.0
    %2204 = vmatprep.subr.mxu0 0.0
    %2205 = vmatpush1.msra.mxu0 0.0
    %2206 = vmatprep.subr.mxu0 0.0
    %2207 = vmatpush1.msra.mxu0 0.0
    %2208 = vmatprep.subr.mxu0 0.0
    %2209 = vmatpush1.msra.mxu0 %v2177
    %2210 = vmatprep.subr.mxu0 0.0
    %2211 = vmatpush1.msra.mxu0 %v2176
    %2212 = vmatprep.subr.mxu0 0.0
    %2213 = vmatpush1.msra.mxu0 %v2175
    %2214 = vmatprep.subr.mxu0 0.0
    %2215 = vmatpush1.msra.mxu0 %v2174
    %2216 = vmatprep.subr.mxu0 0.0
    %2217 = vmatpush2.msra.mxu0 0.0
    %2218 = vmatprep.subr.mxu0 0.0
    %2219 = vmatpush2.msra.mxu0 0.0
    %2220 = vmatprep.subr.mxu0 0.0
    %2221 = vmatpush2.msra.mxu0 0.0
    %2222 = vmatprep.subr.mxu0 0.0
    %2223 = vmatpush2.msra.mxu0 0.0
    %2224 = vmatprep.subr.mxu0 0.0
    %2225 = vmatpush2.msra.mxu0 0.0
    %2226 = vmatprep.subr.mxu0 0.0
    %2227 = vmatpush2.msra.mxu0 0.0
    %2228 = vmatprep.subr.mxu0 0.0
    %2229 = vmatpush2.msra.mxu0 0.0
    %2230 = vmatprep.subr.mxu0 0.0
    %2231 = vmatpush2.msra.mxu0 0.0
    %2232 = vmatprep.subr.mxu0 0.0
    %2233 = vmatpush2.msra.mxu0 0.0
    %2234 = vmatprep.subr.mxu0 0.0
    %2235 = vmatpush2.msra.mxu0 0.0
    %2236 = vmatprep.subr.mxu0 0.0
    %2237 = vmatpush2.msra.mxu0 0.0
    %2238 = vmatprep.subr.mxu0 0.0
    %2239 = vmatpush2.msra.mxu0 0.0
    %2240 = vmatprep.subr.mxu0 0.0
    %2241 = vmatpush2.msra.mxu0 0.0
    %2242 = vmatprep.subr.mxu0 0.0
    %2243 = vmatpush2.msra.mxu0 0.0
    %2244 = vmatprep.subr.mxu0 0.0
    %2245 = vmatpush2.msra.mxu0 0.0
    %2246 = vmatprep.subr.mxu0 0.0
    %2247 = vmatpush2.msra.mxu0 0.0
    %2248 = vmatprep.mubr.f32.mxu0 0.0
    %2249 = vmatmul.mubr.f32.gmra.mxu0 %v2179
    %v2250 = vpop.f32.mrf.mxu0
    %v2251 = vadd.f32 0.0, %v2250
    %v2252 = vpop.f32.mrf.mxu0
    %2253 = vmatprep.mubr.f32.mxu0 0.0
    %2254 = vmatmul.mubr.f32.gmra.mxu0 %v2182
    %v2255 = vpop.f32.mrf.mxu0
    %v2256 = vadd.f32 0.0, %v2255
    %v2257 = vpop.f32.mrf.mxu0
    %2258 = vdwg.mxu0
    %v2259 = vlaneseq
    %v2260 = vshrl.u32 %v2259, 7
    %v2261 = vsub.s32 0, %v2260
    %v2262 = vrot.slane %v2172, %v2261
    %v2263 = vadd.f32 %v2262, %v2251
    %v2264 = vadd.f32 %v2262, %v2256
    %s2265 = scalar_lea.vmem [#allocation4], 576
    %v2266 = vld [vmem:[%s2265] sm:$0xff]
    %v2267 = vld [vmem:[%s2265 + $0x8] sm:$0xff]
    %v2268 = vld [vmem:[%s2265 + $0x10] sm:$0xff]
    %v2269 = vld [vmem:[%s2265 + $0x18] sm:$0xff]
    %v2271 = vsel %vm47, %v2154, 0
    %v2274 = vsel %vm47, %v2159, 0
    %2276 = vmatprep.subr.mxu0 0.0
    %2277 = vmatpush1.msra.mxu0 0.0
    %2278 = vmatprep.subr.mxu0 0.0
    %2279 = vmatpush1.msra.mxu0 0.0
    %2280 = vmatprep.subr.mxu0 0.0
    %2281 = vmatpush1.msra.mxu0 0.0
    %2282 = vmatprep.subr.mxu0 0.0
    %2283 = vmatpush1.msra.mxu0 0.0
    %2284 = vmatprep.subr.mxu0 0.0
    %2285 = vmatpush1.msra.mxu0 0.0
    %2286 = vmatprep.subr.mxu0 0.0
    %2287 = vmatpush1.msra.mxu0 0.0
    %2288 = vmatprep.subr.mxu0 0.0
    %2289 = vmatpush1.msra.mxu0 0.0
    %2290 = vmatprep.subr.mxu0 0.0
    %2291 = vmatpush1.msra.mxu0 0.0
    %2292 = vmatprep.subr.mxu0 0.0
    %2293 = vmatpush1.msra.mxu0 0.0
    %2294 = vmatprep.subr.mxu0 0.0
    %2295 = vmatpush1.msra.mxu0 0.0
    %2296 = vmatprep.subr.mxu0 0.0
    %2297 = vmatpush1.msra.mxu0 0.0
    %2298 = vmatprep.subr.mxu0 0.0
    %2299 = vmatpush1.msra.mxu0 0.0
    %2300 = vmatprep.subr.mxu0 0.0
    %2301 = vmatpush1.msra.mxu0 %v2269
    %2302 = vmatprep.subr.mxu0 0.0
    %2303 = vmatpush1.msra.mxu0 %v2268
    %2304 = vmatprep.subr.mxu0 0.0
    %2305 = vmatpush1.msra.mxu0 %v2267
    %2306 = vmatprep.subr.mxu0 0.0
    %2307 = vmatpush1.msra.mxu0 %v2266
    %2308 = vmatprep.subr.mxu0 0.0
    %2309 = vmatpush2.msra.mxu0 0.0
    %2310 = vmatprep.subr.mxu0 0.0
    %2311 = vmatpush2.msra.mxu0 0.0
    %2312 = vmatprep.subr.mxu0 0.0
    %2313 = vmatpush2.msra.mxu0 0.0
    %2314 = vmatprep.subr.mxu0 0.0
    %2315 = vmatpush2.msra.mxu0 0.0
    %2316 = vmatprep.subr.mxu0 0.0
    %2317 = vmatpush2.msra.mxu0 0.0
    %2318 = vmatprep.subr.mxu0 0.0
    %2319 = vmatpush2.msra.mxu0 0.0
    %2320 = vmatprep.subr.mxu0 0.0
    %2321 = vmatpush2.msra.mxu0 0.0
    %2322 = vmatprep.subr.mxu0 0.0
    %2323 = vmatpush2.msra.mxu0 0.0
    %2324 = vmatprep.subr.mxu0 0.0
    %2325 = vmatpush2.msra.mxu0 0.0
    %2326 = vmatprep.subr.mxu0 0.0
    %2327 = vmatpush2.msra.mxu0 0.0
    %2328 = vmatprep.subr.mxu0 0.0
    %2329 = vmatpush2.msra.mxu0 0.0
    %2330 = vmatprep.subr.mxu0 0.0
    %2331 = vmatpush2.msra.mxu0 0.0
    %2332 = vmatprep.subr.mxu0 0.0
    %2333 = vmatpush2.msra.mxu0 0.0
    %2334 = vmatprep.subr.mxu0 0.0
    %2335 = vmatpush2.msra.mxu0 0.0
    %2336 = vmatprep.subr.mxu0 0.0
    %2337 = vmatpush2.msra.mxu0 0.0
    %2338 = vmatprep.subr.mxu0 0.0
    %2339 = vmatpush2.msra.mxu0 0.0
    %2340 = vmatprep.mubr.f32.mxu0 0.0
    %2341 = vmatmul.mubr.f32.gmra.mxu0 %v2271
    %v2342 = vpop.f32.mrf.mxu0
    %v2343 = vadd.f32 0.0, %v2342
    %v2344 = vpop.f32.mrf.mxu0
    %2345 = vmatprep.mubr.f32.mxu0 0.0
    %2346 = vmatmul.mubr.f32.gmra.mxu0 %v2274
    %v2347 = vpop.f32.mrf.mxu0
    %v2348 = vadd.f32 0.0, %v2347
    %v2349 = vpop.f32.mrf.mxu0
    %2350 = vdwg.mxu0
    %v2351 = vadd.f32 %v2263, %v2343
    %v2352 = vadd.f32 %v2264, %v2348
    %s2353 = scalar_lea.vmem [#allocation4], 608
    %v2354 = vld [vmem:[%s2353] sm:$0xff]
    %v2355 = vld [vmem:[%s2353 + $0x8] sm:$0xff]
    %v2356 = vld [vmem:[%s2353 + $0x10] sm:$0xff]
    %v2357 = vld [vmem:[%s2353 + $0x18] sm:$0xff]
    %v2359 = vsel %vm47, %v2164, 0
    %v2362 = vsel %vm47, %v2169, 0
    %2364 = vmatprep.subr.mxu0 0.0
    %2365 = vmatpush1.msra.mxu0 0.0
    %2366 = vmatprep.subr.mxu0 0.0
    %2367 = vmatpush1.msra.mxu0 0.0
    %2368 = vmatprep.subr.mxu0 0.0
    %2369 = vmatpush1.msra.mxu0 0.0
    %2370 = vmatprep.subr.mxu0 0.0
    %2371 = vmatpush1.msra.mxu0 0.0
    %2372 = vmatprep.subr.mxu0 0.0
    %2373 = vmatpush1.msra.mxu0 0.0
    %2374 = vmatprep.subr.mxu0 0.0
    %2375 = vmatpush1.msra.mxu0 0.0
    %2376 = vmatprep.subr.mxu0 0.0
    %2377 = vmatpush1.msra.mxu0 0.0
    %2378 = vmatprep.subr.mxu0 0.0
    %2379 = vmatpush1.msra.mxu0 0.0
    %2380 = vmatprep.subr.mxu0 0.0
    %2381 = vmatpush1.msra.mxu0 0.0
    %2382 = vmatprep.subr.mxu0 0.0
    %2383 = vmatpush1.msra.mxu0 0.0
    %2384 = vmatprep.subr.mxu0 0.0
    %2385 = vmatpush1.msra.mxu0 0.0
    %2386 = vmatprep.subr.mxu0 0.0
    %2387 = vmatpush1.msra.mxu0 0.0
    %2388 = vmatprep.subr.mxu0 0.0
    %2389 = vmatpush1.msra.mxu0 %v2357
    %2390 = vmatprep.subr.mxu0 0.0
    %2391 = vmatpush1.msra.mxu0 %v2356
    %2392 = vmatprep.subr.mxu0 0.0
    %2393 = vmatpush1.msra.mxu0 %v2355
    %2394 = vmatprep.subr.mxu0 0.0
    %2395 = vmatpush1.msra.mxu0 %v2354
    %2396 = vmatprep.subr.mxu0 0.0
    %2397 = vmatpush2.msra.mxu0 0.0
    %2398 = vmatprep.subr.mxu0 0.0
    %2399 = vmatpush2.msra.mxu0 0.0
    %2400 = vmatprep.subr.mxu0 0.0
    %2401 = vmatpush2.msra.mxu0 0.0
    %2402 = vmatprep.subr.mxu0 0.0
    %2403 = vmatpush2.msra.mxu0 0.0
    %2404 = vmatprep.subr.mxu0 0.0
    %2405 = vmatpush2.msra.mxu0 0.0
    %2406 = vmatprep.subr.mxu0 0.0
    %2407 = vmatpush2.msra.mxu0 0.0
    %2408 = vmatprep.subr.mxu0 0.0
    %2409 = vmatpush2.msra.mxu0 0.0
    %2410 = vmatprep.subr.mxu0 0.0
    %2411 = vmatpush2.msra.mxu0 0.0
    %2412 = vmatprep.subr.mxu0 0.0
    %2413 = vmatpush2.msra.mxu0 0.0
    %2414 = vmatprep.subr.mxu0 0.0
    %2415 = vmatpush2.msra.mxu0 0.0
    %2416 = vmatprep.subr.mxu0 0.0
    %2417 = vmatpush2.msra.mxu0 0.0
    %2418 = vmatprep.subr.mxu0 0.0
    %2419 = vmatpush2.msra.mxu0 0.0
    %2420 = vmatprep.subr.mxu0 0.0
    %2421 = vmatpush2.msra.mxu0 0.0
    %2422 = vmatprep.subr.mxu0 0.0
    %2423 = vmatpush2.msra.mxu0 0.0
    %2424 = vmatprep.subr.mxu0 0.0
    %2425 = vmatpush2.msra.mxu0 0.0
    %2426 = vmatprep.subr.mxu0 0.0
    %2427 = vmatpush2.msra.mxu0 0.0
    %2428 = vmatprep.mubr.f32.mxu0 0.0
    %2429 = vmatmul.mubr.f32.gmra.mxu0 %v2359
    %v2430 = vpop.f32.mrf.mxu0
    %v2431 = vadd.f32 0.0, %v2430
    %v2432 = vpop.f32.mrf.mxu0
    %2433 = vmatprep.mubr.f32.mxu0 0.0
    %2434 = vmatmul.mubr.f32.gmra.mxu0 %v2362
    %v2435 = vpop.f32.mrf.mxu0
    %v2436 = vadd.f32 0.0, %v2435
    %v2437 = vpop.f32.mrf.mxu0
    %2438 = vdwg.mxu0
    %v2439 = vadd.f32 %v2351, %v2431
    %v2440 = vadd.f32 %v2352, %v2436
    %v2441 = vld [vmem:[%s1 + $0x140] sm:$0xff]
    %v2442 = vld [vmem:[%s1 + $0x148] sm:$0xff]
    %v2443 = vld [vmem:[%s1 + $0x150] sm:$0xff]
    %v2444 = vld [vmem:[%s1 + $0x158] sm:$0xff]
    %v2445 = vld [vmem:[%s1 + $0x160] sm:$0xff]
    %v2446 = vld [vmem:[%s1 + $0x168] sm:$0xff]
    %v2448 = vsel %vm256, %v2441, 0
    %v2451 = vsel %vm256, %v2442, 0
    %v2454 = vsel %vm256, %v2443, 0
    %v2457 = vsel %vm256, %v2444, 0
    %v2460 = vsel %vm256, %v2445, 0
    %v2463 = vsel %vm256, %v2446, 0
    %2465 = vmatprep.subr.mxu0 0.0
    %2466 = vmatpush1.msra.mxu0 0.0
    %2467 = vmatprep.subr.mxu0 0.0
    %2468 = vmatpush1.msra.mxu0 0.0
    %2469 = vmatprep.subr.mxu0 0.0
    %2470 = vmatpush1.msra.mxu0 0.0
    %2471 = vmatprep.subr.mxu0 0.0
    %2472 = vmatpush1.msra.mxu0 0.0
    %2473 = vmatprep.subr.mxu0 0.0
    %2474 = vmatpush1.msra.mxu0 0.0
    %2475 = vmatprep.subr.mxu0 0.0
    %2476 = vmatpush1.msra.mxu0 0.0
    %2477 = vmatprep.subr.mxu0 0.0
    %2478 = vmatpush1.msra.mxu0 0.0
    %2479 = vmatprep.subr.mxu0 0.0
    %2480 = vmatpush1.msra.mxu0 0.0
    %2481 = vmatprep.subr.mxu0 0.0
    %2482 = vmatpush1.msra.mxu0 0.0
    %2483 = vmatprep.subr.mxu0 0.0
    %2484 = vmatpush1.msra.mxu0 0.0
    %2485 = vmatprep.subr.mxu0 0.0
    %2486 = vmatpush1.msra.mxu0 0.0
    %2487 = vmatprep.subr.mxu0 0.0
    %2488 = vmatpush1.msra.mxu0 0.0
    %2489 = vmatprep.subr.mxu0 0.0
    %2490 = vmatpush1.msra.mxu0 0.0
    %2491 = vmatprep.subr.mxu0 0.0
    %2492 = vmatpush1.msra.mxu0 0.0
    %2493 = vmatprep.subr.mxu0 0.0
    %2494 = vmatpush1.msra.mxu0 %v1967
    %2495 = vmatprep.subr.mxu0 0.0
    %2496 = vmatpush1.msra.mxu0 %v1966
    %2497 = vmatprep.subr.mxu0 0.0
    %2498 = vmatpush2.msra.mxu0 0.0
    %2499 = vmatprep.subr.mxu0 0.0
    %2500 = vmatpush2.msra.mxu0 0.0
    %2501 = vmatprep.subr.mxu0 0.0
    %2502 = vmatpush2.msra.mxu0 0.0
    %2503 = vmatprep.subr.mxu0 0.0
    %2504 = vmatpush2.msra.mxu0 0.0
    %2505 = vmatprep.subr.mxu0 0.0
    %2506 = vmatpush2.msra.mxu0 0.0
    %2507 = vmatprep.subr.mxu0 0.0
    %2508 = vmatpush2.msra.mxu0 0.0
    %2509 = vmatprep.subr.mxu0 0.0
    %2510 = vmatpush2.msra.mxu0 0.0
    %2511 = vmatprep.subr.mxu0 0.0
    %2512 = vmatpush2.msra.mxu0 0.0
    %2513 = vmatprep.subr.mxu0 0.0
    %2514 = vmatpush2.msra.mxu0 0.0
    %2515 = vmatprep.subr.mxu0 0.0
    %2516 = vmatpush2.msra.mxu0 0.0
    %2517 = vmatprep.subr.mxu0 0.0
    %2518 = vmatpush2.msra.mxu0 0.0
    %2519 = vmatprep.subr.mxu0 0.0
    %2520 = vmatpush2.msra.mxu0 0.0
    %2521 = vmatprep.subr.mxu0 0.0
    %2522 = vmatpush2.msra.mxu0 0.0
    %2523 = vmatprep.subr.mxu0 0.0
    %2524 = vmatpush2.msra.mxu0 0.0
    %2525 = vmatprep.subr.mxu0 0.0
    %2526 = vmatpush2.msra.mxu0 0.0
    %2527 = vmatprep.subr.mxu0 0.0
    %2528 = vmatpush2.msra.mxu0 0.0
    %2529 = vmatprep.mubr.f32.mxu0 0.0
    %2530 = vmatmul.mubr.f32.gmra.mxu0 %v2448
    %v2531 = vpop.f32.mrf.mxu0
    %v2532 = vadd.f32 0.0, %v2531
    %v2533 = vpop.f32.mrf.mxu0
    %2534 = vmatprep.mubr.f32.mxu0 0.0
    %2535 = vmatmul.mubr.f32.gmra.mxu0 %v2451
    %v2536 = vpop.f32.mrf.mxu0
    %v2537 = vadd.f32 0.0, %v2536
    %v2538 = vpop.f32.mrf.mxu0
    %2539 = vmatprep.mubr.f32.mxu0 0.0
    %2540 = vmatmul.mubr.f32.gmra.mxu0 %v2454
    %v2541 = vpop.f32.mrf.mxu0
    %v2542 = vadd.f32 0.0, %v2541
    %v2543 = vpop.f32.mrf.mxu0
    %2544 = vmatprep.mubr.f32.mxu0 0.0
    %2545 = vmatmul.mubr.f32.gmra.mxu0 %v2457
    %v2546 = vpop.f32.mrf.mxu0
    %v2547 = vadd.f32 0.0, %v2546
    %v2548 = vpop.f32.mrf.mxu0
    %2549 = vmatprep.mubr.f32.mxu0 0.0
    %2550 = vmatmul.mubr.f32.gmra.mxu0 %v2460
    %v2551 = vpop.f32.mrf.mxu0
    %v2552 = vadd.f32 0.0, %v2551
    %v2553 = vpop.f32.mrf.mxu0
    %2554 = vmatprep.mubr.f32.mxu0 0.0
    %2555 = vmatmul.mubr.f32.gmra.mxu0 %v2463
    %v2556 = vpop.f32.mrf.mxu0
    %v2557 = vadd.f32 0.0, %v2556
    %v2558 = vpop.f32.mrf.mxu0
    %2559 = vdwg.mxu0
    %v2560 = vld [vmem:[%s3 + $0x3] sm:$0x1]
    %s2561 = scalar_lea.vmem [#allocation4], 640
    %v2562 = vld [vmem:[%s2561] sm:$0xff]
    %v2563 = vld [vmem:[%s2561 + $0x8] sm:$0xff]
    %v2564 = vld [vmem:[%s2561 + $0x10] sm:$0xff]
    %v2565 = vld [vmem:[%s2561 + $0x18] sm:$0xff]
    %v2567 = vsel %vm47, %v2532, 0
    %v2570 = vsel %vm47, %v2537, 0
    %2572 = vmatprep.subr.mxu0 0.0
    %2573 = vmatpush1.msra.mxu0 0.0
    %2574 = vmatprep.subr.mxu0 0.0
    %2575 = vmatpush1.msra.mxu0 0.0
    %2576 = vmatprep.subr.mxu0 0.0
    %2577 = vmatpush1.msra.mxu0 0.0
    %2578 = vmatprep.subr.mxu0 0.0
    %2579 = vmatpush1.msra.mxu0 0.0
    %2580 = vmatprep.subr.mxu0 0.0
    %2581 = vmatpush1.msra.mxu0 0.0
    %2582 = vmatprep.subr.mxu0 0.0
    %2583 = vmatpush1.msra.mxu0 0.0
    %2584 = vmatprep.subr.mxu0 0.0
    %2585 = vmatpush1.msra.mxu0 0.0
    %2586 = vmatprep.subr.mxu0 0.0
    %2587 = vmatpush1.msra.mxu0 0.0
    %2588 = vmatprep.subr.mxu0 0.0
    %2589 = vmatpush1.msra.mxu0 0.0
    %2590 = vmatprep.subr.mxu0 0.0
    %2591 = vmatpush1.msra.mxu0 0.0
    %2592 = vmatprep.subr.mxu0 0.0
    %2593 = vmatpush1.msra.mxu0 0.0
    %2594 = vmatprep.subr.mxu0 0.0
    %2595 = vmatpush1.msra.mxu0 0.0
    %2596 = vmatprep.subr.mxu0 0.0
    %2597 = vmatpush1.msra.mxu0 %v2565
    %2598 = vmatprep.subr.mxu0 0.0
    %2599 = vmatpush1.msra.mxu0 %v2564
    %2600 = vmatprep.subr.mxu0 0.0
    %2601 = vmatpush1.msra.mxu0 %v2563
    %2602 = vmatprep.subr.mxu0 0.0
    %2603 = vmatpush1.msra.mxu0 %v2562
    %2604 = vmatprep.subr.mxu0 0.0
    %2605 = vmatpush2.msra.mxu0 0.0
    %2606 = vmatprep.subr.mxu0 0.0
    %2607 = vmatpush2.msra.mxu0 0.0
    %2608 = vmatprep.subr.mxu0 0.0
    %2609 = vmatpush2.msra.mxu0 0.0
    %2610 = vmatprep.subr.mxu0 0.0
    %2611 = vmatpush2.msra.mxu0 0.0
    %2612 = vmatprep.subr.mxu0 0.0
    %2613 = vmatpush2.msra.mxu0 0.0
    %2614 = vmatprep.subr.mxu0 0.0
    %2615 = vmatpush2.msra.mxu0 0.0
    %2616 = vmatprep.subr.mxu0 0.0
    %2617 = vmatpush2.msra.mxu0 0.0
    %2618 = vmatprep.subr.mxu0 0.0
    %2619 = vmatpush2.msra.mxu0 0.0
    %2620 = vmatprep.subr.mxu0 0.0
    %2621 = vmatpush2.msra.mxu0 0.0
    %2622 = vmatprep.subr.mxu0 0.0
    %2623 = vmatpush2.msra.mxu0 0.0
    %2624 = vmatprep.subr.mxu0 0.0
    %2625 = vmatpush2.msra.mxu0 0.0
    %2626 = vmatprep.subr.mxu0 0.0
    %2627 = vmatpush2.msra.mxu0 0.0
    %2628 = vmatprep.subr.mxu0 0.0
    %2629 = vmatpush2.msra.mxu0 0.0
    %2630 = vmatprep.subr.mxu0 0.0
    %2631 = vmatpush2.msra.mxu0 0.0
    %2632 = vmatprep.subr.mxu0 0.0
    %2633 = vmatpush2.msra.mxu0 0.0
    %2634 = vmatprep.subr.mxu0 0.0
    %2635 = vmatpush2.msra.mxu0 0.0
    %2636 = vmatprep.mubr.f32.mxu0 0.0
    %2637 = vmatmul.mubr.f32.gmra.mxu0 %v2567
    %v2638 = vpop.f32.mrf.mxu0
    %v2639 = vadd.f32 0.0, %v2638
    %v2640 = vpop.f32.mrf.mxu0
    %2641 = vmatprep.mubr.f32.mxu0 0.0
    %2642 = vmatmul.mubr.f32.gmra.mxu0 %v2570
    %v2643 = vpop.f32.mrf.mxu0
    %v2644 = vadd.f32 0.0, %v2643
    %v2645 = vpop.f32.mrf.mxu0
    %2646 = vdwg.mxu0
    %v2647 = vlaneseq
    %v2648 = vshrl.u32 %v2647, 7
    %v2649 = vsub.s32 0, %v2648
    %v2650 = vrot.slane %v2560, %v2649
    %v2651 = vadd.f32 %v2650, %v2639
    %v2652 = vadd.f32 %v2650, %v2644
    %s2653 = scalar_lea.vmem [#allocation4], 672
    %v2654 = vld [vmem:[%s2653] sm:$0xff]
    %v2655 = vld [vmem:[%s2653 + $0x8] sm:$0xff]
    %v2656 = vld [vmem:[%s2653 + $0x10] sm:$0xff]
    %v2657 = vld [vmem:[%s2653 + $0x18] sm:$0xff]
    %v2659 = vsel %vm47, %v2542, 0
    %v2662 = vsel %vm47, %v2547, 0
    %2664 = vmatprep.subr.mxu0 0.0
    %2665 = vmatpush1.msra.mxu0 0.0
    %2666 = vmatprep.subr.mxu0 0.0
    %2667 = vmatpush1.msra.mxu0 0.0
    %2668 = vmatprep.subr.mxu0 0.0
    %2669 = vmatpush1.msra.mxu0 0.0
    %2670 = vmatprep.subr.mxu0 0.0
    %2671 = vmatpush1.msra.mxu0 0.0
    %2672 = vmatprep.subr.mxu0 0.0
    %2673 = vmatpush1.msra.mxu0 0.0
    %2674 = vmatprep.subr.mxu0 0.0
    %2675 = vmatpush1.msra.mxu0 0.0
    %2676 = vmatprep.subr.mxu0 0.0
    %2677 = vmatpush1.msra.mxu0 0.0
    %2678 = vmatprep.subr.mxu0 0.0
    %2679 = vmatpush1.msra.mxu0 0.0
    %2680 = vmatprep.subr.mxu0 0.0
    %2681 = vmatpush1.msra.mxu0 0.0
    %2682 = vmatprep.subr.mxu0 0.0
    %2683 = vmatpush1.msra.mxu0 0.0
    %2684 = vmatprep.subr.mxu0 0.0
    %2685 = vmatpush1.msra.mxu0 0.0
    %2686 = vmatprep.subr.mxu0 0.0
    %2687 = vmatpush1.msra.mxu0 0.0
    %2688 = vmatprep.subr.mxu0 0.0
    %2689 = vmatpush1.msra.mxu0 %v2657
    %2690 = vmatprep.subr.mxu0 0.0
    %2691 = vmatpush1.msra.mxu0 %v2656
    %2692 = vmatprep.subr.mxu0 0.0
    %2693 = vmatpush1.msra.mxu0 %v2655
    %2694 = vmatprep.subr.mxu0 0.0
    %2695 = vmatpush1.msra.mxu0 %v2654
    %2696 = vmatprep.subr.mxu0 0.0
    %2697 = vmatpush2.msra.mxu0 0.0
    %2698 = vmatprep.subr.mxu0 0.0
    %2699 = vmatpush2.msra.mxu0 0.0
    %2700 = vmatprep.subr.mxu0 0.0
    %2701 = vmatpush2.msra.mxu0 0.0
    %2702 = vmatprep.subr.mxu0 0.0
    %2703 = vmatpush2.msra.mxu0 0.0
    %2704 = vmatprep.subr.mxu0 0.0
    %2705 = vmatpush2.msra.mxu0 0.0
    %2706 = vmatprep.subr.mxu0 0.0
    %2707 = vmatpush2.msra.mxu0 0.0
    %2708 = vmatprep.subr.mxu0 0.0
    %2709 = vmatpush2.msra.mxu0 0.0
    %2710 = vmatprep.subr.mxu0 0.0
    %2711 = vmatpush2.msra.mxu0 0.0
    %2712 = vmatprep.subr.mxu0 0.0
    %2713 = vmatpush2.msra.mxu0 0.0
    %2714 = vmatprep.subr.mxu0 0.0
    %2715 = vmatpush2.msra.mxu0 0.0
    %2716 = vmatprep.subr.mxu0 0.0
    %2717 = vmatpush2.msra.mxu0 0.0
    %2718 = vmatprep.subr.mxu0 0.0
    %2719 = vmatpush2.msra.mxu0 0.0
    %2720 = vmatprep.subr.mxu0 0.0
    %2721 = vmatpush2.msra.mxu0 0.0
    %2722 = vmatprep.subr.mxu0 0.0
    %2723 = vmatpush2.msra.mxu0 0.0
    %2724 = vmatprep.subr.mxu0 0.0
    %2725 = vmatpush2.msra.mxu0 0.0
    %2726 = vmatprep.subr.mxu0 0.0
    %2727 = vmatpush2.msra.mxu0 0.0
    %2728 = vmatprep.mubr.f32.mxu0 0.0
    %2729 = vmatmul.mubr.f32.gmra.mxu0 %v2659
    %v2730 = vpop.f32.mrf.mxu0
    %v2731 = vadd.f32 0.0, %v2730
    %v2732 = vpop.f32.mrf.mxu0
    %2733 = vmatprep.mubr.f32.mxu0 0.0
    %2734 = vmatmul.mubr.f32.gmra.mxu0 %v2662
    %v2735 = vpop.f32.mrf.mxu0
    %v2736 = vadd.f32 0.0, %v2735
    %v2737 = vpop.f32.mrf.mxu0
    %2738 = vdwg.mxu0
    %v2739 = vadd.f32 %v2651, %v2731
    %v2740 = vadd.f32 %v2652, %v2736
    %s2741 = scalar_lea.vmem [#allocation4], 704
    %v2742 = vld [vmem:[%s2741] sm:$0xff]
    %v2743 = vld [vmem:[%s2741 + $0x8] sm:$0xff]
    %v2744 = vld [vmem:[%s2741 + $0x10] sm:$0xff]
    %v2745 = vld [vmem:[%s2741 + $0x18] sm:$0xff]
    %v2747 = vsel %vm47, %v2552, 0
    %v2750 = vsel %vm47, %v2557, 0
    %2752 = vmatprep.subr.mxu0 0.0
    %2753 = vmatpush1.msra.mxu0 0.0
    %2754 = vmatprep.subr.mxu0 0.0
    %2755 = vmatpush1.msra.mxu0 0.0
    %2756 = vmatprep.subr.mxu0 0.0
    %2757 = vmatpush1.msra.mxu0 0.0
    %2758 = vmatprep.subr.mxu0 0.0
    %2759 = vmatpush1.msra.mxu0 0.0
    %2760 = vmatprep.subr.mxu0 0.0
    %2761 = vmatpush1.msra.mxu0 0.0
    %2762 = vmatprep.subr.mxu0 0.0
    %2763 = vmatpush1.msra.mxu0 0.0
    %2764 = vmatprep.subr.mxu0 0.0
    %2765 = vmatpush1.msra.mxu0 0.0
    %2766 = vmatprep.subr.mxu0 0.0
    %2767 = vmatpush1.msra.mxu0 0.0
    %2768 = vmatprep.subr.mxu0 0.0
    %2769 = vmatpush1.msra.mxu0 0.0
    %2770 = vmatprep.subr.mxu0 0.0
    %2771 = vmatpush1.msra.mxu0 0.0
    %2772 = vmatprep.subr.mxu0 0.0
    %2773 = vmatpush1.msra.mxu0 0.0
    %2774 = vmatprep.subr.mxu0 0.0
    %2775 = vmatpush1.msra.mxu0 0.0
    %2776 = vmatprep.subr.mxu0 0.0
    %2777 = vmatpush1.msra.mxu0 %v2745
    %2778 = vmatprep.subr.mxu0 0.0
    %2779 = vmatpush1.msra.mxu0 %v2744
    %2780 = vmatprep.subr.mxu0 0.0
    %2781 = vmatpush1.msra.mxu0 %v2743
    %2782 = vmatprep.subr.mxu0 0.0
    %2783 = vmatpush1.msra.mxu0 %v2742
    %2784 = vmatprep.subr.mxu0 0.0
    %2785 = vmatpush2.msra.mxu0 0.0
    %2786 = vmatprep.subr.mxu0 0.0
    %2787 = vmatpush2.msra.mxu0 0.0
    %2788 = vmatprep.subr.mxu0 0.0
    %2789 = vmatpush2.msra.mxu0 0.0
    %2790 = vmatprep.subr.mxu0 0.0
    %2791 = vmatpush2.msra.mxu0 0.0
    %2792 = vmatprep.subr.mxu0 0.0
    %2793 = vmatpush2.msra.mxu0 0.0
    %2794 = vmatprep.subr.mxu0 0.0
    %2795 = vmatpush2.msra.mxu0 0.0
    %2796 = vmatprep.subr.mxu0 0.0
    %2797 = vmatpush2.msra.mxu0 0.0
    %2798 = vmatprep.subr.mxu0 0.0
    %2799 = vmatpush2.msra.mxu0 0.0
    %2800 = vmatprep.subr.mxu0 0.0
    %2801 = vmatpush2.msra.mxu0 0.0
    %2802 = vmatprep.subr.mxu0 0.0
    %2803 = vmatpush2.msra.mxu0 0.0
    %2804 = vmatprep.subr.mxu0 0.0
    %2805 = vmatpush2.msra.mxu0 0.0
    %2806 = vmatprep.subr.mxu0 0.0
    %2807 = vmatpush2.msra.mxu0 0.0
    %2808 = vmatprep.subr.mxu0 0.0
    %2809 = vmatpush2.msra.mxu0 0.0
    %2810 = vmatprep.subr.mxu0 0.0
    %2811 = vmatpush2.msra.mxu0 0.0
    %2812 = vmatprep.subr.mxu0 0.0
    %2813 = vmatpush2.msra.mxu0 0.0
    %2814 = vmatprep.subr.mxu0 0.0
    %2815 = vmatpush2.msra.mxu0 0.0
    %2816 = vmatprep.mubr.f32.mxu0 0.0
    %2817 = vmatmul.mubr.f32.gmra.mxu0 %v2747
    %v2818 = vpop.f32.mrf.mxu0
    %v2819 = vadd.f32 0.0, %v2818
    %v2820 = vpop.f32.mrf.mxu0
    %2821 = vmatprep.mubr.f32.mxu0 0.0
    %2822 = vmatmul.mubr.f32.gmra.mxu0 %v2750
    %v2823 = vpop.f32.mrf.mxu0
    %v2824 = vadd.f32 0.0, %v2823
    %v2825 = vpop.f32.mrf.mxu0
    %2826 = vdwg.mxu0
    %v2827 = vadd.f32 %v2739, %v2819
    %v2828 = vadd.f32 %v2740, %v2824
    %s2829 = scalar_lea.vmem [#allocation4], 736
    %v2830 = vld [vmem:[%s2829] sm:$0xff]
    %v2831 = vld [vmem:[%s2829 + $0x8] sm:$0xff]
    %v2832 = vld [vmem:[%s2829 + $0x10] sm:$0xff]
    %v2833 = vld [vmem:[%s2829 + $0x18] sm:$0xff]
    %s2834 = scalar_lea.vmem [#allocation4], 768
    %v2835 = vld [vmem:[%s2834] sm:$0xff]
    %v2836 = vld [vmem:[%s2834 + $0x8] sm:$0xff]
    %v2837 = vld [vmem:[%s2834 + $0x10] sm:$0xff]
    %v2838 = vld [vmem:[%s2834 + $0x18] sm:$0xff]
    %v2840 = vsel %vm47, %v2827, 0
    %v2843 = vsel %vm47, %v2828, 0
    %2845 = vmatprep.subr.mxu0 0.0
    %2846 = vmatpush1.msra.mxu0 0.0
    %2847 = vmatprep.subr.mxu0 0.0
    %2848 = vmatpush1.msra.mxu0 0.0
    %2849 = vmatprep.subr.mxu0 0.0
    %2850 = vmatpush1.msra.mxu0 0.0
    %2851 = vmatprep.subr.mxu0 0.0
    %2852 = vmatpush1.msra.mxu0 0.0
    %2853 = vmatprep.subr.mxu0 0.0
    %2854 = vmatpush1.msra.mxu0 0.0
    %2855 = vmatprep.subr.mxu0 0.0
    %2856 = vmatpush1.msra.mxu0 0.0
    %2857 = vmatprep.subr.mxu0 0.0
    %2858 = vmatpush1.msra.mxu0 0.0
    %2859 = vmatprep.subr.mxu0 0.0
    %2860 = vmatpush1.msra.mxu0 0.0
    %2861 = vmatprep.subr.mxu0 0.0
    %2862 = vmatpush1.msra.mxu0 0.0
    %2863 = vmatprep.subr.mxu0 0.0
    %2864 = vmatpush1.msra.mxu0 0.0
    %2865 = vmatprep.subr.mxu0 0.0
    %2866 = vmatpush1.msra.mxu0 0.0
    %2867 = vmatprep.subr.mxu0 0.0
    %2868 = vmatpush1.msra.mxu0 0.0
    %2869 = vmatprep.subr.mxu0 0.0
    %2870 = vmatpush1.msra.mxu0 %v2838
    %2871 = vmatprep.subr.mxu0 0.0
    %2872 = vmatpush1.msra.mxu0 %v2837
    %2873 = vmatprep.subr.mxu0 0.0
    %2874 = vmatpush1.msra.mxu0 %v2836
    %2875 = vmatprep.subr.mxu0 0.0
    %2876 = vmatpush1.msra.mxu0 %v2835
    %2877 = vmatprep.subr.mxu0 0.0
    %2878 = vmatpush2.msra.mxu0 0.0
    %2879 = vmatprep.subr.mxu0 0.0
    %2880 = vmatpush2.msra.mxu0 0.0
    %2881 = vmatprep.subr.mxu0 0.0
    %2882 = vmatpush2.msra.mxu0 0.0
    %2883 = vmatprep.subr.mxu0 0.0
    %2884 = vmatpush2.msra.mxu0 0.0
    %2885 = vmatprep.subr.mxu0 0.0
    %2886 = vmatpush2.msra.mxu0 0.0
    %2887 = vmatprep.subr.mxu0 0.0
    %2888 = vmatpush2.msra.mxu0 0.0
    %2889 = vmatprep.subr.mxu0 0.0
    %2890 = vmatpush2.msra.mxu0 0.0
    %2891 = vmatprep.subr.mxu0 0.0
    %2892 = vmatpush2.msra.mxu0 0.0
    %2893 = vmatprep.subr.mxu0 0.0
    %2894 = vmatpush2.msra.mxu0 0.0
    %2895 = vmatprep.subr.mxu0 0.0
    %2896 = vmatpush2.msra.mxu0 0.0
    %2897 = vmatprep.subr.mxu0 0.0
    %2898 = vmatpush2.msra.mxu0 0.0
    %2899 = vmatprep.subr.mxu0 0.0
    %2900 = vmatpush2.msra.mxu0 0.0
    %2901 = vmatprep.subr.mxu0 0.0
    %2902 = vmatpush2.msra.mxu0 0.0
    %2903 = vmatprep.subr.mxu0 0.0
    %2904 = vmatpush2.msra.mxu0 0.0
    %2905 = vmatprep.subr.mxu0 0.0
    %2906 = vmatpush2.msra.mxu0 0.0
    %2907 = vmatprep.subr.mxu0 0.0
    %2908 = vmatpush2.msra.mxu0 0.0
    %2909 = vmatprep.mubr.f32.mxu0 0.0
    %2910 = vmatmul.mubr.f32.gmra.mxu0 %v2840
    %v2911 = vpop.f32.mrf.mxu0
    %v2912 = vadd.f32 0.0, %v2911
    %v2913 = vpop.f32.mrf.mxu0
    %2914 = vmatprep.mubr.f32.mxu0 0.0
    %2915 = vmatmul.mubr.f32.gmra.mxu0 %v2843
    %v2916 = vpop.f32.mrf.mxu0
    %v2917 = vadd.f32 0.0, %v2916
    %v2918 = vpop.f32.mrf.mxu0
    %2919 = vdwg.mxu0
    %v2921 = vsel %vm47, %v2439, 0
    %v2924 = vsel %vm47, %v2440, 0
    %2926 = vmatprep.subr.mxu0 0.0
    %2927 = vmatpush1.msra.mxu0 0.0
    %2928 = vmatprep.subr.mxu0 0.0
    %2929 = vmatpush1.msra.mxu0 0.0
    %2930 = vmatprep.subr.mxu0 0.0
    %2931 = vmatpush1.msra.mxu0 0.0
    %2932 = vmatprep.subr.mxu0 0.0
    %2933 = vmatpush1.msra.mxu0 0.0
    %2934 = vmatprep.subr.mxu0 0.0
    %2935 = vmatpush1.msra.mxu0 0.0
    %2936 = vmatprep.subr.mxu0 0.0
    %2937 = vmatpush1.msra.mxu0 0.0
    %2938 = vmatprep.subr.mxu0 0.0
    %2939 = vmatpush1.msra.mxu0 0.0
    %2940 = vmatprep.subr.mxu0 0.0
    %2941 = vmatpush1.msra.mxu0 0.0
    %2942 = vmatprep.subr.mxu0 0.0
    %2943 = vmatpush1.msra.mxu0 0.0
    %2944 = vmatprep.subr.mxu0 0.0
    %2945 = vmatpush1.msra.mxu0 0.0
    %2946 = vmatprep.subr.mxu0 0.0
    %2947 = vmatpush1.msra.mxu0 0.0
    %2948 = vmatprep.subr.mxu0 0.0
    %2949 = vmatpush1.msra.mxu0 0.0
    %2950 = vmatprep.subr.mxu0 0.0
    %2951 = vmatpush1.msra.mxu0 %v2833
    %2952 = vmatprep.subr.mxu0 0.0
    %2953 = vmatpush1.msra.mxu0 %v2832
    %2954 = vmatprep.subr.mxu0 0.0
    %2955 = vmatpush1.msra.mxu0 %v2831
    %2956 = vmatprep.subr.mxu0 0.0
    %2957 = vmatpush1.msra.mxu0 %v2830
    %2958 = vmatprep.subr.mxu0 0.0
    %2959 = vmatpush2.msra.mxu0 0.0
    %2960 = vmatprep.subr.mxu0 0.0
    %2961 = vmatpush2.msra.mxu0 0.0
    %2962 = vmatprep.subr.mxu0 0.0
    %2963 = vmatpush2.msra.mxu0 0.0
    %2964 = vmatprep.subr.mxu0 0.0
    %2965 = vmatpush2.msra.mxu0 0.0
    %2966 = vmatprep.subr.mxu0 0.0
    %2967 = vmatpush2.msra.mxu0 0.0
    %2968 = vmatprep.subr.mxu0 0.0
    %2969 = vmatpush2.msra.mxu0 0.0
    %2970 = vmatprep.subr.mxu0 0.0
    %2971 = vmatpush2.msra.mxu0 0.0
    %2972 = vmatprep.subr.mxu0 0.0
    %2973 = vmatpush2.msra.mxu0 0.0
    %2974 = vmatprep.subr.mxu0 0.0
    %2975 = vmatpush2.msra.mxu0 0.0
    %2976 = vmatprep.subr.mxu0 0.0
    %2977 = vmatpush2.msra.mxu0 0.0
    %2978 = vmatprep.subr.mxu0 0.0
    %2979 = vmatpush2.msra.mxu0 0.0
    %2980 = vmatprep.subr.mxu0 0.0
    %2981 = vmatpush2.msra.mxu0 0.0
    %2982 = vmatprep.subr.mxu0 0.0
    %2983 = vmatpush2.msra.mxu0 0.0
    %2984 = vmatprep.subr.mxu0 0.0
    %2985 = vmatpush2.msra.mxu0 0.0
    %2986 = vmatprep.subr.mxu0 0.0
    %2987 = vmatpush2.msra.mxu0 0.0
    %2988 = vmatprep.subr.mxu0 0.0
    %2989 = vmatpush2.msra.mxu0 0.0
    %2990 = vmatprep.mubr.f32.mxu0 0.0
    %2991 = vmatmul.mubr.f32.gmra.mxu0 %v2921
    %v2992 = vpop.f32.mrf.mxu0
    %v2993 = vadd.f32 %v2912, %v2992
    %v2994 = vpop.f32.mrf.mxu0
    %2995 = vmatprep.mubr.f32.mxu0 0.0
    %2996 = vmatmul.mubr.f32.gmra.mxu0 %v2924
    %v2997 = vpop.f32.mrf.mxu0
    %v2998 = vadd.f32 %v2917, %v2997
    %v2999 = vpop.f32.mrf.mxu0
    %3000 = vdwg.mxu0
    %s3001 = scalar_lea.vmem [#allocation4], 800
    %v3002 = vld [vmem:[%s3001] sm:$0xff]
    %v3003 = vld [vmem:[%s3001 + $0x8] sm:$0xff]
    %v3004 = vld [vmem:[%s3001 + $0x10] sm:$0xff]
    %v3005 = vld [vmem:[%s3001 + $0x18] sm:$0xff]
    %v3007 = vsel %vm47, %v2051, 0
    %v3010 = vsel %vm47, %v2052, 0
    %3012 = vmatprep.subr.mxu0 0.0
    %3013 = vmatpush1.msra.mxu0 0.0
    %3014 = vmatprep.subr.mxu0 0.0
    %3015 = vmatpush1.msra.mxu0 0.0
    %3016 = vmatprep.subr.mxu0 0.0
    %3017 = vmatpush1.msra.mxu0 0.0
    %3018 = vmatprep.subr.mxu0 0.0
    %3019 = vmatpush1.msra.mxu0 0.0
    %3020 = vmatprep.subr.mxu0 0.0
    %3021 = vmatpush1.msra.mxu0 0.0
    %3022 = vmatprep.subr.mxu0 0.0
    %3023 = vmatpush1.msra.mxu0 0.0
    %3024 = vmatprep.subr.mxu0 0.0
    %3025 = vmatpush1.msra.mxu0 0.0
    %3026 = vmatprep.subr.mxu0 0.0
    %3027 = vmatpush1.msra.mxu0 0.0
    %3028 = vmatprep.subr.mxu0 0.0
    %3029 = vmatpush1.msra.mxu0 0.0
    %3030 = vmatprep.subr.mxu0 0.0
    %3031 = vmatpush1.msra.mxu0 0.0
    %3032 = vmatprep.subr.mxu0 0.0
    %3033 = vmatpush1.msra.mxu0 0.0
    %3034 = vmatprep.subr.mxu0 0.0
    %3035 = vmatpush1.msra.mxu0 0.0
    %3036 = vmatprep.subr.mxu0 0.0
    %3037 = vmatpush1.msra.mxu0 %v3005
    %3038 = vmatprep.subr.mxu0 0.0
    %3039 = vmatpush1.msra.mxu0 %v3004
    %3040 = vmatprep.subr.mxu0 0.0
    %3041 = vmatpush1.msra.mxu0 %v3003
    %3042 = vmatprep.subr.mxu0 0.0
    %3043 = vmatpush1.msra.mxu0 %v3002
    %3044 = vmatprep.subr.mxu0 0.0
    %3045 = vmatpush2.msra.mxu0 0.0
    %3046 = vmatprep.subr.mxu0 0.0
    %3047 = vmatpush2.msra.mxu0 0.0
    %3048 = vmatprep.subr.mxu0 0.0
    %3049 = vmatpush2.msra.mxu0 0.0
    %3050 = vmatprep.subr.mxu0 0.0
    %3051 = vmatpush2.msra.mxu0 0.0
    %3052 = vmatprep.subr.mxu0 0.0
    %3053 = vmatpush2.msra.mxu0 0.0
    %3054 = vmatprep.subr.mxu0 0.0
    %3055 = vmatpush2.msra.mxu0 0.0
    %3056 = vmatprep.subr.mxu0 0.0
    %3057 = vmatpush2.msra.mxu0 0.0
    %3058 = vmatprep.subr.mxu0 0.0
    %3059 = vmatpush2.msra.mxu0 0.0
    %3060 = vmatprep.subr.mxu0 0.0
    %3061 = vmatpush2.msra.mxu0 0.0
    %3062 = vmatprep.subr.mxu0 0.0
    %3063 = vmatpush2.msra.mxu0 0.0
    %3064 = vmatprep.subr.mxu0 0.0
    %3065 = vmatpush2.msra.mxu0 0.0
    %3066 = vmatprep.subr.mxu0 0.0
    %3067 = vmatpush2.msra.mxu0 0.0
    %3068 = vmatprep.subr.mxu0 0.0
    %3069 = vmatpush2.msra.mxu0 0.0
    %3070 = vmatprep.subr.mxu0 0.0
    %3071 = vmatpush2.msra.mxu0 0.0
    %3072 = vmatprep.subr.mxu0 0.0
    %3073 = vmatpush2.msra.mxu0 0.0
    %3074 = vmatprep.subr.mxu0 0.0
    %3075 = vmatpush2.msra.mxu0 0.0
    %3076 = vmatprep.mubr.f32.mxu0 0.0
    %3077 = vmatmul.mubr.f32.gmra.mxu0 %v3007
    %v3078 = vpop.f32.mrf.mxu0
    %v3079 = vadd.f32 0.0, %v3078
    %v3080 = vpop.f32.mrf.mxu0
    %3081 = vmatprep.mubr.f32.mxu0 0.0
    %3082 = vmatmul.mubr.f32.gmra.mxu0 %v3010
    %v3083 = vpop.f32.mrf.mxu0
    %v3084 = vadd.f32 0.0, %v3083
    %v3085 = vpop.f32.mrf.mxu0
    %3086 = vdwg.mxu0
    %v3087 = vadd.f32 %v2993, %v3079
    %v3088 = vadd.f32 %v2998, %v3084
    %s3089 = scalar_lea.vmem [#allocation4], 832
    %v3090 = vld [vmem:[%s3089] sm:$0xff]
    %v3091 = vld [vmem:[%s3089 + $0x8] sm:$0xff]
    %v3092 = vld [vmem:[%s3089 + $0x10] sm:$0xff]
    %v3093 = vld [vmem:[%s3089 + $0x18] sm:$0xff]
    %s3094 = scalar_lea.vmem [#allocation4], 864
    %v3095 = vld [vmem:[%s3094] sm:$0xff]
    %v3096 = vld [vmem:[%s3094 + $0x8] sm:$0xff]
    %v3097 = vld [vmem:[%s3094 + $0x10] sm:$0xff]
    %v3098 = vld [vmem:[%s3094 + $0x18] sm:$0xff]
    %3099 = vmatprep.subr.mxu0 0.0
    %3100 = vmatpush1.msra.mxu0 0.0
    %3101 = vmatprep.subr.mxu0 0.0
    %3102 = vmatpush1.msra.mxu0 0.0
    %3103 = vmatprep.subr.mxu0 0.0
    %3104 = vmatpush1.msra.mxu0 0.0
    %3105 = vmatprep.subr.mxu0 0.0
    %3106 = vmatpush1.msra.mxu0 0.0
    %3107 = vmatprep.subr.mxu0 0.0
    %3108 = vmatpush1.msra.mxu0 0.0
    %3109 = vmatprep.subr.mxu0 0.0
    %3110 = vmatpush1.msra.mxu0 0.0
    %3111 = vmatprep.subr.mxu0 0.0
    %3112 = vmatpush1.msra.mxu0 0.0
    %3113 = vmatprep.subr.mxu0 0.0
    %3114 = vmatpush1.msra.mxu0 0.0
    %3115 = vmatprep.subr.mxu0 0.0
    %3116 = vmatpush1.msra.mxu0 0.0
    %3117 = vmatprep.subr.mxu0 0.0
    %3118 = vmatpush1.msra.mxu0 0.0
    %3119 = vmatprep.subr.mxu0 0.0
    %3120 = vmatpush1.msra.mxu0 0.0
    %3121 = vmatprep.subr.mxu0 0.0
    %3122 = vmatpush1.msra.mxu0 0.0
    %3123 = vmatprep.subr.mxu0 0.0
    %3124 = vmatpush1.msra.mxu0 %v3098
    %3125 = vmatprep.subr.mxu0 0.0
    %3126 = vmatpush1.msra.mxu0 %v3097
    %3127 = vmatprep.subr.mxu0 0.0
    %3128 = vmatpush1.msra.mxu0 %v3096
    %3129 = vmatprep.subr.mxu0 0.0
    %3130 = vmatpush1.msra.mxu0 %v3095
    %3131 = vmatprep.subr.mxu0 0.0
    %3132 = vmatpush2.msra.mxu0 0.0
    %3133 = vmatprep.subr.mxu0 0.0
    %3134 = vmatpush2.msra.mxu0 0.0
    %3135 = vmatprep.subr.mxu0 0.0
    %3136 = vmatpush2.msra.mxu0 0.0
    %3137 = vmatprep.subr.mxu0 0.0
    %3138 = vmatpush2.msra.mxu0 0.0
    %3139 = vmatprep.subr.mxu0 0.0
    %3140 = vmatpush2.msra.mxu0 0.0
    %3141 = vmatprep.subr.mxu0 0.0
    %3142 = vmatpush2.msra.mxu0 0.0
    %3143 = vmatprep.subr.mxu0 0.0
    %3144 = vmatpush2.msra.mxu0 0.0
    %3145 = vmatprep.subr.mxu0 0.0
    %3146 = vmatpush2.msra.mxu0 0.0
    %3147 = vmatprep.subr.mxu0 0.0
    %3148 = vmatpush2.msra.mxu0 0.0
    %3149 = vmatprep.subr.mxu0 0.0
    %3150 = vmatpush2.msra.mxu0 0.0
    %3151 = vmatprep.subr.mxu0 0.0
    %3152 = vmatpush2.msra.mxu0 0.0
    %3153 = vmatprep.subr.mxu0 0.0
    %3154 = vmatpush2.msra.mxu0 0.0
    %3155 = vmatprep.subr.mxu0 0.0
    %3156 = vmatpush2.msra.mxu0 0.0
    %3157 = vmatprep.subr.mxu0 0.0
    %3158 = vmatpush2.msra.mxu0 0.0
    %3159 = vmatprep.subr.mxu0 0.0
    %3160 = vmatpush2.msra.mxu0 0.0
    %3161 = vmatprep.subr.mxu0 0.0
    %3162 = vmatpush2.msra.mxu0 0.0
    %3163 = vmatprep.mubr.f32.mxu0 0.0
    %3164 = vmatmul.mubr.f32.gmra.mxu0 %v2840
    %v3165 = vpop.f32.mrf.mxu0
    %v3166 = vadd.f32 0.0, %v3165
    %v3167 = vpop.f32.mrf.mxu0
    %3168 = vmatprep.mubr.f32.mxu0 0.0
    %3169 = vmatmul.mubr.f32.gmra.mxu0 %v2843
    %v3170 = vpop.f32.mrf.mxu0
    %v3171 = vadd.f32 0.0, %v3170
    %v3172 = vpop.f32.mrf.mxu0
    %3173 = vdwg.mxu0
    %3174 = vmatprep.subr.mxu0 0.0
    %3175 = vmatpush1.msra.mxu0 0.0
    %3176 = vmatprep.subr.mxu0 0.0
    %3177 = vmatpush1.msra.mxu0 0.0
    %3178 = vmatprep.subr.mxu0 0.0
    %3179 = vmatpush1.msra.mxu0 0.0
    %3180 = vmatprep.subr.mxu0 0.0
    %3181 = vmatpush1.msra.mxu0 0.0
    %3182 = vmatprep.subr.mxu0 0.0
    %3183 = vmatpush1.msra.mxu0 0.0
    %3184 = vmatprep.subr.mxu0 0.0
    %3185 = vmatpush1.msra.mxu0 0.0
    %3186 = vmatprep.subr.mxu0 0.0
    %3187 = vmatpush1.msra.mxu0 0.0
    %3188 = vmatprep.subr.mxu0 0.0
    %3189 = vmatpush1.msra.mxu0 0.0
    %3190 = vmatprep.subr.mxu0 0.0
    %3191 = vmatpush1.msra.mxu0 0.0
    %3192 = vmatprep.subr.mxu0 0.0
    %3193 = vmatpush1.msra.mxu0 0.0
    %3194 = vmatprep.subr.mxu0 0.0
    %3195 = vmatpush1.msra.mxu0 0.0
    %3196 = vmatprep.subr.mxu0 0.0
    %3197 = vmatpush1.msra.mxu0 0.0
    %3198 = vmatprep.subr.mxu0 0.0
    %3199 = vmatpush1.msra.mxu0 %v3093
    %3200 = vmatprep.subr.mxu0 0.0
    %3201 = vmatpush1.msra.mxu0 %v3092
    %3202 = vmatprep.subr.mxu0 0.0
    %3203 = vmatpush1.msra.mxu0 %v3091
    %3204 = vmatprep.subr.mxu0 0.0
    %3205 = vmatpush1.msra.mxu0 %v3090
    %3206 = vmatprep.subr.mxu0 0.0
    %3207 = vmatpush2.msra.mxu0 0.0
    %3208 = vmatprep.subr.mxu0 0.0
    %3209 = vmatpush2.msra.mxu0 0.0
    %3210 = vmatprep.subr.mxu0 0.0
    %3211 = vmatpush2.msra.mxu0 0.0
    %3212 = vmatprep.subr.mxu0 0.0
    %3213 = vmatpush2.msra.mxu0 0.0
    %3214 = vmatprep.subr.mxu0 0.0
    %3215 = vmatpush2.msra.mxu0 0.0
    %3216 = vmatprep.subr.mxu0 0.0
    %3217 = vmatpush2.msra.mxu0 0.0
    %3218 = vmatprep.subr.mxu0 0.0
    %3219 = vmatpush2.msra.mxu0 0.0
    %3220 = vmatprep.subr.mxu0 0.0
    %3221 = vmatpush2.msra.mxu0 0.0
    %3222 = vmatprep.subr.mxu0 0.0
    %3223 = vmatpush2.msra.mxu0 0.0
    %3224 = vmatprep.subr.mxu0 0.0
    %3225 = vmatpush2.msra.mxu0 0.0
    %3226 = vmatprep.subr.mxu0 0.0
    %3227 = vmatpush2.msra.mxu0 0.0
    %3228 = vmatprep.subr.mxu0 0.0
    %3229 = vmatpush2.msra.mxu0 0.0
    %3230 = vmatprep.subr.mxu0 0.0
    %3231 = vmatpush2.msra.mxu0 0.0
    %3232 = vmatprep.subr.mxu0 0.0
    %3233 = vmatpush2.msra.mxu0 0.0
    %3234 = vmatprep.subr.mxu0 0.0
    %3235 = vmatpush2.msra.mxu0 0.0
    %3236 = vmatprep.subr.mxu0 0.0
    %3237 = vmatpush2.msra.mxu0 0.0
    %3238 = vmatprep.mubr.f32.mxu0 0.0
    %3239 = vmatmul.mubr.f32.gmra.mxu0 %v2921
    %v3240 = vpop.f32.mrf.mxu0
    %v3241 = vadd.f32 %v3166, %v3240
    %v3242 = vpop.f32.mrf.mxu0
    %3243 = vmatprep.mubr.f32.mxu0 0.0
    %3244 = vmatmul.mubr.f32.gmra.mxu0 %v2924
    %v3245 = vpop.f32.mrf.mxu0
    %v3246 = vadd.f32 %v3171, %v3245
    %v3247 = vpop.f32.mrf.mxu0
    %3248 = vdwg.mxu0
    %s3249 = scalar_lea.vmem [#allocation4], 896
    %v3250 = vld [vmem:[%s3249] sm:$0xff]
    %v3251 = vld [vmem:[%s3249 + $0x8] sm:$0xff]
    %v3252 = vld [vmem:[%s3249 + $0x10] sm:$0xff]
    %v3253 = vld [vmem:[%s3249 + $0x18] sm:$0xff]
    %3254 = vmatprep.subr.mxu0 0.0
    %3255 = vmatpush1.msra.mxu0 0.0
    %3256 = vmatprep.subr.mxu0 0.0
    %3257 = vmatpush1.msra.mxu0 0.0
    %3258 = vmatprep.subr.mxu0 0.0
    %3259 = vmatpush1.msra.mxu0 0.0
    %3260 = vmatprep.subr.mxu0 0.0
    %3261 = vmatpush1.msra.mxu0 0.0
    %3262 = vmatprep.subr.mxu0 0.0
    %3263 = vmatpush1.msra.mxu0 0.0
    %3264 = vmatprep.subr.mxu0 0.0
    %3265 = vmatpush1.msra.mxu0 0.0
    %3266 = vmatprep.subr.mxu0 0.0
    %3267 = vmatpush1.msra.mxu0 0.0
    %3268 = vmatprep.subr.mxu0 0.0
    %3269 = vmatpush1.msra.mxu0 0.0
    %3270 = vmatprep.subr.mxu0 0.0
    %3271 = vmatpush1.msra.mxu0 0.0
    %3272 = vmatprep.subr.mxu0 0.0
    %3273 = vmatpush1.msra.mxu0 0.0
    %3274 = vmatprep.subr.mxu0 0.0
    %3275 = vmatpush1.msra.mxu0 0.0
    %3276 = vmatprep.subr.mxu0 0.0
    %3277 = vmatpush1.msra.mxu0 0.0
    %3278 = vmatprep.subr.mxu0 0.0
    %3279 = vmatpush1.msra.mxu0 %v3253
    %3280 = vmatprep.subr.mxu0 0.0
    %3281 = vmatpush1.msra.mxu0 %v3252
    %3282 = vmatprep.subr.mxu0 0.0
    %3283 = vmatpush1.msra.mxu0 %v3251
    %3284 = vmatprep.subr.mxu0 0.0
    %3285 = vmatpush1.msra.mxu0 %v3250
    %3286 = vmatprep.subr.mxu0 0.0
    %3287 = vmatpush2.msra.mxu0 0.0
    %3288 = vmatprep.subr.mxu0 0.0
    %3289 = vmatpush2.msra.mxu0 0.0
    %3290 = vmatprep.subr.mxu0 0.0
    %3291 = vmatpush2.msra.mxu0 0.0
    %3292 = vmatprep.subr.mxu0 0.0
    %3293 = vmatpush2.msra.mxu0 0.0
    %3294 = vmatprep.subr.mxu0 0.0
    %3295 = vmatpush2.msra.mxu0 0.0
    %3296 = vmatprep.subr.mxu0 0.0
    %3297 = vmatpush2.msra.mxu0 0.0
    %3298 = vmatprep.subr.mxu0 0.0
    %3299 = vmatpush2.msra.mxu0 0.0
    %3300 = vmatprep.subr.mxu0 0.0
    %3301 = vmatpush2.msra.mxu0 0.0
    %3302 = vmatprep.subr.mxu0 0.0
    %3303 = vmatpush2.msra.mxu0 0.0
    %3304 = vmatprep.subr.mxu0 0.0
    %3305 = vmatpush2.msra.mxu0 0.0
    %3306 = vmatprep.subr.mxu0 0.0
    %3307 = vmatpush2.msra.mxu0 0.0
    %3308 = vmatprep.subr.mxu0 0.0
    %3309 = vmatpush2.msra.mxu0 0.0
    %3310 = vmatprep.subr.mxu0 0.0
    %3311 = vmatpush2.msra.mxu0 0.0
    %3312 = vmatprep.subr.mxu0 0.0
    %3313 = vmatpush2.msra.mxu0 0.0
    %3314 = vmatprep.subr.mxu0 0.0
    %3315 = vmatpush2.msra.mxu0 0.0
    %3316 = vmatprep.subr.mxu0 0.0
    %3317 = vmatpush2.msra.mxu0 0.0
    %3318 = vmatprep.mubr.f32.mxu0 0.0
    %3319 = vmatmul.mubr.f32.gmra.mxu0 %v3007
    %v3320 = vpop.f32.mrf.mxu0
    %v3321 = vadd.f32 0.0, %v3320
    %v3322 = vpop.f32.mrf.mxu0
    %3323 = vmatprep.mubr.f32.mxu0 0.0
    %3324 = vmatmul.mubr.f32.gmra.mxu0 %v3010
    %v3325 = vpop.f32.mrf.mxu0
    %v3326 = vadd.f32 0.0, %v3325
    %v3327 = vpop.f32.mrf.mxu0
    %3328 = vdwg.mxu0
    %v3329 = vadd.f32 %v3241, %v3321
    %v3330 = vadd.f32 %v3246, %v3326
    %s3331 = scalar_lea.vmem [#allocation4], 928
    %v3332 = vld [vmem:[%s3331] sm:$0xff]
    %v3333 = vld [vmem:[%s3331 + $0x8] sm:$0xff]
    %v3334 = vld [vmem:[%s3331 + $0x10] sm:$0xff]
    %v3335 = vld [vmem:[%s3331 + $0x18] sm:$0xff]
    %s3336 = scalar_lea.vmem [#allocation4], 960
    %v3337 = vld [vmem:[%s3336] sm:$0xff]
    %v3338 = vld [vmem:[%s3336 + $0x8] sm:$0xff]
    %v3339 = vld [vmem:[%s3336 + $0x10] sm:$0xff]
    %v3340 = vld [vmem:[%s3336 + $0x18] sm:$0xff]
    %3341 = vmatprep.subr.mxu0 0.0
    %3342 = vmatpush1.msra.mxu0 0.0
    %3343 = vmatprep.subr.mxu0 0.0
    %3344 = vmatpush1.msra.mxu0 0.0
    %3345 = vmatprep.subr.mxu0 0.0
    %3346 = vmatpush1.msra.mxu0 0.0
    %3347 = vmatprep.subr.mxu0 0.0
    %3348 = vmatpush1.msra.mxu0 0.0
    %3349 = vmatprep.subr.mxu0 0.0
    %3350 = vmatpush1.msra.mxu0 0.0
    %3351 = vmatprep.subr.mxu0 0.0
    %3352 = vmatpush1.msra.mxu0 0.0
    %3353 = vmatprep.subr.mxu0 0.0
    %3354 = vmatpush1.msra.mxu0 0.0
    %3355 = vmatprep.subr.mxu0 0.0
    %3356 = vmatpush1.msra.mxu0 0.0
    %3357 = vmatprep.subr.mxu0 0.0
    %3358 = vmatpush1.msra.mxu0 0.0
    %3359 = vmatprep.subr.mxu0 0.0
    %3360 = vmatpush1.msra.mxu0 0.0
    %3361 = vmatprep.subr.mxu0 0.0
    %3362 = vmatpush1.msra.mxu0 0.0
    %3363 = vmatprep.subr.mxu0 0.0
    %3364 = vmatpush1.msra.mxu0 0.0
    %3365 = vmatprep.subr.mxu0 0.0
    %3366 = vmatpush1.msra.mxu0 %v3340
    %3367 = vmatprep.subr.mxu0 0.0
    %3368 = vmatpush1.msra.mxu0 %v3339
    %3369 = vmatprep.subr.mxu0 0.0
    %3370 = vmatpush1.msra.mxu0 %v3338
    %3371 = vmatprep.subr.mxu0 0.0
    %3372 = vmatpush1.msra.mxu0 %v3337
    %3373 = vmatprep.subr.mxu0 0.0
    %3374 = vmatpush2.msra.mxu0 0.0
    %3375 = vmatprep.subr.mxu0 0.0
    %3376 = vmatpush2.msra.mxu0 0.0
    %3377 = vmatprep.subr.mxu0 0.0
    %3378 = vmatpush2.msra.mxu0 0.0
    %3379 = vmatprep.subr.mxu0 0.0
    %3380 = vmatpush2.msra.mxu0 0.0
    %3381 = vmatprep.subr.mxu0 0.0
    %3382 = vmatpush2.msra.mxu0 0.0
    %3383 = vmatprep.subr.mxu0 0.0
    %3384 = vmatpush2.msra.mxu0 0.0
    %3385 = vmatprep.subr.mxu0 0.0
    %3386 = vmatpush2.msra.mxu0 0.0
    %3387 = vmatprep.subr.mxu0 0.0
    %3388 = vmatpush2.msra.mxu0 0.0
    %3389 = vmatprep.subr.mxu0 0.0
    %3390 = vmatpush2.msra.mxu0 0.0
    %3391 = vmatprep.subr.mxu0 0.0
    %3392 = vmatpush2.msra.mxu0 0.0
    %3393 = vmatprep.subr.mxu0 0.0
    %3394 = vmatpush2.msra.mxu0 0.0
    %3395 = vmatprep.subr.mxu0 0.0
    %3396 = vmatpush2.msra.mxu0 0.0
    %3397 = vmatprep.subr.mxu0 0.0
    %3398 = vmatpush2.msra.mxu0 0.0
    %3399 = vmatprep.subr.mxu0 0.0
    %3400 = vmatpush2.msra.mxu0 0.0
    %3401 = vmatprep.subr.mxu0 0.0
    %3402 = vmatpush2.msra.mxu0 0.0
    %3403 = vmatprep.subr.mxu0 0.0
    %3404 = vmatpush2.msra.mxu0 0.0
    %3405 = vmatprep.mubr.f32.mxu0 0.0
    %3406 = vmatmul.mubr.f32.gmra.mxu0 %v2840
    %v3407 = vpop.f32.mrf.mxu0
    %v3408 = vadd.f32 0.0, %v3407
    %v3409 = vpop.f32.mrf.mxu0
    %3410 = vmatprep.mubr.f32.mxu0 0.0
    %3411 = vmatmul.mubr.f32.gmra.mxu0 %v2843
    %v3412 = vpop.f32.mrf.mxu0
    %v3413 = vadd.f32 0.0, %v3412
    %v3414 = vpop.f32.mrf.mxu0
    %3415 = vdwg.mxu0
    %3416 = vmatprep.subr.mxu0 0.0
    %3417 = vmatpush1.msra.mxu0 0.0
    %3418 = vmatprep.subr.mxu0 0.0
    %3419 = vmatpush1.msra.mxu0 0.0
    %3420 = vmatprep.subr.mxu0 0.0
    %3421 = vmatpush1.msra.mxu0 0.0
    %3422 = vmatprep.subr.mxu0 0.0
    %3423 = vmatpush1.msra.mxu0 0.0
    %3424 = vmatprep.subr.mxu0 0.0
    %3425 = vmatpush1.msra.mxu0 0.0
    %3426 = vmatprep.subr.mxu0 0.0
    %3427 = vmatpush1.msra.mxu0 0.0
    %3428 = vmatprep.subr.mxu0 0.0
    %3429 = vmatpush1.msra.mxu0 0.0
    %3430 = vmatprep.subr.mxu0 0.0
    %3431 = vmatpush1.msra.mxu0 0.0
    %3432 = vmatprep.subr.mxu0 0.0
    %3433 = vmatpush1.msra.mxu0 0.0
    %3434 = vmatprep.subr.mxu0 0.0
    %3435 = vmatpush1.msra.mxu0 0.0
    %3436 = vmatprep.subr.mxu0 0.0
    %3437 = vmatpush1.msra.mxu0 0.0
    %3438 = vmatprep.subr.mxu0 0.0
    %3439 = vmatpush1.msra.mxu0 0.0
    %3440 = vmatprep.subr.mxu0 0.0
    %3441 = vmatpush1.msra.mxu0 %v3335
    %3442 = vmatprep.subr.mxu0 0.0
    %3443 = vmatpush1.msra.mxu0 %v3334
    %3444 = vmatprep.subr.mxu0 0.0
    %3445 = vmatpush1.msra.mxu0 %v3333
    %3446 = vmatprep.subr.mxu0 0.0
    %3447 = vmatpush1.msra.mxu0 %v3332
    %3448 = vmatprep.subr.mxu0 0.0
    %3449 = vmatpush2.msra.mxu0 0.0
    %3450 = vmatprep.subr.mxu0 0.0
    %3451 = vmatpush2.msra.mxu0 0.0
    %3452 = vmatprep.subr.mxu0 0.0
    %3453 = vmatpush2.msra.mxu0 0.0
    %3454 = vmatprep.subr.mxu0 0.0
    %3455 = vmatpush2.msra.mxu0 0.0
    %3456 = vmatprep.subr.mxu0 0.0
    %3457 = vmatpush2.msra.mxu0 0.0
    %3458 = vmatprep.subr.mxu0 0.0
    %3459 = vmatpush2.msra.mxu0 0.0
    %3460 = vmatprep.subr.mxu0 0.0
    %3461 = vmatpush2.msra.mxu0 0.0
    %3462 = vmatprep.subr.mxu0 0.0
    %3463 = vmatpush2.msra.mxu0 0.0
    %3464 = vmatprep.subr.mxu0 0.0
    %3465 = vmatpush2.msra.mxu0 0.0
    %3466 = vmatprep.subr.mxu0 0.0
    %3467 = vmatpush2.msra.mxu0 0.0
    %3468 = vmatprep.subr.mxu0 0.0
    %3469 = vmatpush2.msra.mxu0 0.0
    %3470 = vmatprep.subr.mxu0 0.0
    %3471 = vmatpush2.msra.mxu0 0.0
    %3472 = vmatprep.subr.mxu0 0.0
    %3473 = vmatpush2.msra.mxu0 0.0
    %3474 = vmatprep.subr.mxu0 0.0
    %3475 = vmatpush2.msra.mxu0 0.0
    %3476 = vmatprep.subr.mxu0 0.0
    %3477 = vmatpush2.msra.mxu0 0.0
    %3478 = vmatprep.subr.mxu0 0.0
    %3479 = vmatpush2.msra.mxu0 0.0
    %3480 = vmatprep.mubr.f32.mxu0 0.0
    %3481 = vmatmul.mubr.f32.gmra.mxu0 %v2921
    %v3482 = vpop.f32.mrf.mxu0
    %v3483 = vadd.f32 %v3408, %v3482
    %v3484 = vpop.f32.mrf.mxu0
    %3485 = vmatprep.mubr.f32.mxu0 0.0
    %3486 = vmatmul.mubr.f32.gmra.mxu0 %v2924
    %v3487 = vpop.f32.mrf.mxu0
    %v3488 = vadd.f32 %v3413, %v3487
    %v3489 = vpop.f32.mrf.mxu0
    %3490 = vdwg.mxu0
    %s3491 = scalar_lea.vmem [#allocation4], 992
    %v3492 = vld [vmem:[%s3491] sm:$0xff]
    %v3493 = vld [vmem:[%s3491 + $0x8] sm:$0xff]
    %v3494 = vld [vmem:[%s3491 + $0x10] sm:$0xff]
    %v3495 = vld [vmem:[%s3491 + $0x18] sm:$0xff]
    %3496 = vmatprep.subr.mxu0 0.0
    %3497 = vmatpush1.msra.mxu0 0.0
    %3498 = vmatprep.subr.mxu0 0.0
    %3499 = vmatpush1.msra.mxu0 0.0
    %3500 = vmatprep.subr.mxu0 0.0
    %3501 = vmatpush1.msra.mxu0 0.0
    %3502 = vmatprep.subr.mxu0 0.0
    %3503 = vmatpush1.msra.mxu0 0.0
    %3504 = vmatprep.subr.mxu0 0.0
    %3505 = vmatpush1.msra.mxu0 0.0
    %3506 = vmatprep.subr.mxu0 0.0
    %3507 = vmatpush1.msra.mxu0 0.0
    %3508 = vmatprep.subr.mxu0 0.0
    %3509 = vmatpush1.msra.mxu0 0.0
    %3510 = vmatprep.subr.mxu0 0.0
    %3511 = vmatpush1.msra.mxu0 0.0
    %3512 = vmatprep.subr.mxu0 0.0
    %3513 = vmatpush1.msra.mxu0 0.0
    %3514 = vmatprep.subr.mxu0 0.0
    %3515 = vmatpush1.msra.mxu0 0.0
    %3516 = vmatprep.subr.mxu0 0.0
    %3517 = vmatpush1.msra.mxu0 0.0
    %3518 = vmatprep.subr.mxu0 0.0
    %3519 = vmatpush1.msra.mxu0 0.0
    %3520 = vmatprep.subr.mxu0 0.0
    %3521 = vmatpush1.msra.mxu0 %v3495
    %3522 = vmatprep.subr.mxu0 0.0
    %3523 = vmatpush1.msra.mxu0 %v3494
    %3524 = vmatprep.subr.mxu0 0.0
    %3525 = vmatpush1.msra.mxu0 %v3493
    %3526 = vmatprep.subr.mxu0 0.0
    %3527 = vmatpush1.msra.mxu0 %v3492
    %3528 = vmatprep.subr.mxu0 0.0
    %3529 = vmatpush2.msra.mxu0 0.0
    %3530 = vmatprep.subr.mxu0 0.0
    %3531 = vmatpush2.msra.mxu0 0.0
    %3532 = vmatprep.subr.mxu0 0.0
    %3533 = vmatpush2.msra.mxu0 0.0
    %3534 = vmatprep.subr.mxu0 0.0
    %3535 = vmatpush2.msra.mxu0 0.0
    %3536 = vmatprep.subr.mxu0 0.0
    %3537 = vmatpush2.msra.mxu0 0.0
    %3538 = vmatprep.subr.mxu0 0.0
    %3539 = vmatpush2.msra.mxu0 0.0
    %3540 = vmatprep.subr.mxu0 0.0
    %3541 = vmatpush2.msra.mxu0 0.0
    %3542 = vmatprep.subr.mxu0 0.0
    %3543 = vmatpush2.msra.mxu0 0.0
    %3544 = vmatprep.subr.mxu0 0.0
    %3545 = vmatpush2.msra.mxu0 0.0
    %3546 = vmatprep.subr.mxu0 0.0
    %3547 = vmatpush2.msra.mxu0 0.0
    %3548 = vmatprep.subr.mxu0 0.0
    %3549 = vmatpush2.msra.mxu0 0.0
    %3550 = vmatprep.subr.mxu0 0.0
    %3551 = vmatpush2.msra.mxu0 0.0
    %3552 = vmatprep.subr.mxu0 0.0
    %3553 = vmatpush2.msra.mxu0 0.0
    %3554 = vmatprep.subr.mxu0 0.0
    %3555 = vmatpush2.msra.mxu0 0.0
    %3556 = vmatprep.subr.mxu0 0.0
    %3557 = vmatpush2.msra.mxu0 0.0
    %3558 = vmatprep.subr.mxu0 0.0
    %3559 = vmatpush2.msra.mxu0 0.0
    %3560 = vmatprep.mubr.f32.mxu0 0.0
    %3561 = vmatmul.mubr.f32.gmra.mxu0 %v3007
    %v3562 = vpop.f32.mrf.mxu0
    %v3563 = vadd.f32 0.0, %v3562
    %v3564 = vpop.f32.mrf.mxu0
    %3565 = vmatprep.mubr.f32.mxu0 0.0
    %3566 = vmatmul.mubr.f32.gmra.mxu0 %v3010
    %v3567 = vpop.f32.mrf.mxu0
    %v3568 = vadd.f32 0.0, %v3567
    %v3569 = vpop.f32.mrf.mxu0
    %3570 = vdwg.mxu0
    %v3571 = vadd.f32 %v3483, %v3563
    %v3572 = vadd.f32 %v3488, %v3568
    %v3573 = vld [vmem:[%s1 + $0x170] sm:$0xff]
    %v3574 = vld [vmem:[%s1 + $0x178] sm:$0xff]
    %v3576 = vsel %vm256, %v3573, 0
    %v3579 = vsel %vm256, %v3574, 0
    %3581 = vmatprep.subr.mxu0 0.0
    %3582 = vmatpush1.msra.mxu0 0.0
    %3583 = vmatprep.subr.mxu0 0.0
    %3584 = vmatpush1.msra.mxu0 0.0
    %3585 = vmatprep.subr.mxu0 0.0
    %3586 = vmatpush1.msra.mxu0 0.0
    %3587 = vmatprep.subr.mxu0 0.0
    %3588 = vmatpush1.msra.mxu0 0.0
    %3589 = vmatprep.subr.mxu0 0.0
    %3590 = vmatpush1.msra.mxu0 0.0
    %3591 = vmatprep.subr.mxu0 0.0
    %3592 = vmatpush1.msra.mxu0 0.0
    %3593 = vmatprep.subr.mxu0 0.0
    %3594 = vmatpush1.msra.mxu0 0.0
    %3595 = vmatprep.subr.mxu0 0.0
    %3596 = vmatpush1.msra.mxu0 0.0
    %3597 = vmatprep.subr.mxu0 0.0
    %3598 = vmatpush1.msra.mxu0 0.0
    %3599 = vmatprep.subr.mxu0 0.0
    %3600 = vmatpush1.msra.mxu0 0.0
    %3601 = vmatprep.subr.mxu0 0.0
    %3602 = vmatpush1.msra.mxu0 0.0
    %3603 = vmatprep.subr.mxu0 0.0
    %3604 = vmatpush1.msra.mxu0 0.0
    %3605 = vmatprep.subr.mxu0 0.0
    %3606 = vmatpush1.msra.mxu0 0.0
    %3607 = vmatprep.subr.mxu0 0.0
    %3608 = vmatpush1.msra.mxu0 0.0
    %3609 = vmatprep.subr.mxu0 0.0
    %3610 = vmatpush1.msra.mxu0 %v3088
    %3611 = vmatprep.subr.mxu0 0.0
    %3612 = vmatpush1.msra.mxu0 %v3087
    %3613 = vmatprep.subr.mxu0 0.0
    %3614 = vmatpush2.msra.mxu0 0.0
    %3615 = vmatprep.subr.mxu0 0.0
    %3616 = vmatpush2.msra.mxu0 0.0
    %3617 = vmatprep.subr.mxu0 0.0
    %3618 = vmatpush2.msra.mxu0 0.0
    %3619 = vmatprep.subr.mxu0 0.0
    %3620 = vmatpush2.msra.mxu0 0.0
    %3621 = vmatprep.subr.mxu0 0.0
    %3622 = vmatpush2.msra.mxu0 0.0
    %3623 = vmatprep.subr.mxu0 0.0
    %3624 = vmatpush2.msra.mxu0 0.0
    %3625 = vmatprep.subr.mxu0 0.0
    %3626 = vmatpush2.msra.mxu0 0.0
    %3627 = vmatprep.subr.mxu0 0.0
    %3628 = vmatpush2.msra.mxu0 0.0
    %3629 = vmatprep.subr.mxu0 0.0
    %3630 = vmatpush2.msra.mxu0 0.0
    %3631 = vmatprep.subr.mxu0 0.0
    %3632 = vmatpush2.msra.mxu0 0.0
    %3633 = vmatprep.subr.mxu0 0.0
    %3634 = vmatpush2.msra.mxu0 0.0
    %3635 = vmatprep.subr.mxu0 0.0
    %3636 = vmatpush2.msra.mxu0 0.0
    %3637 = vmatprep.subr.mxu0 0.0
    %3638 = vmatpush2.msra.mxu0 0.0
    %3639 = vmatprep.subr.mxu0 0.0
    %3640 = vmatpush2.msra.mxu0 0.0
    %3641 = vmatprep.subr.mxu0 0.0
    %3642 = vmatpush2.msra.mxu0 0.0
    %3643 = vmatprep.subr.mxu0 0.0
    %3644 = vmatpush2.msra.mxu0 0.0
    %3645 = vmatprep.mubr.f32.mxu0 0.0
    %3646 = vmatmul.mubr.f32.gmra.mxu0 %v3576
    %v3647 = vpop.f32.mrf.mxu0
    %v3648 = vadd.f32 %v3329, %v3647
    %v3649 = vpop.f32.mrf.mxu0
    %3650 = vmatprep.mubr.f32.mxu0 0.0
    %3651 = vmatmul.mubr.f32.gmra.mxu0 %v3579
    %v3652 = vpop.f32.mrf.mxu0
    %v3653 = vadd.f32 %v3330, %v3652
    %v3654 = vpop.f32.mrf.mxu0
    %3655 = vdwg.mxu0
    %v3656 = vld [vmem:[%s1 + $0x180] sm:$0xff]
    %v3657 = vld [vmem:[%s1 + $0x188] sm:$0xff]
    %v3659 = vsel %vm256, %v3656, 0
    %v3662 = vsel %vm256, %v3657, 0
    %3664 = vmatprep.subr.mxu0 0.0
    %3665 = vmatpush1.msra.mxu0 0.0
    %3666 = vmatprep.subr.mxu0 0.0
    %3667 = vmatpush1.msra.mxu0 0.0
    %3668 = vmatprep.subr.mxu0 0.0
    %3669 = vmatpush1.msra.mxu0 0.0
    %3670 = vmatprep.subr.mxu0 0.0
    %3671 = vmatpush1.msra.mxu0 0.0
    %3672 = vmatprep.subr.mxu0 0.0
    %3673 = vmatpush1.msra.mxu0 0.0
    %3674 = vmatprep.subr.mxu0 0.0
    %3675 = vmatpush1.msra.mxu0 0.0
    %3676 = vmatprep.subr.mxu0 0.0
    %3677 = vmatpush1.msra.mxu0 0.0
    %3678 = vmatprep.subr.mxu0 0.0
    %3679 = vmatpush1.msra.mxu0 0.0
    %3680 = vmatprep.subr.mxu0 0.0
    %3681 = vmatpush1.msra.mxu0 0.0
    %3682 = vmatprep.subr.mxu0 0.0
    %3683 = vmatpush1.msra.mxu0 0.0
    %3684 = vmatprep.subr.mxu0 0.0
    %3685 = vmatpush1.msra.mxu0 0.0
    %3686 = vmatprep.subr.mxu0 0.0
    %3687 = vmatpush1.msra.mxu0 0.0
    %3688 = vmatprep.subr.mxu0 0.0
    %3689 = vmatpush1.msra.mxu0 0.0
    %3690 = vmatprep.subr.mxu0 0.0
    %3691 = vmatpush1.msra.mxu0 0.0
    %3692 = vmatprep.subr.mxu0 0.0
    %3693 = vmatpush1.msra.mxu0 %v3572
    %3694 = vmatprep.subr.mxu0 0.0
    %3695 = vmatpush1.msra.mxu0 %v3571
    %3696 = vmatprep.subr.mxu0 0.0
    %3697 = vmatpush2.msra.mxu0 0.0
    %3698 = vmatprep.subr.mxu0 0.0
    %3699 = vmatpush2.msra.mxu0 0.0
    %3700 = vmatprep.subr.mxu0 0.0
    %3701 = vmatpush2.msra.mxu0 0.0
    %3702 = vmatprep.subr.mxu0 0.0
    %3703 = vmatpush2.msra.mxu0 0.0
    %3704 = vmatprep.subr.mxu0 0.0
    %3705 = vmatpush2.msra.mxu0 0.0
    %3706 = vmatprep.subr.mxu0 0.0
    %3707 = vmatpush2.msra.mxu0 0.0
    %3708 = vmatprep.subr.mxu0 0.0
    %3709 = vmatpush2.msra.mxu0 0.0
    %3710 = vmatprep.subr.mxu0 0.0
    %3711 = vmatpush2.msra.mxu0 0.0
    %3712 = vmatprep.subr.mxu0 0.0
    %3713 = vmatpush2.msra.mxu0 0.0
    %3714 = vmatprep.subr.mxu0 0.0
    %3715 = vmatpush2.msra.mxu0 0.0
    %3716 = vmatprep.subr.mxu0 0.0
    %3717 = vmatpush2.msra.mxu0 0.0
    %3718 = vmatprep.subr.mxu0 0.0
    %3719 = vmatpush2.msra.mxu0 0.0
    %3720 = vmatprep.subr.mxu0 0.0
    %3721 = vmatpush2.msra.mxu0 0.0
    %3722 = vmatprep.subr.mxu0 0.0
    %3723 = vmatpush2.msra.mxu0 0.0
    %3724 = vmatprep.subr.mxu0 0.0
    %3725 = vmatpush2.msra.mxu0 0.0
    %3726 = vmatprep.subr.mxu0 0.0
    %3727 = vmatpush2.msra.mxu0 0.0
    %3728 = vmatprep.mubr.f32.mxu0 0.0
    %3729 = vmatmul.mubr.f32.gmra.mxu0 %v3659
    %v3730 = vpop.f32.mrf.mxu0
    %v3731 = vadd.f32 0.0, %v3730
    %v3732 = vpop.f32.mrf.mxu0
    %3733 = vmatprep.mubr.f32.mxu0 0.0
    %3734 = vmatmul.mubr.f32.gmra.mxu0 %v3662
    %v3735 = vpop.f32.mrf.mxu0
    %v3736 = vadd.f32 0.0, %v3735
    %v3737 = vpop.f32.mrf.mxu0
    %3738 = vdwg.mxu0
    %v3739 = vadd.f32 %v3648, %v3731
    %v3740 = vadd.f32 %v3653, %v3736
    %v3741 = vld [vmem:[%s3 + $0x4] sm:$0x1]
    %v3742 = vlaneseq
    %v3743 = vshrl.u32 %v3742, 7
    %v3744 = vsub.s32 0, %v3743
    %v3745 = vrot.slane %v3741, %v3744
    %v3746 = vadd.f32 %v3739, %v3745
    %v3747 = vadd.f32 %v3740, %v3745
    %3748 = vst.msk [vmem:[#allocation2] sm:$0xff] %vm47, %v3746
    %3749 = vst.msk [vmem:[#allocation2 + $0x8] sm:$0xff] %vm47, %v3747
    %v3750 = vld [vmem:[#allocation2] sm:$0x3]
    %vm3751 = vcmask 254976
    %3752 = vst.msk [vmem:[#allocation3] sm:$0x3] %vm3751, %v3750
    %v3753 = vld [vmem:[#allocation2 + $0x2] sm:$0x3]
    %v3756 = vunpack.c.l.s4 1983009808
    %v3757 = vunpack.c.0.s8 %v3756
    %v3758 = vlaneseq
    %v3759 = vshrl.u32 %v3758, 7
    %v3760 = vsub.s32 %v3757, %v3759
    %v3761 = vrot.slane %v3753, %v3760
    %3762 = vrot.lane.b32.xlu0 %v3761, 32
    %v3763 = vpop.permute.xlu0 %3762
    %vm3765 = vcmask 517376
    %3766 = vst.msk [vmem:[#allocation3] sm:$0x3] %vm3765, %v3763
    %v3767 = vld [vmem:[#allocation2 + $0x4] sm:$0x3]
    %v3770 = vunpack.c.l.s4 1983009808
    %v3771 = vunpack.c.0.s8 %v3770
    %v3772 = vlaneseq
    %v3773 = vshrl.u32 %v3772, 7
    %v3774 = vsub.s32 %v3771, %v3773
    %v3775 = vrot.slane %v3767, %v3774
    %3776 = vrot.lane.b32.xlu0 %v3775, 64
    %v3777 = vpop.permute.xlu0 %3776
    %vm3779 = vcmask 779776
    %3780 = vst.msk [vmem:[#allocation3] sm:$0x3] %vm3779, %v3777
    %v3781 = vld [vmem:[#allocation2 + $0x6] sm:$0x3]
    %v3784 = vunpack.c.l.s4 1983009808
    %v3785 = vunpack.c.0.s8 %v3784
    %v3786 = vlaneseq
    %v3787 = vshrl.u32 %v3786, 7
    %v3788 = vsub.s32 %v3785, %v3787
    %v3789 = vrot.slane %v3781, %v3788
    %3790 = vrot.lane.b32.xlu0 %v3789, 96
    %v3791 = vpop.permute.xlu0 %3790
    %vm3793 = vcmask 1042176
    %3794 = vst.msk [vmem:[#allocation3] sm:$0x3] %vm3793, %v3791
    %v3795 = vld [vmem:[#allocation2 + $0x8] sm:$0x3]
    %3796 = vst.msk [vmem:[#allocation3 + $0x2] sm:$0x3] %vm3751, %v3795
    %v3797 = vld [vmem:[#allocation2 + $0xa] sm:$0x3]
    %v3800 = vunpack.c.l.s4 1983009808
    %v3801 = vunpack.c.0.s8 %v3800
    %v3802 = vlaneseq
    %v3803 = vshrl.u32 %v3802, 7
    %v3804 = vsub.s32 %v3801, %v3803
    %v3805 = vrot.slane %v3797, %v3804
    %3806 = vrot.lane.b32.xlu0 %v3805, 32
    %v3807 = vpop.permute.xlu0 %3806
    %3809 = vst.msk [vmem:[#allocation3 + $0x2] sm:$0x3] %vm3765, %v3807
    %v3810 = vld [vmem:[#allocation2 + $0xc] sm:$0x3]
    %v3813 = vunpack.c.l.s4 1983009808
    %v3814 = vunpack.c.0.s8 %v3813
    %v3815 = vlaneseq
    %v3816 = vshrl.u32 %v3815, 7
    %v3817 = vsub.s32 %v3814, %v3816
    %v3818 = vrot.slane %v3810, %v3817
    %3819 = vrot.lane.b32.xlu0 %v3818, 64
    %v3820 = vpop.permute.xlu0 %3819
    %3822 = vst.msk [vmem:[#allocation3 + $0x2] sm:$0x3] %vm3779, %v3820
    %v3823 = vld [vmem:[#allocation2 + $0xe] sm:$0x3]
    %v3826 = vunpack.c.l.s4 1983009808
    %v3827 = vunpack.c.0.s8 %v3826
    %v3828 = vlaneseq
    %v3829 = vshrl.u32 %v3828, 7
    %v3830 = vsub.s32 %v3827, %v3829
    %v3831 = vrot.slane %v3823, %v3830
    %3832 = vrot.lane.b32.xlu0 %v3831, 96
    %v3833 = vpop.permute.xlu0 %3832
    %3835 = vst.msk [vmem:[#allocation3 + $0x2] sm:$0x3] %vm3793, %v3833
    %v3836 = vld [vmem:[#allocation3] sm:$0xf]
    %v3837 = vld [vmem:[%s4] sm:$0xff]
    %v3838 = vld [vmem:[%s4 + $0x8] sm:$0xff]
    %v3839 = vld [vmem:[%s4 + $0x10] sm:$0xff]
    %v3840 = vld [vmem:[%s4 + $0x18] sm:$0xff]
    %v3841 = vld [vmem:[%s4 + $0x20] sm:$0xff]
    %v3842 = vld [vmem:[%s4 + $0x28] sm:$0xff]
    %v3843 = vld [vmem:[%s4 + $0x30] sm:$0xff]
    %v3844 = vld [vmem:[%s4 + $0x38] sm:$0xff]
    %v3845 = vld [vmem:[%s4 + $0x40] sm:$0xff]
    %v3846 = vld [vmem:[%s4 + $0x48] sm:$0xff]
    %v3847 = vld [vmem:[%s4 + $0x50] sm:$0xff]
    %v3848 = vld [vmem:[%s4 + $0x58] sm:$0xff]
    %v3849 = vld [vmem:[%s4 + $0x60] sm:$0xff]
    %v3850 = vld [vmem:[%s4 + $0x68] sm:$0xff]
    %v3851 = vld [vmem:[%s4 + $0x70] sm:$0xff]
    %v3852 = vld [vmem:[%s4 + $0x78] sm:$0xff]
    %v3853 = vld [vmem:[%s4 + $0x80] sm:$0xff]
    %v3854 = vld [vmem:[%s4 + $0x88] sm:$0xff]
    %v3855 = vld [vmem:[%s4 + $0x90] sm:$0xff]
    %v3856 = vld [vmem:[%s4 + $0x98] sm:$0xff]
    %v3857 = vld [vmem:[%s4 + $0xa0] sm:$0xff]
    %v3858 = vld [vmem:[%s4 + $0xa8] sm:$0xff]
    %v3859 = vld [vmem:[%s4 + $0xb0] sm:$0xff]
    %v3860 = vld [vmem:[%s4 + $0xb8] sm:$0xff]
    %v3861 = vld [vmem:[%s4 + $0xc0] sm:$0xff]
    %v3862 = vld [vmem:[%s4 + $0xc8] sm:$0xff]
    %v3863 = vld [vmem:[%s4 + $0xd0] sm:$0xff]
    %v3864 = vld [vmem:[%s4 + $0xd8] sm:$0xff]
    %v3865 = vld [vmem:[%s4 + $0xe0] sm:$0xff]
    %v3866 = vld [vmem:[%s4 + $0xe8] sm:$0xff]
    %v3867 = vld [vmem:[%s4 + $0xf0] sm:$0xff]
    %v3868 = vld [vmem:[%s4 + $0xf8] sm:$0xff]
    %v3869 = vld [vmem:[%s4 + $0x100] sm:$0x1]
    %v3870 = vlaneseq
    %v3871 = vshrl.u32 %v3870, 7
    %v3872 = vsub.s32 0, %v3871
    %v3873 = vrot.slane %v3869, %v3872
    %v3876 = vunpack.c.l.s4 1983009808
    %v3877 = vunpack.c.0.s8 %v3876
    %v3878 = vlaneseq
    %v3879 = vshrl.u32 %v3878, 7
    %v3880 = vsub.s32 %v3877, %v3879
    %v3881 = vrot.slane %v3836, %v3880
    %v3882 = vcombine.high %v3881, %v3881
    %3885 = vmatprep.subr.mxu0 0.0
    %3886 = vmatpush1.msra.mxu0 %v3852
    %3887 = vmatprep.subr.mxu0 0.0
    %3888 = vmatpush1.msra.mxu0 %v3851
    %3889 = vmatprep.subr.mxu0 0.0
    %3890 = vmatpush1.msra.mxu0 %v3850
    %3891 = vmatprep.subr.mxu0 0.0
    %3892 = vmatpush1.msra.mxu0 %v3849
    %3893 = vmatprep.subr.mxu0 0.0
    %3894 = vmatpush1.msra.mxu0 %v3848
    %3895 = vmatprep.subr.mxu0 0.0
    %3896 = vmatpush1.msra.mxu0 %v3847
    %3897 = vmatprep.subr.mxu0 0.0
    %3898 = vmatpush1.msra.mxu0 %v3846
    %3899 = vmatprep.subr.mxu0 0.0
    %3900 = vmatpush1.msra.mxu0 %v3845
    %3901 = vmatprep.subr.mxu0 0.0
    %3902 = vmatpush1.msra.mxu0 %v3844
    %3903 = vmatprep.subr.mxu0 0.0
    %3904 = vmatpush1.msra.mxu0 %v3843
    %3905 = vmatprep.subr.mxu0 0.0
    %3906 = vmatpush1.msra.mxu0 %v3842
    %3907 = vmatprep.subr.mxu0 0.0
    %3908 = vmatpush1.msra.mxu0 %v3841
    %3909 = vmatprep.subr.mxu0 0.0
    %3910 = vmatpush1.msra.mxu0 %v3840
    %3911 = vmatprep.subr.mxu0 0.0
    %3912 = vmatpush1.msra.mxu0 %v3839
    %3913 = vmatprep.subr.mxu0 0.0
    %3914 = vmatpush1.msra.mxu0 %v3838
    %3915 = vmatprep.subr.mxu0 0.0
    %3916 = vmatpush1.msra.mxu0 %v3837
    %3917 = vmatprep.subr.mxu0 0.0
    %3918 = vmatpush2.msra.mxu0 %v3868
    %3919 = vmatprep.subr.mxu0 0.0
    %3920 = vmatpush2.msra.mxu0 %v3867
    %3921 = vmatprep.subr.mxu0 0.0
    %3922 = vmatpush2.msra.mxu0 %v3866
    %3923 = vmatprep.subr.mxu0 0.0
    %3924 = vmatpush2.msra.mxu0 %v3865
    %3925 = vmatprep.subr.mxu0 0.0
    %3926 = vmatpush2.msra.mxu0 %v3864
    %3927 = vmatprep.subr.mxu0 0.0
    %3928 = vmatpush2.msra.mxu0 %v3863
    %3929 = vmatprep.subr.mxu0 0.0
    %3930 = vmatpush2.msra.mxu0 %v3862
    %3931 = vmatprep.subr.mxu0 0.0
    %3932 = vmatpush2.msra.mxu0 %v3861
    %3933 = vmatprep.subr.mxu0 0.0
    %3934 = vmatpush2.msra.mxu0 %v3860
    %3935 = vmatprep.subr.mxu0 0.0
    %3936 = vmatpush2.msra.mxu0 %v3859
    %3937 = vmatprep.subr.mxu0 0.0
    %3938 = vmatpush2.msra.mxu0 %v3858
    %3939 = vmatprep.subr.mxu0 0.0
    %3940 = vmatpush2.msra.mxu0 %v3857
    %3941 = vmatprep.subr.mxu0 0.0
    %3942 = vmatpush2.msra.mxu0 %v3856
    %3943 = vmatprep.subr.mxu0 0.0
    %3944 = vmatpush2.msra.mxu0 %v3855
    %3945 = vmatprep.subr.mxu0 0.0
    %3946 = vmatpush2.msra.mxu0 %v3854
    %3947 = vmatprep.subr.mxu0 0.0
    %3948 = vmatpush2.msra.mxu0 %v3853
    %3949 = vmatprep.mubr.f32.mxu0 %v3882
    %3950 = vmatmul.mubr.f32.gmra.mxu0 %v3881
    %v3951 = vpop.f32.mrf.mxu0
    %v3952 = vadd.f32 %v3873, %v3951
    %v3953 = vpop.f32.mrf.mxu0
    %3954 = vdwg.mxu0
    %3955 = vst [vmem:[#allocation7] sm:$0x3] %v3952
    // Predicated region
    $region26: #{tpu_custom_call.1} parent=1 // pred_check
      _
    $region27: #{tpu_custom_call.1} parent=1 // pred_check_branch
      %3957 = sbr.rel (0) target = $region29
    $region28: #{tpu_custom_call.1} parent=1 // pred_region
      %s3959 = ssub.s32 32, 32
      %3960 = vsyncadd [#allocation6], %s3959
      %s3962 = sshll.u32 [#allocation7], 4
      %s3963 = int_to_ptr.vmem [resolvable:$true] %s3962
      %3965 = dma.vmem_to_hbm [thread:$0]  %s3963, 32, %s5, [#allocation6]
    $region29: #{tpu_custom_call.1} parent=1 // pred_fallthru
      _
    // Predicated region
    $region30: #{tpu_custom_call.1} parent=1 // pred_check
      _
    $region31: #{tpu_custom_call.1} parent=1 // pred_check_branch
      %3967 = sbr.rel (0) target = $region33
    $region32: #{tpu_custom_call.1} parent=1 // pred_region
      %3968 = dma.done [#allocation6], 32
    $region33: #{tpu_custom_call.1} parent=1 // pred_fallthru
      _
    %3969 = vsyncpa [#allocation5], 1
    %3970 = vsyncpa [#allocation6], 1

</llo_original>
